<compile_context>
chip_gen: v7x
topology: tpu7x:2x2x1
jax: 0.10.0
libtpu: 0.0.40
codegen_flags: <defaults>
</compile_context>

<pallas_src>
import functools

import jax
import jax.numpy as jnp
from jax.experimental import pallas as pl
from jax.experimental.pallas import tpu as pltpu


# -----------------------------------------------------------------------------
# In-kernel math helpers (exp / mul / add / select only -> guaranteed to lower)
# -----------------------------------------------------------------------------

def _erf(x):
    """erf via Abramowitz & Stegun 7.1.26 (|err| < 1.5e-7), exp-only."""
    a1, a2, a3, a4, a5 = (0.254829592, -0.284496736, 1.421413741,
                          -1.453152027, 1.061405429)
    p = 0.3275911
    sign = jnp.where(x >= 0.0, 1.0, -1.0)
    z = jnp.abs(x)
    t = 1.0 / (1.0 + p * z)
    poly = ((((a5 * t + a4) * t + a3) * t + a2) * t + a1) * t
    return sign * (1.0 - poly * jnp.exp(-z * z))


def _gelu_exact(x):
    """Matches torch.nn.GELU() (exact erf formulation) to ~1e-7."""
    return 0.5 * x * (1.0 + _erf(x * 0.7071067811865476))


def _sigmoid(x):
    return 1.0 / (1.0 + jnp.exp(-x))


# -----------------------------------------------------------------------------
# Fused CAB kernel: conv3x3 -> GELU -> conv3x3 -> ChannelAttention (per batch).
# -----------------------------------------------------------------------------

def _cab_kernel(xp_ref, w1_ref, b1_ref, w2_ref, b2_ref,
                wa1_ref, ba1_ref, wa2_ref, ba2_ref,
                o_ref, pad_ref, *, H, W):
    # xp_ref : (H+2, W+2, C)      zero-padded NHWC input (one batch element)
    # w1_ref : (9*C, Cmid)        conv1 taps stacked on K     b1_ref : (1, Cmid)
    # w2_ref : (9*Cmid, C)        conv2 taps stacked on K     b2_ref : (1, C)
    # wa1_ref: (Csq, C)           squeeze weight (lane=C)     ba1_ref: (Csq, 1)
    # wa2_ref: (Csq, C)           excite  weight (lane=C)     ba2_ref: (1, C)
    # o_ref  : (H*W, C)           lane-dense output slab
    # pad_ref: (H+2, W+2, Cmid)   zero-bordered conv1 activation (VMEM scratch)
    C = xp_ref.shape[-1]
    Cmid = pad_ref.shape[-1]
    Hp, Wp = H + 2, W + 2
    HW = H * W
    f32 = jnp.float32

    # ---- conv1: im2col (9 taps packed onto K) -> ONE MXU matmul + bias + GELU ----
    parts = []
    for dh in range(3):
        slab = xp_ref[dh:dh + H, :, :].astype(f32)      # (H, Wp, C) leading-dim slice
        for dw in range(3):
            parts.append(slab[:, dw:dw + W, :].reshape(HW, C))
    xcat = jnp.concatenate(parts, axis=-1)              # (HW, 9*C)
    acc1 = jnp.dot(xcat, w1_ref[...].astype(f32),
                   preferred_element_type=jnp.float32)  # (HW, Cmid)
    act = _gelu_exact(acc1 + b1_ref[...].astype(f32))

    # ---- zero-bordered activation into scratch with aligned full-row stores -----
    act3 = act.reshape(H, W, Cmid)
    zcol = jnp.zeros((H, 1, Cmid), f32)
    act_p = jnp.concatenate([zcol, act3, zcol], axis=1)          # (H, Wp, Cmid)
    pad_ref[0:1, :, :] = jnp.zeros((1, Wp, Cmid), f32)           # top border row
    pad_ref[Hp - 1:Hp, :, :] = jnp.zeros((1, Wp, Cmid), f32)     # bottom border row
    pad_ref[1:H + 1, :, :] = act_p                               # full-width rows

    # ---- conv2: im2col (9 taps packed onto K) -> ONE MXU matmul + bias ----------
    parts2 = []
    for dh in range(3):
        slab2 = pad_ref[dh:dh + H, :, :]                # (H, Wp, Cmid)
        for dw in range(3):
            parts2.append(slab2[:, dw:dw + W, :].reshape(HW, Cmid))
    hcat = jnp.concatenate(parts2, axis=-1)             # (HW, 9*Cmid)
    acc2 = jnp.dot(hcat, w2_ref[...].astype(f32),
                   preferred_element_type=jnp.float32)  # (HW, C)
    acc2 = acc2 + b2_ref[...].astype(f32)

    # ---- channel attention on VPU/XLU (no M=1 MXU matmuls) ----------------------
    pooled = jnp.mean(acc2, axis=0, keepdims=True)                          # (1, C)
    hidden = jnp.sum(pooled * wa1_ref[...].astype(f32),
                     axis=-1, keepdims=True)                                # (Csq, 1)
    hidden = jnp.maximum(hidden + ba1_ref[...].astype(f32), 0.0)
    att = jnp.sum(hidden * wa2_ref[...].astype(f32),
                  axis=0, keepdims=True)                                    # (1, C)
    att = _sigmoid(att + ba2_ref[...].astype(f32))

    o_ref[...] = (acc2 * att).astype(o_ref.dtype)


# -----------------------------------------------------------------------------
# Wrapper: PyTorch NCHW / OIHW parameters in, NCHW out.
# -----------------------------------------------------------------------------

def cab_forward(x, w1, b1, w2, b2, wa1, ba1, wa2, ba2):
    """CAB forward (is_light_sr=False path).

    x  : (B, C, H, W)                       NCHW, as in PyTorch
    w1 : (Cmid, C, 3, 3),  b1 : (Cmid,)     conv3x3  C    -> Cmid
    w2 : (C, Cmid, 3, 3),  b2 : (C,)        conv3x3  Cmid -> C
    wa1: (Csq, C, 1, 1),   ba1: (Csq,)      squeeze 1x1
    wa2: (C, Csq, 1, 1),   ba2: (C,)        excite  1x1
    """
    B, C, H, W = x.shape
    Cmid = w1.shape[0]
    Csq = wa1.shape[0]
    Hp, Wp, HW = H + 2, W + 2, H * W

    # NCHW -> NHWC, +1 pixel zero pad on H and W.
    x_nhwc = jnp.transpose(x, (0, 2, 3, 1))
    xp = jnp.pad(x_nhwc, ((0, 0), (1, 1), (1, 1), (0, 0)))

    # torch OIHW -> HWIO -> taps stacked on the contraction (K) axis.
    # Row order matches the in-kernel concat: ((dh*3 + dw) * Cin) + cin.
    w1_k = jnp.transpose(w1, (2, 3, 1, 0)).reshape(9 * C, Cmid)      # (9*C,    Cmid)
    w2_k = jnp.transpose(w2, (2, 3, 1, 0)).reshape(9 * Cmid, C)      # (9*Cmid, C)
    b1_k = b1.reshape(1, Cmid)
    b2_k = b2.reshape(1, C)
    # Channel-attention weights stored lane-dense with C on the lane axis.
    wa1_k = wa1[:, :, 0, 0]                                          # (Csq, C)
    wa2_k = jnp.transpose(wa2[:, :, 0, 0], (1, 0))                   # (Csq, C)
    ba1_k = ba1.reshape(Csq, 1)
    ba2_k = ba2.reshape(1, C)

    kernel = functools.partial(_cab_kernel, H=H, W=W)

    conv1_flops = 2 * B * HW * 9 * C * Cmid
    conv2_flops = 2 * B * HW * 9 * Cmid * C
    attn_flops = 2 * B * (C * Csq + Csq * C)
    cost = pl.CostEstimate(
        flops=int(conv1_flops + conv2_flops + attn_flops),
        transcendentals=int(B * (HW * Cmid + C)),
        bytes_accessed=int(
            4 * (xp.size + B * HW * C)
            + 4 * (w1_k.size + w2_k.size + wa1_k.size + wa2_k.size
                   + b1_k.size + b2_k.size + ba1_k.size + ba2_k.size)),
    )

    out_flat = pl.pallas_call(
        kernel,
        out_shape=jax.ShapeDtypeStruct((B, HW, C), x.dtype),
        grid_spec=pltpu.PrefetchScalarGridSpec(
            num_scalar_prefetch=0,
            grid=(B,),
            in_specs=[
                pl.BlockSpec((None, Hp, Wp, C), lambda b: (b, 0, 0, 0)),
                # Constant index_maps: weights/biases stay VMEM-resident across steps.
                pl.BlockSpec((9 * C, Cmid), lambda b: (0, 0)),
                pl.BlockSpec((1, Cmid), lambda b: (0, 0)),
                pl.BlockSpec((9 * Cmid, C), lambda b: (0, 0)),
                pl.BlockSpec((1, C), lambda b: (0, 0)),
                pl.BlockSpec((Csq, C), lambda b: (0, 0)),
                pl.BlockSpec((Csq, 1), lambda b: (0, 0)),
                pl.BlockSpec((Csq, C), lambda b: (0, 0)),
                pl.BlockSpec((1, C), lambda b: (0, 0)),
            ],
            out_specs=pl.BlockSpec((None, HW, C), lambda b: (b, 0, 0)),
            scratch_shapes=[pltpu.VMEM((Hp, Wp, Cmid), jnp.float32)],
        ),
        compiler_params=pltpu.CompilerParams(
            dimension_semantics=("parallel",),
            # Sized for v7x's 64 MiB/TC VMEM (also fine on v5e/v6e); usage here is
            # only a few MiB per step.
            vmem_limit_bytes=32 * 1024 * 1024,
        ),
        cost_estimate=cost,
    )(xp, w1_k, b1_k, w2_k, b2_k, wa1_k, ba1_k, wa2_k, ba2_k)

    # (B, H*W, C) -> (B, C, H, W)
    return jnp.transpose(out_flat.reshape(B, H, W, C), (0, 3, 1, 2))


if __name__ == "__main__":
    key = jax.random.PRNGKey(0)
    # num_feat=60 is the smallest "nice" CAB config: C//3 = 20, C//30 = 2.
    B, C, H, W = 2, 60, 16, 16
    compress_ratio, squeeze_factor = 3, 30
    Cmid, Csq = C // compress_ratio, C // squeeze_factor

    ks = jax.random.split(key, 9)
    x = jax.random.normal(ks[0], (B, C, H, W), dtype=jnp.float32)
    w1 = jax.random.normal(ks[1], (Cmid, C, 3, 3), jnp.float32) / jnp.sqrt(9.0 * C)
    b1 = 0.1 * jax.random.normal(ks[2], (Cmid,), jnp.float32)
    w2 = jax.random.normal(ks[3], (C, Cmid, 3, 3), jnp.float32) / jnp.sqrt(9.0 * Cmid)
    b2 = 0.1 * jax.random.normal(ks[4], (C,), jnp.float32)
    wa1 = jax.random.normal(ks[5], (Csq, C, 1, 1), jnp.float32) / jnp.sqrt(1.0 * C)
    ba1 = 0.1 * jax.random.normal(ks[6], (Csq,), jnp.float32)
    wa2 = jax.random.normal(ks[7], (C, Csq, 1, 1), jnp.float32) / jnp.sqrt(1.0 * Csq)
    ba2 = 0.1 * jax.random.normal(ks[8], (C,), jnp.float32)

    out = jax.jit(cab_forward)(x, w1, b1, w2, b2, wa1, ba1, wa2, ba2)
    out = jax.block_until_ready(out)

    # Independent pure-JAX/XLA reference using lax.conv on the torch layouts.
    def tconv(v, w, b, pad):
        r = jax.lax.conv_general_dilated(
            v, w, window_strides=(1, 1), padding=((pad, pad), (pad, pad)),
            dimension_numbers=("NCHW", "OIHW", "NCHW"))
        return r + b[None, :, None, None]

    t = tconv(x, w1, b1, 1)
    t = jax.nn.gelu(t, approximate=False)
    t = tconv(t, w2, b2, 1)
    pooled = jnp.mean(t, axis=(2, 3), keepdims=True)
    a = jnp.maximum(tconv(pooled, wa1, ba1, 0), 0.0)
    a = jax.nn.sigmoid(tconv(a, wa2, ba2, 0))
    ref = t * a

    assert out.shape == (B, C, H, W)
    assert jnp.max(jnp.abs(out - ref)) < 1e-3, "mismatch vs reference"

    print("KERNEL_OK")
</pallas_src>

<mosaic_0001>
module attributes {stable_mosaic.version = 11 : i64} {
  func.func @_cab_kernel(%arg0: i32, %arg1: memref<1x18x18x60xf32, #tpu.memory_space<vmem>>, %arg2: memref<540x20xf32, #tpu.memory_space<vmem>>, %arg3: memref<1x20xf32, #tpu.memory_space<vmem>>, %arg4: memref<180x60xf32, #tpu.memory_space<vmem>>, %arg5: memref<1x60xf32, #tpu.memory_space<vmem>>, %arg6: memref<2x60xf32, #tpu.memory_space<vmem>>, %arg7: memref<2x1xf32, #tpu.memory_space<vmem>>, %arg8: memref<2x60xf32, #tpu.memory_space<vmem>>, %arg9: memref<1x60xf32, #tpu.memory_space<vmem>>, %arg10: memref<1x256x60xf32, #tpu.memory_space<vmem>>, %arg11: memref<18x18x20xf32, #tpu.memory_space<vmem>>) attributes {dimension_semantics = [#tpu.dimension_semantics<parallel>], iteration_bounds = array<i64: 2>, scalar_prefetch = 0 : i64, scratch_operands = 1 : i64, tpu.core_type = #tpu.core_type<tc>, window_params = [{transform_indices = @transform_0, window_bounds = array<i64: 1, 18, 18, 60>}, {pipeline_mode = #tpu.pipeline_mode<synchronous>, transform_indices = @transform_1, window_bounds = array<i64: 540, 20>}, {pipeline_mode = #tpu.pipeline_mode<synchronous>, transform_indices = @transform_2, window_bounds = array<i64: 1, 20>}, {pipeline_mode = #tpu.pipeline_mode<synchronous>, transform_indices = @transform_3, window_bounds = array<i64: 180, 60>}, {pipeline_mode = #tpu.pipeline_mode<synchronous>, transform_indices = @transform_4, window_bounds = array<i64: 1, 60>}, {pipeline_mode = #tpu.pipeline_mode<synchronous>, transform_indices = @transform_5, window_bounds = array<i64: 2, 60>}, {pipeline_mode = #tpu.pipeline_mode<synchronous>, transform_indices = @transform_6, window_bounds = array<i64: 2, 1>}, {pipeline_mode = #tpu.pipeline_mode<synchronous>, transform_indices = @transform_7, window_bounds = array<i64: 2, 60>}, {pipeline_mode = #tpu.pipeline_mode<synchronous>, transform_indices = @transform_8, window_bounds = array<i64: 1, 60>}, {transform_indices = @transform_9, window_bounds = array<i64: 1, 256, 60>}]} {
    %c0 = arith.constant 0 : index
    %c0_0 = arith.constant 0 : index
    %c0_1 = arith.constant 0 : index
    %c0_2 = arith.constant 0 : index
    %0 = vector.load %arg1[%c0, %c0_0, %c0_1, %c0_2] : memref<1x18x18x60xf32, #tpu.memory_space<vmem>>, vector<1x16x18x60xf32>
    %1 = vector.shape_cast %0 : vector<1x16x18x60xf32> to vector<16x18x60xf32>
    %2 = vector.extract_strided_slice %1 {offsets = [0, 0, 0], sizes = [16, 16, 60], strides = [1, 1, 1]} : vector<16x18x60xf32> to vector<16x16x60xf32>
    %3 = vector.shape_cast %2 : vector<16x16x60xf32> to vector<256x60xf32>
    %4 = vector.extract_strided_slice %1 {offsets = [0, 1, 0], sizes = [16, 16, 60], strides = [1, 1, 1]} : vector<16x18x60xf32> to vector<16x16x60xf32>
    %5 = vector.shape_cast %4 : vector<16x16x60xf32> to vector<256x60xf32>
    %6 = vector.extract_strided_slice %1 {offsets = [0, 2, 0], sizes = [16, 16, 60], strides = [1, 1, 1]} : vector<16x18x60xf32> to vector<16x16x60xf32>
    %7 = vector.shape_cast %6 : vector<16x16x60xf32> to vector<256x60xf32>
    %c0_3 = arith.constant 0 : index
    %c1 = arith.constant 1 : index
    %c0_4 = arith.constant 0 : index
    %c0_5 = arith.constant 0 : index
    %8 = vector.load %arg1[%c0_3, %c1, %c0_4, %c0_5] : memref<1x18x18x60xf32, #tpu.memory_space<vmem>>, vector<1x16x18x60xf32>
    %9 = vector.shape_cast %8 : vector<1x16x18x60xf32> to vector<16x18x60xf32>
    %10 = vector.extract_strided_slice %9 {offsets = [0, 0, 0], sizes = [16, 16, 60], strides = [1, 1, 1]} : vector<16x18x60xf32> to vector<16x16x60xf32>
    %11 = vector.shape_cast %10 : vector<16x16x60xf32> to vector<256x60xf32>
    %12 = vector.extract_strided_slice %9 {offsets = [0, 1, 0], sizes = [16, 16, 60], strides = [1, 1, 1]} : vector<16x18x60xf32> to vector<16x16x60xf32>
    %13 = vector.shape_cast %12 : vector<16x16x60xf32> to vector<256x60xf32>
    %14 = vector.extract_strided_slice %9 {offsets = [0, 2, 0], sizes = [16, 16, 60], strides = [1, 1, 1]} : vector<16x18x60xf32> to vector<16x16x60xf32>
    %15 = vector.shape_cast %14 : vector<16x16x60xf32> to vector<256x60xf32>
    %c0_6 = arith.constant 0 : index
    %c2 = arith.constant 2 : index
    %c0_7 = arith.constant 0 : index
    %c0_8 = arith.constant 0 : index
    %16 = vector.load %arg1[%c0_6, %c2, %c0_7, %c0_8] : memref<1x18x18x60xf32, #tpu.memory_space<vmem>>, vector<1x16x18x60xf32>
    %17 = vector.shape_cast %16 : vector<1x16x18x60xf32> to vector<16x18x60xf32>
    %18 = vector.extract_strided_slice %17 {offsets = [0, 0, 0], sizes = [16, 16, 60], strides = [1, 1, 1]} : vector<16x18x60xf32> to vector<16x16x60xf32>
    %19 = vector.shape_cast %18 : vector<16x16x60xf32> to vector<256x60xf32>
    %20 = vector.extract_strided_slice %17 {offsets = [0, 1, 0], sizes = [16, 16, 60], strides = [1, 1, 1]} : vector<16x18x60xf32> to vector<16x16x60xf32>
    %21 = vector.shape_cast %20 : vector<16x16x60xf32> to vector<256x60xf32>
    %22 = vector.extract_strided_slice %17 {offsets = [0, 2, 0], sizes = [16, 16, 60], strides = [1, 1, 1]} : vector<16x18x60xf32> to vector<16x16x60xf32>
    %23 = vector.shape_cast %22 : vector<16x16x60xf32> to vector<256x60xf32>
    %24 = tpu.concatenate %3, %5, %7, %11, %13, %15, %19, %21, %23 in 1 : vector<256x60xf32>, vector<256x60xf32>, vector<256x60xf32>, vector<256x60xf32>, vector<256x60xf32>, vector<256x60xf32>, vector<256x60xf32>, vector<256x60xf32>, vector<256x60xf32> -> vector<256x540xf32>
    %c0_9 = arith.constant 0 : index
    %c0_10 = arith.constant 0 : index
    %25 = vector.load %arg2[%c0_9, %c0_10] : memref<540x20xf32, #tpu.memory_space<vmem>>, vector<540x20xf32>
    %cst = arith.constant dense<0.000000e+00> : vector<256x20xf32>
    %26 = tpu.matmul %24, %25, %cst {dimension_numbers = #tpu.dot_dimension_numbers<[1], [0], [0], [1], [0, 0, 1, 1], [], []>} : vector<256x540xf32>, vector<540x20xf32>, vector<256x20xf32> -> vector<256x20xf32>
    %c0_11 = arith.constant 0 : index
    %c0_12 = arith.constant 0 : index
    %27 = vector.load %arg3[%c0_11, %c0_12] : memref<1x20xf32, #tpu.memory_space<vmem>>, vector<1x20xf32>
    %28 = vector.broadcast %27 : vector<1x20xf32> to vector<256x20xf32>
    %29 = arith.addf %26, %28 : vector<256x20xf32>
    %cst_13 = arith.constant 5.000000e-01 : f32
    %30 = vector.broadcast %cst_13 : f32 to vector<256x20xf32>
    %31 = arith.mulf %30, %29 : vector<256x20xf32>
    %cst_14 = arith.constant 0.707106769 : f32
    %32 = vector.broadcast %cst_14 : f32 to vector<256x20xf32>
    %33 = arith.mulf %29, %32 : vector<256x20xf32>
    %cst_15 = arith.constant 0.000000e+00 : f32
    %34 = vector.broadcast %cst_15 : f32 to vector<256x20xf32>
    %35 = arith.cmpf oge, %33, %34 : vector<256x20xf32>
    %cst_16 = arith.constant 1.000000e+00 : f32
    %cst_17 = arith.constant -1.000000e+00 : f32
    %36 = vector.broadcast %cst_16 : f32 to vector<256x20xf32>
    %37 = vector.broadcast %cst_17 : f32 to vector<256x20xf32>
    %38 = arith.select %35, %36, %37 : vector<256x20xi1>, vector<256x20xf32>
    %39 = math.absf %33 : vector<256x20xf32>
    %cst_18 = arith.constant 0.327591091 : f32
    %40 = vector.broadcast %cst_18 : f32 to vector<256x20xf32>
    %41 = arith.mulf %40, %39 : vector<256x20xf32>
    %cst_19 = arith.constant 1.000000e+00 : f32
    %42 = vector.broadcast %cst_19 : f32 to vector<256x20xf32>
    %43 = arith.addf %42, %41 : vector<256x20xf32>
    %cst_20 = arith.constant 1.000000e+00 : f32
    %44 = vector.broadcast %cst_20 : f32 to vector<256x20xf32>
    %45 = arith.divf %44, %43 : vector<256x20xf32>
    %cst_21 = arith.constant 1.06140542 : f32
    %46 = vector.broadcast %cst_21 : f32 to vector<256x20xf32>
    %47 = arith.mulf %46, %45 : vector<256x20xf32>
    %cst_22 = arith.constant -1.45315206 : f32
    %48 = vector.broadcast %cst_22 : f32 to vector<256x20xf32>
    %49 = arith.addf %47, %48 : vector<256x20xf32>
    %50 = arith.mulf %49, %45 : vector<256x20xf32>
    %cst_23 = arith.constant 1.42141378 : f32
    %51 = vector.broadcast %cst_23 : f32 to vector<256x20xf32>
    %52 = arith.addf %50, %51 : vector<256x20xf32>
    %53 = arith.mulf %52, %45 : vector<256x20xf32>
    %cst_24 = arith.constant -0.284496725 : f32
    %54 = vector.broadcast %cst_24 : f32 to vector<256x20xf32>
    %55 = arith.addf %53, %54 : vector<256x20xf32>
    %56 = arith.mulf %55, %45 : vector<256x20xf32>
    %cst_25 = arith.constant 0.254829586 : f32
    %57 = vector.broadcast %cst_25 : f32 to vector<256x20xf32>
    %58 = arith.addf %56, %57 : vector<256x20xf32>
    %59 = arith.mulf %58, %45 : vector<256x20xf32>
    %cst_26 = arith.constant 0.000000e+00 : f32
    %60 = vector.broadcast %cst_26 : f32 to vector<256x20xf32>
    %61 = arith.subf %60, %39 : vector<256x20xf32>
    %62 = arith.mulf %61, %39 : vector<256x20xf32>
    %63 = math.exp %62 : vector<256x20xf32>
    %64 = arith.mulf %59, %63 : vector<256x20xf32>
    %cst_27 = arith.constant 1.000000e+00 : f32
    %65 = vector.broadcast %cst_27 : f32 to vector<256x20xf32>
    %66 = arith.subf %65, %64 : vector<256x20xf32>
    %67 = arith.mulf %38, %66 : vector<256x20xf32>
    %cst_28 = arith.constant 1.000000e+00 : f32
    %68 = vector.broadcast %cst_28 : f32 to vector<256x20xf32>
    %69 = arith.addf %68, %67 : vector<256x20xf32>
    %70 = arith.mulf %31, %69 : vector<256x20xf32>
    %71 = vector.shape_cast %70 : vector<256x20xf32> to vector<16x16x20xf32>
    %cst_29 = arith.constant 0.000000e+00 : f32
    %72 = vector.broadcast %cst_29 : f32 to vector<16x1x20xf32>
    %73 = tpu.concatenate %72, %71, %72 in 1 : vector<16x1x20xf32>, vector<16x16x20xf32>, vector<16x1x20xf32> -> vector<16x18x20xf32>
    %cst_30 = arith.constant 0.000000e+00 : f32
    %74 = vector.broadcast %cst_30 : f32 to vector<1x18x20xf32>
    %c0_31 = arith.constant 0 : index
    %c0_32 = arith.constant 0 : index
    %c0_33 = arith.constant 0 : index
    %75 = vector.load %arg11[%c0_31, %c0_32, %c0_33] : memref<18x18x20xf32, #tpu.memory_space<vmem>>, vector<1x18x20xf32>
    tpu.vector_store %arg11[%c0_31, %c0_32, %c0_33], %74 {strides = array<i32>} : memref<18x18x20xf32, #tpu.memory_space<vmem>>, vector<1x18x20xf32>,
    %cst_34 = arith.constant 0.000000e+00 : f32
    %76 = vector.broadcast %cst_34 : f32 to vector<1x18x20xf32>
    %c17 = arith.constant 17 : index
    %c0_35 = arith.constant 0 : index
    %c0_36 = arith.constant 0 : index
    %77 = vector.load %arg11[%c17, %c0_35, %c0_36] : memref<18x18x20xf32, #tpu.memory_space<vmem>>, vector<1x18x20xf32>
    tpu.vector_store %arg11[%c17, %c0_35, %c0_36], %76 {strides = array<i32>} : memref<18x18x20xf32, #tpu.memory_space<vmem>>, vector<1x18x20xf32>,
    %c1_37 = arith.constant 1 : index
    %c0_38 = arith.constant 0 : index
    %c0_39 = arith.constant 0 : index
    %78 = vector.load %arg11[%c1_37, %c0_38, %c0_39] : memref<18x18x20xf32, #tpu.memory_space<vmem>>, vector<16x18x20xf32>
    tpu.vector_store %arg11[%c1_37, %c0_38, %c0_39], %73 {strides = array<i32>} : memref<18x18x20xf32, #tpu.memory_space<vmem>>, vector<16x18x20xf32>,
    %c0_40 = arith.constant 0 : index
    %c0_41 = arith.constant 0 : index
    %c0_42 = arith.constant 0 : index
    %79 = vector.load %arg11[%c0_40, %c0_41, %c0_42] : memref<18x18x20xf32, #tpu.memory_space<vmem>>, vector<16x18x20xf32>
    %80 = vector.extract_strided_slice %79 {offsets = [0, 0, 0], sizes = [16, 16, 20], strides = [1, 1, 1]} : vector<16x18x20xf32> to vector<16x16x20xf32>
    %81 = vector.shape_cast %80 : vector<16x16x20xf32> to vector<256x20xf32>
    %82 = vector.extract_strided_slice %79 {offsets = [0, 1, 0], sizes = [16, 16, 20], strides = [1, 1, 1]} : vector<16x18x20xf32> to vector<16x16x20xf32>
    %83 = vector.shape_cast %82 : vector<16x16x20xf32> to vector<256x20xf32>
    %84 = vector.extract_strided_slice %79 {offsets = [0, 2, 0], sizes = [16, 16, 20], strides = [1, 1, 1]} : vector<16x18x20xf32> to vector<16x16x20xf32>
    %85 = vector.shape_cast %84 : vector<16x16x20xf32> to vector<256x20xf32>
    %c1_43 = arith.constant 1 : index
    %c0_44 = arith.constant 0 : index
    %c0_45 = arith.constant 0 : index
    %86 = vector.load %arg11[%c1_43, %c0_44, %c0_45] : memref<18x18x20xf32, #tpu.memory_space<vmem>>, vector<16x18x20xf32>
    %87 = vector.extract_strided_slice %86 {offsets = [0, 0, 0], sizes = [16, 16, 20], strides = [1, 1, 1]} : vector<16x18x20xf32> to vector<16x16x20xf32>
    %88 = vector.shape_cast %87 : vector<16x16x20xf32> to vector<256x20xf32>
    %89 = vector.extract_strided_slice %86 {offsets = [0, 1, 0], sizes = [16, 16, 20], strides = [1, 1, 1]} : vector<16x18x20xf32> to vector<16x16x20xf32>
    %90 = vector.shape_cast %89 : vector<16x16x20xf32> to vector<256x20xf32>
    %91 = vector.extract_strided_slice %86 {offsets = [0, 2, 0], sizes = [16, 16, 20], strides = [1, 1, 1]} : vector<16x18x20xf32> to vector<16x16x20xf32>
    %92 = vector.shape_cast %91 : vector<16x16x20xf32> to vector<256x20xf32>
    %c2_46 = arith.constant 2 : index
    %c0_47 = arith.constant 0 : index
    %c0_48 = arith.constant 0 : index
    %93 = vector.load %arg11[%c2_46, %c0_47, %c0_48] : memref<18x18x20xf32, #tpu.memory_space<vmem>>, vector<16x18x20xf32>
    %94 = vector.extract_strided_slice %93 {offsets = [0, 0, 0], sizes = [16, 16, 20], strides = [1, 1, 1]} : vector<16x18x20xf32> to vector<16x16x20xf32>
    %95 = vector.shape_cast %94 : vector<16x16x20xf32> to vector<256x20xf32>
    %96 = vector.extract_strided_slice %93 {offsets = [0, 1, 0], sizes = [16, 16, 20], strides = [1, 1, 1]} : vector<16x18x20xf32> to vector<16x16x20xf32>
    %97 = vector.shape_cast %96 : vector<16x16x20xf32> to vector<256x20xf32>
    %98 = vector.extract_strided_slice %93 {offsets = [0, 2, 0], sizes = [16, 16, 20], strides = [1, 1, 1]} : vector<16x18x20xf32> to vector<16x16x20xf32>
    %99 = vector.shape_cast %98 : vector<16x16x20xf32> to vector<256x20xf32>
    %100 = tpu.concatenate %81, %83, %85, %88, %90, %92, %95, %97, %99 in 1 : vector<256x20xf32>, vector<256x20xf32>, vector<256x20xf32>, vector<256x20xf32>, vector<256x20xf32>, vector<256x20xf32>, vector<256x20xf32>, vector<256x20xf32>, vector<256x20xf32> -> vector<256x180xf32>
    %c0_49 = arith.constant 0 : index
    %c0_50 = arith.constant 0 : index
    %101 = vector.load %arg4[%c0_49, %c0_50] : memref<180x60xf32, #tpu.memory_space<vmem>>, vector<180x60xf32>
    %cst_51 = arith.constant dense<0.000000e+00> : vector<256x60xf32>
    %102 = tpu.matmul %100, %101, %cst_51 {dimension_numbers = #tpu.dot_dimension_numbers<[1], [0], [0], [1], [0, 0, 1, 1], [], []>} : vector<256x180xf32>, vector<180x60xf32>, vector<256x60xf32> -> vector<256x60xf32>
    %c0_52 = arith.constant 0 : index
    %c0_53 = arith.constant 0 : index
    %103 = vector.load %arg5[%c0_52, %c0_53] : memref<1x60xf32, #tpu.memory_space<vmem>>, vector<1x60xf32>
    %104 = vector.broadcast %103 : vector<1x60xf32> to vector<256x60xf32>
    %105 = arith.addf %102, %104 : vector<256x60xf32>
    %cst_54 = arith.constant dense<0.000000e+00> : vector<60xf32>
    %106 = vector.multi_reduction <add>, %105, %cst_54 [0] : vector<256x60xf32> to vector<60xf32>
    %107 = vector.shape_cast %106 : vector<60xf32> to vector<1x60xf32>
    %cst_55 = arith.constant 2.560000e+02 : f32
    %108 = vector.broadcast %cst_55 : f32 to vector<1x60xf32>
    %109 = arith.divf %107, %108 : vector<1x60xf32>
    %c0_56 = arith.constant 0 : index
    %c0_57 = arith.constant 0 : index
    %110 = vector.load %arg6[%c0_56, %c0_57] : memref<2x60xf32, #tpu.memory_space<vmem>>, vector<2x60xf32>
    %111 = vector.broadcast %109 : vector<1x60xf32> to vector<2x60xf32>
    %112 = arith.mulf %111, %110 : vector<2x60xf32>
    %cst_58 = arith.constant dense<0.000000e+00> : vector<2xf32>
    %113 = vector.multi_reduction <add>, %112, %cst_58 [1] : vector<2x60xf32> to vector<2xf32>
    %114 = vector.shape_cast %113 : vector<2xf32> to vector<2x1xf32>
    %c0_59 = arith.constant 0 : index
    %c0_60 = arith.constant 0 : index
    %115 = vector.load %arg7[%c0_59, %c0_60] : memref<2x1xf32, #tpu.memory_space<vmem>>, vector<2x1xf32>
    %116 = arith.addf %114, %115 : vector<2x1xf32>
    %cst_61 = arith.constant 0.000000e+00 : f32
    %117 = vector.broadcast %cst_61 : f32 to vector<2x1xf32>
    %118 = arith.maximumf %116, %117 : vector<2x1xf32>
    %c0_62 = arith.constant 0 : index
    %c0_63 = arith.constant 0 : index
    %119 = vector.load %arg8[%c0_62, %c0_63] : memref<2x60xf32, #tpu.memory_space<vmem>>, vector<2x60xf32>
    %120 = vector.broadcast %118 : vector<2x1xf32> to vector<2x60xf32>
    %121 = arith.mulf %120, %119 : vector<2x60xf32>
    %cst_64 = arith.constant dense<0.000000e+00> : vector<60xf32>
    %122 = vector.multi_reduction <add>, %121, %cst_64 [0] : vector<2x60xf32> to vector<60xf32>
    %123 = vector.shape_cast %122 : vector<60xf32> to vector<1x60xf32>
    %c0_65 = arith.constant 0 : index
    %c0_66 = arith.constant 0 : index
    %124 = vector.load %arg9[%c0_65, %c0_66] : memref<1x60xf32, #tpu.memory_space<vmem>>, vector<1x60xf32>
    %125 = arith.addf %123, %124 : vector<1x60xf32>
    %cst_67 = arith.constant 0.000000e+00 : f32
    %126 = vector.broadcast %cst_67 : f32 to vector<1x60xf32>
    %127 = arith.subf %126, %125 : vector<1x60xf32>
    %128 = math.exp %127 : vector<1x60xf32>
    %cst_68 = arith.constant 1.000000e+00 : f32
    %129 = vector.broadcast %cst_68 : f32 to vector<1x60xf32>
    %130 = arith.addf %129, %128 : vector<1x60xf32>
    %cst_69 = arith.constant 1.000000e+00 : f32
    %131 = vector.broadcast %cst_69 : f32 to vector<1x60xf32>
    %132 = arith.divf %131, %130 : vector<1x60xf32>
    %133 = vector.broadcast %132 : vector<1x60xf32> to vector<256x60xf32>
    %134 = arith.mulf %105, %133 : vector<256x60xf32>
    %c0_70 = arith.constant 0 : index
    %c0_71 = arith.constant 0 : index
    %c0_72 = arith.constant 0 : index
    %135 = vector.load %arg10[%c0_70, %c0_71, %c0_72] : memref<1x256x60xf32, #tpu.memory_space<vmem>>, vector<1x256x60xf32>
    %136 = vector.shape_cast %135 : vector<1x256x60xf32> to vector<256x60xf32>
    %137 = vector.shape_cast %134 : vector<256x60xf32> to vector<1x256x60xf32>
    tpu.vector_store %arg10[%c0_70, %c0_71, %c0_72], %137 {strides = array<i32>} : memref<1x256x60xf32, #tpu.memory_space<vmem>>, vector<1x256x60xf32>,
    return
  }
  func.func @transform_0(%arg0: i32) -> (i32, i32, i32, i32) {
    %c0_i32 = arith.constant 0 : i32
    %c0_i32_0 = arith.constant 0 : i32
    %c0_i32_1 = arith.constant 0 : i32
    %c0_i32_2 = arith.constant 0 : i32
    return %arg0, %c0_i32, %c0_i32_0, %c0_i32_1 : i32, i32, i32, i32
  }
  func.func @transform_1(%arg0: i32) -> (i32, i32) {
    %c0_i32 = arith.constant 0 : i32
    %c0_i32_0 = arith.constant 0 : i32
    %c0_i32_1 = arith.constant 0 : i32
    return %c0_i32, %c0_i32_0 : i32, i32
  }
  func.func @transform_2(%arg0: i32) -> (i32, i32) {
    %c0_i32 = arith.constant 0 : i32
    %c0_i32_0 = arith.constant 0 : i32
    %c0_i32_1 = arith.constant 0 : i32
    return %c0_i32, %c0_i32_0 : i32, i32
  }
  func.func @transform_3(%arg0: i32) -> (i32, i32) {
    %c0_i32 = arith.constant 0 : i32
    %c0_i32_0 = arith.constant 0 : i32
    %c0_i32_1 = arith.constant 0 : i32
    return %c0_i32, %c0_i32_0 : i32, i32
  }
  func.func @transform_4(%arg0: i32) -> (i32, i32) {
    %c0_i32 = arith.constant 0 : i32
    %c0_i32_0 = arith.constant 0 : i32
    %c0_i32_1 = arith.constant 0 : i32
    return %c0_i32, %c0_i32_0 : i32, i32
  }
  func.func @transform_5(%arg0: i32) -> (i32, i32) {
    %c0_i32 = arith.constant 0 : i32
    %c0_i32_0 = arith.constant 0 : i32
    %c0_i32_1 = arith.constant 0 : i32
    return %c0_i32, %c0_i32_0 : i32, i32
  }
  func.func @transform_6(%arg0: i32) -> (i32, i32) {
    %c0_i32 = arith.constant 0 : i32
    %c0_i32_0 = arith.constant 0 : i32
    %c0_i32_1 = arith.constant 0 : i32
    return %c0_i32, %c0_i32_0 : i32, i32
  }
  func.func @transform_7(%arg0: i32) -> (i32, i32) {
    %c0_i32 = arith.constant 0 : i32
    %c0_i32_0 = arith.constant 0 : i32
    %c0_i32_1 = arith.constant 0 : i32
    return %c0_i32, %c0_i32_0 : i32, i32
  }
  func.func @transform_8(%arg0: i32) -> (i32, i32) {
    %c0_i32 = arith.constant 0 : i32
    %c0_i32_0 = arith.constant 0 : i32
    %c0_i32_1 = arith.constant 0 : i32
    return %c0_i32, %c0_i32_0 : i32, i32
  }
  func.func @transform_9(%arg0: i32) -> (i32, i32, i32) {
    %c0_i32 = arith.constant 0 : i32
    %c0_i32_0 = arith.constant 0 : i32
    %c0_i32_1 = arith.constant 0 : i32
    return %arg0, %c0_i32, %c0_i32_0 : i32, i32, i32
  }
}

</mosaic_0001>

<llo_original>
// kernel: cab_forward.1
$region0: #{cab_forward.1}
  #allocation0 [shape = 'u32[]', space=smem, size = 0x4, offset = 0x4, fixed_abs, tag = 'smem constant byte address 0x4 - core index']
  #allocation1 [shape = 'u32[144,128]{1,0:T(1,128)}', space=vmem, size = 0x12000, scoped, tag = 'internal scratch']
  #allocation2 [shape = 'f32[18,18,20]{2,1,0:T(8,128)}', space=vmem, size = 0x36000, scoped, tag = 'scratch operand']
  %s0 = inlined_call_operand.vmem [shape: f32[2,18,18,60], index: 0, kind: input, shape index: {}]
  %s1 = inlined_call_operand.vmem [shape: f32[540,20], index: 1, kind: input, shape index: {}]
  %s2 = inlined_call_operand.vmem [shape: f32[1,20], index: 2, kind: input, shape index: {}]
  %s3 = inlined_call_operand.vmem [shape: f32[180,60], index: 3, kind: input, shape index: {}]
  %s4 = inlined_call_operand.vmem [shape: f32[1,60], index: 4, kind: input, shape index: {}]
  %s5 = inlined_call_operand.vmem [shape: f32[2,60], index: 5, kind: input, shape index: {}]
  %s6 = inlined_call_operand.vmem [shape: f32[2,1], index: 6, kind: input, shape index: {}]
  %s7 = inlined_call_operand.vmem [shape: f32[2,60], index: 7, kind: input, shape index: {}]
  %s8 = inlined_call_operand.vmem [shape: f32[1,60], index: 8, kind: input, shape index: {}]
  %s9 = inlined_call_operand.hbm [shape: f32[2,256,60], index: 9, kind: output, shape index: {}]
  %s10 = sld [smem:[#allocation0]]
  $region69: #{cab_forward.1} parent=0
    _
  %s12 = ssub.s32 1, %s10
  %s13 = scalar_select 0, %s12, %s10
  $region1: #{cab_forward.1} parent=0
    #allocation3 [shape = 'u8[262144]{0}', space=vmem, size = 0x40000, scoped, tag = 'output window, operand 0']
    #allocation4 [shape = 's32[2]{0}', space=sflag, size = 0x8, scoped, tag = 'scoped memory for cab_forward.1']
    %14 = vsyncpa [#allocation4], 0
    %s15 = scalar_lea.sflag [#allocation4], 1
    %16 = vsyncpa %s15, 0
    loop: start=0, step=1, limit=4
    $region2: #{cab_forward.1} parent=1 // loop_pre_header
      _
    $region3: #{cab_forward.1} parent=1 // loop_header
      %s18 = sphi 0, %s22
      %p19 = scmp.ge.s32.totalorder %s18, 4
      %s28 = sphi 0, %s30
      %s31 = sphi 0, %s28
      %s32 = sphi 0, %s31
      %s48 = sphi 0, %s32
      %s52 = sphi 0, %s52
      %s54 = sphi 0, %s52
      %s55 = sphi 0, %s54
      %s69 = sphi 0, %s55
      %s73 = sphi 0, %s73
      %s75 = sphi 0, %s73
      %s76 = sphi 0, %s75
      %s90 = sphi 0, %s76
      %s94 = sphi 0, %s94
      %s96 = sphi 0, %s94
      %s97 = sphi 0, %s96
      %s111 = sphi 0, %s97
      %s115 = sphi 0, %s115
      %s117 = sphi 0, %s115
      %s118 = sphi 0, %s117
      %s132 = sphi 0, %s118
      %s136 = sphi 0, %s136
      %s138 = sphi 0, %s136
      %s139 = sphi 0, %s138
      %s153 = sphi 0, %s139
      %s157 = sphi 0, %s157
      %s159 = sphi 0, %s157
      %s160 = sphi 0, %s159
      %s174 = sphi 0, %s160
      %s178 = sphi 0, %s178
      %s180 = sphi 0, %s178
      %s181 = sphi 0, %s180
      %s195 = sphi 0, %s181
      %s199 = sphi 0, %s199
      %s201 = sphi 0, %s199
      %s202 = sphi 0, %s201
      %s216 = sphi 0, %s202
      %s222 = sphi 0, %s224
      %s225 = sphi 0, %s222
      %s226 = sphi 0, %s225
      %s242 = sphi 0, %s226
    $region4: #{cab_forward.1} parent=1 // loop_header_branch
      %21 = sbr.rel (%p19) target = $region8
    $region5: #{cab_forward.1} parent=1 // loop_body
      %s23 = ssub.s32 %s18, 1
      %s24 = ssub.s32 %s18, 2
      %s25 = sadd.s32 %s18, 1
      %s26 = ssub.s32 %s18, %s25
      %p27 = scmp.eq.s32.totalorder %s26, 0
      %s29 = sadd.s32 %s28, 1
      %s30 = scalar_select %p27, %s28, %s29
      %p33 = pneg %p27
      %p34 = scmp.eq.s32.totalorder %s18, 1
      %p35 = por %p33, %p34
      %p36 = scmp.ne.s32.totalorder %s28, %s31
      %p37 = scmp.eq.s32.totalorder %s18, 0
      %p38 = por %p36, %p37
      %p39 = scmp.ne.s32.totalorder %s28, %s31
      %p40 = scmp.eq.s32.totalorder %s23, 1
      %p41 = por %p39, %p40
      %p42 = scmp.ne.s32.totalorder %s31, %s32
      %p43 = scmp.eq.s32.totalorder %s23, 0
      %p44 = por %p42, %p43
      %p45 = scmp.ne.s32.totalorder %s31, %s32
      %p46 = scmp.eq.s32.totalorder %s24, 1
      %p47 = por %p45, %p46
      %p49 = scmp.ne.s32.totalorder %s32, %s48
      %p50 = scmp.eq.s32.totalorder %s24, 0
      %p51 = por %p49, %p50
      %s53 = sadd.s32 %s52, 1
      %p56 = scmp.eq.s32.totalorder %s18, 1
      %p57 = scmp.ne.s32.totalorder %s52, %s54
      %p58 = scmp.eq.s32.totalorder %s18, 0
      %p59 = por %p57, %p58
      %p60 = scmp.ne.s32.totalorder %s52, %s54
      %p61 = scmp.eq.s32.totalorder %s23, 1
      %p62 = por %p60, %p61
      %p63 = scmp.ne.s32.totalorder %s54, %s55
      %p64 = scmp.eq.s32.totalorder %s23, 0
      %p65 = por %p63, %p64
      %p66 = scmp.ne.s32.totalorder %s54, %s55
      %p67 = scmp.eq.s32.totalorder %s24, 1
      %p68 = por %p66, %p67
      %p70 = scmp.ne.s32.totalorder %s55, %s69
      %p71 = scmp.eq.s32.totalorder %s24, 0
      %p72 = por %p70, %p71
      %s74 = sadd.s32 %s73, 1
      %p77 = scmp.eq.s32.totalorder %s18, 1
      %p78 = scmp.ne.s32.totalorder %s73, %s75
      %p79 = scmp.eq.s32.totalorder %s18, 0
      %p80 = por %p78, %p79
      %p81 = scmp.ne.s32.totalorder %s73, %s75
      %p82 = scmp.eq.s32.totalorder %s23, 1
      %p83 = por %p81, %p82
      %p84 = scmp.ne.s32.totalorder %s75, %s76
      %p85 = scmp.eq.s32.totalorder %s23, 0
      %p86 = por %p84, %p85
      %p87 = scmp.ne.s32.totalorder %s75, %s76
      %p88 = scmp.eq.s32.totalorder %s24, 1
      %p89 = por %p87, %p88
      %p91 = scmp.ne.s32.totalorder %s76, %s90
      %p92 = scmp.eq.s32.totalorder %s24, 0
      %p93 = por %p91, %p92
      %s95 = sadd.s32 %s94, 1
      %p98 = scmp.eq.s32.totalorder %s18, 1
      %p99 = scmp.ne.s32.totalorder %s94, %s96
      %p100 = scmp.eq.s32.totalorder %s18, 0
      %p101 = por %p99, %p100
      %p102 = scmp.ne.s32.totalorder %s94, %s96
      %p103 = scmp.eq.s32.totalorder %s23, 1
      %p104 = por %p102, %p103
      %p105 = scmp.ne.s32.totalorder %s96, %s97
      %p106 = scmp.eq.s32.totalorder %s23, 0
      %p107 = por %p105, %p106
      %p108 = scmp.ne.s32.totalorder %s96, %s97
      %p109 = scmp.eq.s32.totalorder %s24, 1
      %p110 = por %p108, %p109
      %p112 = scmp.ne.s32.totalorder %s97, %s111
      %p113 = scmp.eq.s32.totalorder %s24, 0
      %p114 = por %p112, %p113
      %s116 = sadd.s32 %s115, 1
      %p119 = scmp.eq.s32.totalorder %s18, 1
      %p120 = scmp.ne.s32.totalorder %s115, %s117
      %p121 = scmp.eq.s32.totalorder %s18, 0
      %p122 = por %p120, %p121
      %p123 = scmp.ne.s32.totalorder %s115, %s117
      %p124 = scmp.eq.s32.totalorder %s23, 1
      %p125 = por %p123, %p124
      %p126 = scmp.ne.s32.totalorder %s117, %s118
      %p127 = scmp.eq.s32.totalorder %s23, 0
      %p128 = por %p126, %p127
      %p129 = scmp.ne.s32.totalorder %s117, %s118
      %p130 = scmp.eq.s32.totalorder %s24, 1
      %p131 = por %p129, %p130
      %p133 = scmp.ne.s32.totalorder %s118, %s132
      %p134 = scmp.eq.s32.totalorder %s24, 0
      %p135 = por %p133, %p134
      %s137 = sadd.s32 %s136, 1
      %p140 = scmp.eq.s32.totalorder %s18, 1
      %p141 = scmp.ne.s32.totalorder %s136, %s138
      %p142 = scmp.eq.s32.totalorder %s18, 0
      %p143 = por %p141, %p142
      %p144 = scmp.ne.s32.totalorder %s136, %s138
      %p145 = scmp.eq.s32.totalorder %s23, 1
      %p146 = por %p144, %p145
      %p147 = scmp.ne.s32.totalorder %s138, %s139
      %p148 = scmp.eq.s32.totalorder %s23, 0
      %p149 = por %p147, %p148
      %p150 = scmp.ne.s32.totalorder %s138, %s139
      %p151 = scmp.eq.s32.totalorder %s24, 1
      %p152 = por %p150, %p151
      %p154 = scmp.ne.s32.totalorder %s139, %s153
      %p155 = scmp.eq.s32.totalorder %s24, 0
      %p156 = por %p154, %p155
      %s158 = sadd.s32 %s157, 1
      %p161 = scmp.eq.s32.totalorder %s18, 1
      %p162 = scmp.ne.s32.totalorder %s157, %s159
      %p163 = scmp.eq.s32.totalorder %s18, 0
      %p164 = por %p162, %p163
      %p165 = scmp.ne.s32.totalorder %s157, %s159
      %p166 = scmp.eq.s32.totalorder %s23, 1
      %p167 = por %p165, %p166
      %p168 = scmp.ne.s32.totalorder %s159, %s160
      %p169 = scmp.eq.s32.totalorder %s23, 0
      %p170 = por %p168, %p169
      %p171 = scmp.ne.s32.totalorder %s159, %s160
      %p172 = scmp.eq.s32.totalorder %s24, 1
      %p173 = por %p171, %p172
      %p175 = scmp.ne.s32.totalorder %s160, %s174
      %p176 = scmp.eq.s32.totalorder %s24, 0
      %p177 = por %p175, %p176
      %s179 = sadd.s32 %s178, 1
      %p182 = scmp.eq.s32.totalorder %s18, 1
      %p183 = scmp.ne.s32.totalorder %s178, %s180
      %p184 = scmp.eq.s32.totalorder %s18, 0
      %p185 = por %p183, %p184
      %p186 = scmp.ne.s32.totalorder %s178, %s180
      %p187 = scmp.eq.s32.totalorder %s23, 1
      %p188 = por %p186, %p187
      %p189 = scmp.ne.s32.totalorder %s180, %s181
      %p190 = scmp.eq.s32.totalorder %s23, 0
      %p191 = por %p189, %p190
      %p192 = scmp.ne.s32.totalorder %s180, %s181
      %p193 = scmp.eq.s32.totalorder %s24, 1
      %p194 = por %p192, %p193
      %p196 = scmp.ne.s32.totalorder %s181, %s195
      %p197 = scmp.eq.s32.totalorder %s24, 0
      %p198 = por %p196, %p197
      %s200 = sadd.s32 %s199, 1
      %p203 = scmp.eq.s32.totalorder %s18, 1
      %p204 = scmp.ne.s32.totalorder %s199, %s201
      %p205 = scmp.eq.s32.totalorder %s18, 0
      %p206 = por %p204, %p205
      %p207 = scmp.ne.s32.totalorder %s199, %s201
      %p208 = scmp.eq.s32.totalorder %s23, 1
      %p209 = por %p207, %p208
      %p210 = scmp.ne.s32.totalorder %s201, %s202
      %p211 = scmp.eq.s32.totalorder %s23, 0
      %p212 = por %p210, %p211
      %p213 = scmp.ne.s32.totalorder %s201, %s202
      %p214 = scmp.eq.s32.totalorder %s24, 1
      %p215 = por %p213, %p214
      %p217 = scmp.ne.s32.totalorder %s202, %s216
      %p218 = scmp.eq.s32.totalorder %s24, 0
      %p219 = por %p217, %p218
      %s220 = ssub.s32 %s18, %s25
      %p221 = scmp.eq.s32.totalorder %s220, 0
      %s223 = sadd.s32 %s222, 1
      %s224 = scalar_select %p221, %s222, %s223
      %p227 = pneg %p221
      %p228 = scmp.eq.s32.totalorder %s18, 1
      %p229 = por %p227, %p228
      %p230 = scmp.ne.s32.totalorder %s222, %s225
      %p231 = scmp.eq.s32.totalorder %s18, 0
      %p232 = por %p230, %p231
      %p233 = scmp.ne.s32.totalorder %s222, %s225
      %p234 = scmp.eq.s32.totalorder %s23, 1
      %p235 = por %p233, %p234
      %p236 = scmp.ne.s32.totalorder %s225, %s226
      %p237 = scmp.eq.s32.totalorder %s23, 0
      %p238 = por %p236, %p237
      %p239 = scmp.ne.s32.totalorder %s225, %s226
      %p240 = scmp.eq.s32.totalorder %s24, 1
      %p241 = por %p239, %p240
      %p243 = scmp.ne.s32.totalorder %s226, %s242
      %p244 = scmp.eq.s32.totalorder %s24, 0
      %p245 = por %p243, %p244
      %p246 = scmp.le.s32.totalorder 1, %s18
      %p247 = scmp.lt.s32.totalorder %s18, 3
      %p248 = pnand %p246, %p247
      %p249 = pneg %p248
      // Predicated region
      $region9: #{cab_forward.1} parent=5 // pred_check
        _
      $region10: #{cab_forward.1} parent=5 // pred_check_branch
        %251 = sbr.rel (%p248) target = $region12
      $region11: #{cab_forward.1} parent=5 // pred_region
        %s252 = ssub.s32 %s18, 1
        // Predicated region
        $region13: #{cab_forward.1} parent=11 // pred_check
          %p253 = pneg %p65
        $region14: #{cab_forward.1} parent=11 // pred_check_branch
          %255 = sbr.rel (%p253) target = $region16
        $region15: #{cab_forward.1} parent=11 // pred_region
          _
        $region16: #{cab_forward.1} parent=11 // pred_fallthru
          _
        // Predicated region
        $region17: #{cab_forward.1} parent=11 // pred_check
          %p256 = pneg %p86
        $region18: #{cab_forward.1} parent=11 // pred_check_branch
          %258 = sbr.rel (%p256) target = $region20
        $region19: #{cab_forward.1} parent=11 // pred_region
          _
        $region20: #{cab_forward.1} parent=11 // pred_fallthru
          _
        // Predicated region
        $region21: #{cab_forward.1} parent=11 // pred_check
          %p259 = pneg %p107
        $region22: #{cab_forward.1} parent=11 // pred_check_branch
          %261 = sbr.rel (%p259) target = $region24
        $region23: #{cab_forward.1} parent=11 // pred_region
          _
        $region24: #{cab_forward.1} parent=11 // pred_fallthru
          _
        // Predicated region
        $region25: #{cab_forward.1} parent=11 // pred_check
          %p262 = pneg %p128
        $region26: #{cab_forward.1} parent=11 // pred_check_branch
          %264 = sbr.rel (%p262) target = $region28
        $region27: #{cab_forward.1} parent=11 // pred_region
          _
        $region28: #{cab_forward.1} parent=11 // pred_fallthru
          _
        // Predicated region
        $region29: #{cab_forward.1} parent=11 // pred_check
          %p265 = pneg %p149
        $region30: #{cab_forward.1} parent=11 // pred_check_branch
          %267 = sbr.rel (%p265) target = $region32
        $region31: #{cab_forward.1} parent=11 // pred_region
          _
        $region32: #{cab_forward.1} parent=11 // pred_fallthru
          _
        // Predicated region
        $region33: #{cab_forward.1} parent=11 // pred_check
          %p268 = pneg %p170
        $region34: #{cab_forward.1} parent=11 // pred_check_branch
          %270 = sbr.rel (%p268) target = $region36
        $region35: #{cab_forward.1} parent=11 // pred_region
          _
        $region36: #{cab_forward.1} parent=11 // pred_fallthru
          _
        // Predicated region
        $region37: #{cab_forward.1} parent=11 // pred_check
          %p271 = pneg %p191
        $region38: #{cab_forward.1} parent=11 // pred_check_branch
          %273 = sbr.rel (%p271) target = $region40
        $region39: #{cab_forward.1} parent=11 // pred_region
          _
        $region40: #{cab_forward.1} parent=11 // pred_fallthru
          _
        // Predicated region
        $region41: #{cab_forward.1} parent=11 // pred_check
          %p274 = pneg %p212
        $region42: #{cab_forward.1} parent=11 // pred_check_branch
          %276 = sbr.rel (%p274) target = $region44
        $region43: #{cab_forward.1} parent=11 // pred_region
          _
        $region44: #{cab_forward.1} parent=11 // pred_fallthru
          _
      $region12: #{cab_forward.1} parent=5 // pred_fallthru
        _
      %p277 = scmp.lt.s32.totalorder %s18, 2
      // Predicated region
      $region45: #{cab_forward.1} parent=5 // pred_check
        %p278 = pneg %p277
      $region46: #{cab_forward.1} parent=5 // pred_check_branch
        %280 = sbr.rel (%p278) target = $region48
      $region47: #{cab_forward.1} parent=5 // pred_region
        // Predicated region
        $region49: #{cab_forward.1} parent=47 // pred_check
          %p281 = pneg %p38
        $region50: #{cab_forward.1} parent=47 // pred_check_branch
          %283 = sbr.rel (%p281) target = $region52
        $region51: #{cab_forward.1} parent=47 // pred_region
          %p284 = scmp.lt.s32.totalorder %s18, 1
          %s285 = scalar_select %p284, %s18, 1
          %s286 = smul.addr %s285, 54
          %s287 = smul.addr %s286, 8
          %s288 = scalar_lea.vmem %s0, %s287
        $region52: #{cab_forward.1} parent=47 // pred_fallthru
          _
      $region48: #{cab_forward.1} parent=5 // pred_fallthru
        _
      %p289 = scmp.le.s32.totalorder 1, %s18
      %p290 = scmp.lt.s32.totalorder %s18, 3
      %p291 = pnand %p289, %p290
      %p292 = pneg %p291
      // Predicated region
      $region53: #{cab_forward.1} parent=5 // pred_check
        _
      $region54: #{cab_forward.1} parent=5 // pred_check_branch
        %294 = sbr.rel (%p291) target = $region56
      $region55: #{cab_forward.1} parent=5 // pred_region
        %s295 = ssub.s32 %s18, 1
        %p296 = scmp.lt.s32.totalorder %s23, 1
        %s297 = scalar_select %p296, %s23, 1
        %s298 = smul.addr %s297, 54
        %s299 = smul.addr %s298, 8
        %s300 = scalar_lea.vmem %s0, %s299
        %p301 = pneg %p44
        %p302 = pneg %p41
        %p303 = pneg %p65
        %p304 = pneg %p62
        %p305 = pneg %p86
        %p306 = pneg %p83
        %p307 = pneg %p107
        %p308 = pneg %p104
        %p309 = pneg %p128
        %p310 = pneg %p125
        %p311 = pneg %p149
        %p312 = pneg %p146
        %p313 = pneg %p170
        %p314 = pneg %p167
        %p315 = pneg %p191
        %p316 = pneg %p188
        %p317 = pneg %p212
        %p318 = pneg %p209
        %p319 = pneg %p238
        %p320 = pneg %p235
        %s321 = sand.u32 %s225, 1
        %s322 = scalar_lea.sflag [#allocation4], %s321
        %s323 = sand.u32 %s225, 1
        %s324 = smul.addr %s323, 256
        %s325 = scalar_lea.vmem [#allocation3], %s324
        %p326 = scmp.lt.s32.totalorder %s23, 1
        %s327 = scalar_select %p326, %s23, 1
        %s328 = smul.addr %s327, 54
        %s329 = smul.addr %s328, 8
        %s330 = scalar_lea.vmem %s0, %s329
        %v331 = vld [vmem:[%s330] sm:$0xff]
        %v332 = vld [vmem:[%s330 + $0x8] sm:$0xff]
        %v333 = vld [vmem:[%s330 + $0x10] sm:$0x3]
        %v334 = vld [vmem:[%s330 + $0x18] sm:$0xff]
        %v335 = vld [vmem:[%s330 + $0x20] sm:$0xff]
        %v336 = vld [vmem:[%s330 + $0x28] sm:$0x3]
        %v337 = vld [vmem:[%s330 + $0x30] sm:$0xff]
        %v338 = vld [vmem:[%s330 + $0x38] sm:$0xff]
        %v339 = vld [vmem:[%s330 + $0x40] sm:$0x3]
        %v340 = vld [vmem:[%s330 + $0x48] sm:$0xff]
        %v341 = vld [vmem:[%s330 + $0x50] sm:$0xff]
        %v342 = vld [vmem:[%s330 + $0x58] sm:$0x3]
        %v343 = vld [vmem:[%s330 + $0x60] sm:$0xff]
        %v344 = vld [vmem:[%s330 + $0x68] sm:$0xff]
        %v345 = vld [vmem:[%s330 + $0x70] sm:$0x3]
        %v346 = vld [vmem:[%s330 + $0x78] sm:$0xff]
        %v347 = vld [vmem:[%s330 + $0x80] sm:$0xff]
        %v348 = vld [vmem:[%s330 + $0x88] sm:$0x3]
        %v349 = vld [vmem:[%s330 + $0x90] sm:$0xff]
        %v350 = vld [vmem:[%s330 + $0x98] sm:$0xff]
        %v351 = vld [vmem:[%s330 + $0xa0] sm:$0x3]
        %v352 = vld [vmem:[%s330 + $0xa8] sm:$0xff]
        %v353 = vld [vmem:[%s330 + $0xb0] sm:$0xff]
        %v354 = vld [vmem:[%s330 + $0xb8] sm:$0x3]
        %v355 = vld [vmem:[%s330 + $0xc0] sm:$0xff]
        %v356 = vld [vmem:[%s330 + $0xc8] sm:$0xff]
        %v357 = vld [vmem:[%s330 + $0xd0] sm:$0x3]
        %v358 = vld [vmem:[%s330 + $0xd8] sm:$0xff]
        %v359 = vld [vmem:[%s330 + $0xe0] sm:$0xff]
        %v360 = vld [vmem:[%s330 + $0xe8] sm:$0x3]
        %v361 = vld [vmem:[%s330 + $0xf0] sm:$0xff]
        %v362 = vld [vmem:[%s330 + $0xf8] sm:$0xff]
        %v363 = vld [vmem:[%s330 + $0x100] sm:$0x3]
        %v364 = vld [vmem:[%s330 + $0x108] sm:$0xff]
        %v365 = vld [vmem:[%s330 + $0x110] sm:$0xff]
        %v366 = vld [vmem:[%s330 + $0x118] sm:$0x3]
        %v367 = vld [vmem:[%s330 + $0x120] sm:$0xff]
        %v368 = vld [vmem:[%s330 + $0x128] sm:$0xff]
        %v369 = vld [vmem:[%s330 + $0x130] sm:$0x3]
        %v370 = vld [vmem:[%s330 + $0x138] sm:$0xff]
        %v371 = vld [vmem:[%s330 + $0x140] sm:$0xff]
        %v372 = vld [vmem:[%s330 + $0x148] sm:$0x3]
        %v373 = vld [vmem:[%s330 + $0x150] sm:$0xff]
        %v374 = vld [vmem:[%s330 + $0x158] sm:$0xff]
        %v375 = vld [vmem:[%s330 + $0x160] sm:$0x3]
        %v376 = vld [vmem:[%s330 + $0x168] sm:$0xff]
        %v377 = vld [vmem:[%s330 + $0x170] sm:$0xff]
        %v378 = vld [vmem:[%s330 + $0x178] sm:$0x3]
        %vm427 = vcmask 1046528
        %v428 = vrot.slane %v331, 1
        %v429 = vrot.slane %v332, 1
        %v430 = vsel %vm427, %v428, %v429
        %v431 = vrot.slane %v333, 1
        %v432 = vsel %vm427, %v429, %v431
        %v433 = vrot.slane %v334, 1
        %v434 = vrot.slane %v335, 1
        %v435 = vsel %vm427, %v433, %v434
        %v436 = vrot.slane %v336, 1
        %v437 = vsel %vm427, %v434, %v436
        %v438 = vrot.slane %v337, 1
        %v439 = vrot.slane %v338, 1
        %v440 = vsel %vm427, %v438, %v439
        %v441 = vrot.slane %v339, 1
        %v442 = vsel %vm427, %v439, %v441
        %v443 = vrot.slane %v340, 1
        %v444 = vrot.slane %v341, 1
        %v445 = vsel %vm427, %v443, %v444
        %v446 = vrot.slane %v342, 1
        %v447 = vsel %vm427, %v444, %v446
        %v448 = vrot.slane %v343, 1
        %v449 = vrot.slane %v344, 1
        %v450 = vsel %vm427, %v448, %v449
        %v451 = vrot.slane %v345, 1
        %v452 = vsel %vm427, %v449, %v451
        %v453 = vrot.slane %v346, 1
        %v454 = vrot.slane %v347, 1
        %v455 = vsel %vm427, %v453, %v454
        %v456 = vrot.slane %v348, 1
        %v457 = vsel %vm427, %v454, %v456
        %v458 = vrot.slane %v349, 1
        %v459 = vrot.slane %v350, 1
        %v460 = vsel %vm427, %v458, %v459
        %v461 = vrot.slane %v351, 1
        %v462 = vsel %vm427, %v459, %v461
        %v463 = vrot.slane %v352, 1
        %v464 = vrot.slane %v353, 1
        %v465 = vsel %vm427, %v463, %v464
        %v466 = vrot.slane %v354, 1
        %v467 = vsel %vm427, %v464, %v466
        %v468 = vrot.slane %v355, 1
        %v469 = vrot.slane %v356, 1
        %v470 = vsel %vm427, %v468, %v469
        %v471 = vrot.slane %v357, 1
        %v472 = vsel %vm427, %v469, %v471
        %v473 = vrot.slane %v358, 1
        %v474 = vrot.slane %v359, 1
        %v475 = vsel %vm427, %v473, %v474
        %v476 = vrot.slane %v360, 1
        %v477 = vsel %vm427, %v474, %v476
        %v478 = vrot.slane %v361, 1
        %v479 = vrot.slane %v362, 1
        %v480 = vsel %vm427, %v478, %v479
        %v481 = vrot.slane %v363, 1
        %v482 = vsel %vm427, %v479, %v481
        %v483 = vrot.slane %v364, 1
        %v484 = vrot.slane %v365, 1
        %v485 = vsel %vm427, %v483, %v484
        %v486 = vrot.slane %v366, 1
        %v487 = vsel %vm427, %v484, %v486
        %v488 = vrot.slane %v367, 1
        %v489 = vrot.slane %v368, 1
        %v490 = vsel %vm427, %v488, %v489
        %v491 = vrot.slane %v369, 1
        %v492 = vsel %vm427, %v489, %v491
        %v493 = vrot.slane %v370, 1
        %v494 = vrot.slane %v371, 1
        %v495 = vsel %vm427, %v493, %v494
        %v496 = vrot.slane %v372, 1
        %v497 = vsel %vm427, %v494, %v496
        %v498 = vrot.slane %v373, 1
        %v499 = vrot.slane %v374, 1
        %v500 = vsel %vm427, %v498, %v499
        %v501 = vrot.slane %v375, 1
        %v502 = vsel %vm427, %v499, %v501
        %v503 = vrot.slane %v376, 1
        %v504 = vrot.slane %v377, 1
        %v505 = vsel %vm427, %v503, %v504
        %v506 = vrot.slane %v378, 1
        %v507 = vsel %vm427, %v504, %v506
        %vm508 = vcmask 1045504
        %v509 = vrot.slane %v331, 2
        %v510 = vrot.slane %v332, 2
        %v511 = vsel %vm508, %v509, %v510
        %v512 = vrot.slane %v333, 2
        %v513 = vsel %vm508, %v510, %v512
        %v514 = vrot.slane %v334, 2
        %v515 = vrot.slane %v335, 2
        %v516 = vsel %vm508, %v514, %v515
        %v517 = vrot.slane %v336, 2
        %v518 = vsel %vm508, %v515, %v517
        %v519 = vrot.slane %v337, 2
        %v520 = vrot.slane %v338, 2
        %v521 = vsel %vm508, %v519, %v520
        %v522 = vrot.slane %v339, 2
        %v523 = vsel %vm508, %v520, %v522
        %v524 = vrot.slane %v340, 2
        %v525 = vrot.slane %v341, 2
        %v526 = vsel %vm508, %v524, %v525
        %v527 = vrot.slane %v342, 2
        %v528 = vsel %vm508, %v525, %v527
        %v529 = vrot.slane %v343, 2
        %v530 = vrot.slane %v344, 2
        %v531 = vsel %vm508, %v529, %v530
        %v532 = vrot.slane %v345, 2
        %v533 = vsel %vm508, %v530, %v532
        %v534 = vrot.slane %v346, 2
        %v535 = vrot.slane %v347, 2
        %v536 = vsel %vm508, %v534, %v535
        %v537 = vrot.slane %v348, 2
        %v538 = vsel %vm508, %v535, %v537
        %v539 = vrot.slane %v349, 2
        %v540 = vrot.slane %v350, 2
        %v541 = vsel %vm508, %v539, %v540
        %v542 = vrot.slane %v351, 2
        %v543 = vsel %vm508, %v540, %v542
        %v544 = vrot.slane %v352, 2
        %v545 = vrot.slane %v353, 2
        %v546 = vsel %vm508, %v544, %v545
        %v547 = vrot.slane %v354, 2
        %v548 = vsel %vm508, %v545, %v547
        %v549 = vrot.slane %v355, 2
        %v550 = vrot.slane %v356, 2
        %v551 = vsel %vm508, %v549, %v550
        %v552 = vrot.slane %v357, 2
        %v553 = vsel %vm508, %v550, %v552
        %v554 = vrot.slane %v358, 2
        %v555 = vrot.slane %v359, 2
        %v556 = vsel %vm508, %v554, %v555
        %v557 = vrot.slane %v360, 2
        %v558 = vsel %vm508, %v555, %v557
        %v559 = vrot.slane %v361, 2
        %v560 = vrot.slane %v362, 2
        %v561 = vsel %vm508, %v559, %v560
        %v562 = vrot.slane %v363, 2
        %v563 = vsel %vm508, %v560, %v562
        %v564 = vrot.slane %v364, 2
        %v565 = vrot.slane %v365, 2
        %v566 = vsel %vm508, %v564, %v565
        %v567 = vrot.slane %v366, 2
        %v568 = vsel %vm508, %v565, %v567
        %v569 = vrot.slane %v367, 2
        %v570 = vrot.slane %v368, 2
        %v571 = vsel %vm508, %v569, %v570
        %v572 = vrot.slane %v369, 2
        %v573 = vsel %vm508, %v570, %v572
        %v574 = vrot.slane %v370, 2
        %v575 = vrot.slane %v371, 2
        %v576 = vsel %vm508, %v574, %v575
        %v577 = vrot.slane %v372, 2
        %v578 = vsel %vm508, %v575, %v577
        %v579 = vrot.slane %v373, 2
        %v580 = vrot.slane %v374, 2
        %v581 = vsel %vm508, %v579, %v580
        %v582 = vrot.slane %v375, 2
        %v583 = vsel %vm508, %v580, %v582
        %v584 = vrot.slane %v376, 2
        %v585 = vrot.slane %v377, 2
        %v586 = vsel %vm508, %v584, %v585
        %v587 = vrot.slane %v378, 2
        %v588 = vsel %vm508, %v585, %v587
        %s589 = scalar_lea.vmem %s330, 24
        %v590 = vld [vmem:[%s589] sm:$0xff]
        %v591 = vld [vmem:[%s589 + $0x8] sm:$0xff]
        %v592 = vld [vmem:[%s589 + $0x10] sm:$0x3]
        %v593 = vld [vmem:[%s589 + $0x18] sm:$0xff]
        %v594 = vld [vmem:[%s589 + $0x20] sm:$0xff]
        %v595 = vld [vmem:[%s589 + $0x28] sm:$0x3]
        %v596 = vld [vmem:[%s589 + $0x30] sm:$0xff]
        %v597 = vld [vmem:[%s589 + $0x38] sm:$0xff]
        %v598 = vld [vmem:[%s589 + $0x40] sm:$0x3]
        %v599 = vld [vmem:[%s589 + $0x48] sm:$0xff]
        %v600 = vld [vmem:[%s589 + $0x50] sm:$0xff]
        %v601 = vld [vmem:[%s589 + $0x58] sm:$0x3]
        %v602 = vld [vmem:[%s589 + $0x60] sm:$0xff]
        %v603 = vld [vmem:[%s589 + $0x68] sm:$0xff]
        %v604 = vld [vmem:[%s589 + $0x70] sm:$0x3]
        %v605 = vld [vmem:[%s589 + $0x78] sm:$0xff]
        %v606 = vld [vmem:[%s589 + $0x80] sm:$0xff]
        %v607 = vld [vmem:[%s589 + $0x88] sm:$0x3]
        %v608 = vld [vmem:[%s589 + $0x90] sm:$0xff]
        %v609 = vld [vmem:[%s589 + $0x98] sm:$0xff]
        %v610 = vld [vmem:[%s589 + $0xa0] sm:$0x3]
        %v611 = vld [vmem:[%s589 + $0xa8] sm:$0xff]
        %v612 = vld [vmem:[%s589 + $0xb0] sm:$0xff]
        %v613 = vld [vmem:[%s589 + $0xb8] sm:$0x3]
        %v614 = vld [vmem:[%s589 + $0xc0] sm:$0xff]
        %v615 = vld [vmem:[%s589 + $0xc8] sm:$0xff]
        %v616 = vld [vmem:[%s589 + $0xd0] sm:$0x3]
        %v617 = vld [vmem:[%s589 + $0xd8] sm:$0xff]
        %v618 = vld [vmem:[%s589 + $0xe0] sm:$0xff]
        %v619 = vld [vmem:[%s589 + $0xe8] sm:$0x3]
        %v620 = vld [vmem:[%s589 + $0xf0] sm:$0xff]
        %v621 = vld [vmem:[%s589 + $0xf8] sm:$0xff]
        %v622 = vld [vmem:[%s589 + $0x100] sm:$0x3]
        %v623 = vld [vmem:[%s589 + $0x108] sm:$0xff]
        %v624 = vld [vmem:[%s589 + $0x110] sm:$0xff]
        %v625 = vld [vmem:[%s589 + $0x118] sm:$0x3]
        %v626 = vld [vmem:[%s589 + $0x120] sm:$0xff]
        %v627 = vld [vmem:[%s589 + $0x128] sm:$0xff]
        %v628 = vld [vmem:[%s589 + $0x130] sm:$0x3]
        %v629 = vld [vmem:[%s589 + $0x138] sm:$0xff]
        %v630 = vld [vmem:[%s589 + $0x140] sm:$0xff]
        %v631 = vld [vmem:[%s589 + $0x148] sm:$0x3]
        %v632 = vld [vmem:[%s589 + $0x150] sm:$0xff]
        %v633 = vld [vmem:[%s589 + $0x158] sm:$0xff]
        %v634 = vld [vmem:[%s589 + $0x160] sm:$0x3]
        %v635 = vld [vmem:[%s589 + $0x168] sm:$0xff]
        %v636 = vld [vmem:[%s589 + $0x170] sm:$0xff]
        %v637 = vld [vmem:[%s589 + $0x178] sm:$0x3]
        %v686 = vrot.slane %v590, 1
        %v687 = vrot.slane %v591, 1
        %v688 = vsel %vm427, %v686, %v687
        %v689 = vrot.slane %v592, 1
        %v690 = vsel %vm427, %v687, %v689
        %v691 = vrot.slane %v593, 1
        %v692 = vrot.slane %v594, 1
        %v693 = vsel %vm427, %v691, %v692
        %v694 = vrot.slane %v595, 1
        %v695 = vsel %vm427, %v692, %v694
        %v696 = vrot.slane %v596, 1
        %v697 = vrot.slane %v597, 1
        %v698 = vsel %vm427, %v696, %v697
        %v699 = vrot.slane %v598, 1
        %v700 = vsel %vm427, %v697, %v699
        %v701 = vrot.slane %v599, 1
        %v702 = vrot.slane %v600, 1
        %v703 = vsel %vm427, %v701, %v702
        %v704 = vrot.slane %v601, 1
        %v705 = vsel %vm427, %v702, %v704
        %v706 = vrot.slane %v602, 1
        %v707 = vrot.slane %v603, 1
        %v708 = vsel %vm427, %v706, %v707
        %v709 = vrot.slane %v604, 1
        %v710 = vsel %vm427, %v707, %v709
        %v711 = vrot.slane %v605, 1
        %v712 = vrot.slane %v606, 1
        %v713 = vsel %vm427, %v711, %v712
        %v714 = vrot.slane %v607, 1
        %v715 = vsel %vm427, %v712, %v714
        %v716 = vrot.slane %v608, 1
        %v717 = vrot.slane %v609, 1
        %v718 = vsel %vm427, %v716, %v717
        %v719 = vrot.slane %v610, 1
        %v720 = vsel %vm427, %v717, %v719
        %v721 = vrot.slane %v611, 1
        %v722 = vrot.slane %v612, 1
        %v723 = vsel %vm427, %v721, %v722
        %v724 = vrot.slane %v613, 1
        %v725 = vsel %vm427, %v722, %v724
        %v726 = vrot.slane %v614, 1
        %v727 = vrot.slane %v615, 1
        %v728 = vsel %vm427, %v726, %v727
        %v729 = vrot.slane %v616, 1
        %v730 = vsel %vm427, %v727, %v729
        %v731 = vrot.slane %v617, 1
        %v732 = vrot.slane %v618, 1
        %v733 = vsel %vm427, %v731, %v732
        %v734 = vrot.slane %v619, 1
        %v735 = vsel %vm427, %v732, %v734
        %v736 = vrot.slane %v620, 1
        %v737 = vrot.slane %v621, 1
        %v738 = vsel %vm427, %v736, %v737
        %v739 = vrot.slane %v622, 1
        %v740 = vsel %vm427, %v737, %v739
        %v741 = vrot.slane %v623, 1
        %v742 = vrot.slane %v624, 1
        %v743 = vsel %vm427, %v741, %v742
        %v744 = vrot.slane %v625, 1
        %v745 = vsel %vm427, %v742, %v744
        %v746 = vrot.slane %v626, 1
        %v747 = vrot.slane %v627, 1
        %v748 = vsel %vm427, %v746, %v747
        %v749 = vrot.slane %v628, 1
        %v750 = vsel %vm427, %v747, %v749
        %v751 = vrot.slane %v629, 1
        %v752 = vrot.slane %v630, 1
        %v753 = vsel %vm427, %v751, %v752
        %v754 = vrot.slane %v631, 1
        %v755 = vsel %vm427, %v752, %v754
        %v756 = vrot.slane %v632, 1
        %v757 = vrot.slane %v633, 1
        %v758 = vsel %vm427, %v756, %v757
        %v759 = vrot.slane %v634, 1
        %v760 = vsel %vm427, %v757, %v759
        %v761 = vrot.slane %v635, 1
        %v762 = vrot.slane %v636, 1
        %v763 = vsel %vm427, %v761, %v762
        %v764 = vrot.slane %v637, 1
        %v765 = vsel %vm427, %v762, %v764
        %v766 = vrot.slane %v590, 2
        %v767 = vrot.slane %v591, 2
        %v768 = vsel %vm508, %v766, %v767
        %v769 = vrot.slane %v592, 2
        %v770 = vsel %vm508, %v767, %v769
        %v771 = vrot.slane %v593, 2
        %v772 = vrot.slane %v594, 2
        %v773 = vsel %vm508, %v771, %v772
        %v774 = vrot.slane %v595, 2
        %v775 = vsel %vm508, %v772, %v774
        %v776 = vrot.slane %v596, 2
        %v777 = vrot.slane %v597, 2
        %v778 = vsel %vm508, %v776, %v777
        %v779 = vrot.slane %v598, 2
        %v780 = vsel %vm508, %v777, %v779
        %v781 = vrot.slane %v599, 2
        %v782 = vrot.slane %v600, 2
        %v783 = vsel %vm508, %v781, %v782
        %v784 = vrot.slane %v601, 2
        %v785 = vsel %vm508, %v782, %v784
        %v786 = vrot.slane %v602, 2
        %v787 = vrot.slane %v603, 2
        %v788 = vsel %vm508, %v786, %v787
        %v789 = vrot.slane %v604, 2
        %v790 = vsel %vm508, %v787, %v789
        %v791 = vrot.slane %v605, 2
        %v792 = vrot.slane %v606, 2
        %v793 = vsel %vm508, %v791, %v792
        %v794 = vrot.slane %v607, 2
        %v795 = vsel %vm508, %v792, %v794
        %v796 = vrot.slane %v608, 2
        %v797 = vrot.slane %v609, 2
        %v798 = vsel %vm508, %v796, %v797
        %v799 = vrot.slane %v610, 2
        %v800 = vsel %vm508, %v797, %v799
        %v801 = vrot.slane %v611, 2
        %v802 = vrot.slane %v612, 2
        %v803 = vsel %vm508, %v801, %v802
        %v804 = vrot.slane %v613, 2
        %v805 = vsel %vm508, %v802, %v804
        %v806 = vrot.slane %v614, 2
        %v807 = vrot.slane %v615, 2
        %v808 = vsel %vm508, %v806, %v807
        %v809 = vrot.slane %v616, 2
        %v810 = vsel %vm508, %v807, %v809
        %v811 = vrot.slane %v617, 2
        %v812 = vrot.slane %v618, 2
        %v813 = vsel %vm508, %v811, %v812
        %v814 = vrot.slane %v619, 2
        %v815 = vsel %vm508, %v812, %v814
        %v816 = vrot.slane %v620, 2
        %v817 = vrot.slane %v621, 2
        %v818 = vsel %vm508, %v816, %v817
        %v819 = vrot.slane %v622, 2
        %v820 = vsel %vm508, %v817, %v819
        %v821 = vrot.slane %v623, 2
        %v822 = vrot.slane %v624, 2
        %v823 = vsel %vm508, %v821, %v822
        %v824 = vrot.slane %v625, 2
        %v825 = vsel %vm508, %v822, %v824
        %v826 = vrot.slane %v626, 2
        %v827 = vrot.slane %v627, 2
        %v828 = vsel %vm508, %v826, %v827
        %v829 = vrot.slane %v628, 2
        %v830 = vsel %vm508, %v827, %v829
        %v831 = vrot.slane %v629, 2
        %v832 = vrot.slane %v630, 2
        %v833 = vsel %vm508, %v831, %v832
        %v834 = vrot.slane %v631, 2
        %v835 = vsel %vm508, %v832, %v834
        %v836 = vrot.slane %v632, 2
        %v837 = vrot.slane %v633, 2
        %v838 = vsel %vm508, %v836, %v837
        %v839 = vrot.slane %v634, 2
        %v840 = vsel %vm508, %v837, %v839
        %v841 = vrot.slane %v635, 2
        %v842 = vrot.slane %v636, 2
        %v843 = vsel %vm508, %v841, %v842
        %v844 = vrot.slane %v637, 2
        %v845 = vsel %vm508, %v842, %v844
        %s846 = scalar_lea.vmem %s330, 48
        %v847 = vld [vmem:[%s846] sm:$0xff]
        %v848 = vld [vmem:[%s846 + $0x8] sm:$0xff]
        %v849 = vld [vmem:[%s846 + $0x10] sm:$0x3]
        %v850 = vld [vmem:[%s846 + $0x18] sm:$0xff]
        %v851 = vld [vmem:[%s846 + $0x20] sm:$0xff]
        %v852 = vld [vmem:[%s846 + $0x28] sm:$0x3]
        %v853 = vld [vmem:[%s846 + $0x30] sm:$0xff]
        %v854 = vld [vmem:[%s846 + $0x38] sm:$0xff]
        %v855 = vld [vmem:[%s846 + $0x40] sm:$0x3]
        %v856 = vld [vmem:[%s846 + $0x48] sm:$0xff]
        %v857 = vld [vmem:[%s846 + $0x50] sm:$0xff]
        %v858 = vld [vmem:[%s846 + $0x58] sm:$0x3]
        %v859 = vld [vmem:[%s846 + $0x60] sm:$0xff]
        %v860 = vld [vmem:[%s846 + $0x68] sm:$0xff]
        %v861 = vld [vmem:[%s846 + $0x70] sm:$0x3]
        %v862 = vld [vmem:[%s846 + $0x78] sm:$0xff]
        %v863 = vld [vmem:[%s846 + $0x80] sm:$0xff]
        %v864 = vld [vmem:[%s846 + $0x88] sm:$0x3]
        %v865 = vld [vmem:[%s846 + $0x90] sm:$0xff]
        %v866 = vld [vmem:[%s846 + $0x98] sm:$0xff]
        %v867 = vld [vmem:[%s846 + $0xa0] sm:$0x3]
        %v868 = vld [vmem:[%s846 + $0xa8] sm:$0xff]
        %v869 = vld [vmem:[%s846 + $0xb0] sm:$0xff]
        %v870 = vld [vmem:[%s846 + $0xb8] sm:$0x3]
        %v871 = vld [vmem:[%s846 + $0xc0] sm:$0xff]
        %v872 = vld [vmem:[%s846 + $0xc8] sm:$0xff]
        %v873 = vld [vmem:[%s846 + $0xd0] sm:$0x3]
        %v874 = vld [vmem:[%s846 + $0xd8] sm:$0xff]
        %v875 = vld [vmem:[%s846 + $0xe0] sm:$0xff]
        %v876 = vld [vmem:[%s846 + $0xe8] sm:$0x3]
        %v877 = vld [vmem:[%s846 + $0xf0] sm:$0xff]
        %v878 = vld [vmem:[%s846 + $0xf8] sm:$0xff]
        %v879 = vld [vmem:[%s846 + $0x100] sm:$0x3]
        %v880 = vld [vmem:[%s846 + $0x108] sm:$0xff]
        %v881 = vld [vmem:[%s846 + $0x110] sm:$0xff]
        %v882 = vld [vmem:[%s846 + $0x118] sm:$0x3]
        %v883 = vld [vmem:[%s846 + $0x120] sm:$0xff]
        %v884 = vld [vmem:[%s846 + $0x128] sm:$0xff]
        %v885 = vld [vmem:[%s846 + $0x130] sm:$0x3]
        %v886 = vld [vmem:[%s846 + $0x138] sm:$0xff]
        %v887 = vld [vmem:[%s846 + $0x140] sm:$0xff]
        %v888 = vld [vmem:[%s846 + $0x148] sm:$0x3]
        %v889 = vld [vmem:[%s846 + $0x150] sm:$0xff]
        %v890 = vld [vmem:[%s846 + $0x158] sm:$0xff]
        %v891 = vld [vmem:[%s846 + $0x160] sm:$0x3]
        %v892 = vld [vmem:[%s846 + $0x168] sm:$0xff]
        %v893 = vld [vmem:[%s846 + $0x170] sm:$0xff]
        %v894 = vld [vmem:[%s846 + $0x178] sm:$0x3]
        %v943 = vrot.slane %v847, 1
        %v944 = vrot.slane %v848, 1
        %v945 = vsel %vm427, %v943, %v944
        %v946 = vrot.slane %v849, 1
        %v947 = vsel %vm427, %v944, %v946
        %v948 = vrot.slane %v850, 1
        %v949 = vrot.slane %v851, 1
        %v950 = vsel %vm427, %v948, %v949
        %v951 = vrot.slane %v852, 1
        %v952 = vsel %vm427, %v949, %v951
        %v953 = vrot.slane %v853, 1
        %v954 = vrot.slane %v854, 1
        %v955 = vsel %vm427, %v953, %v954
        %v956 = vrot.slane %v855, 1
        %v957 = vsel %vm427, %v954, %v956
        %v958 = vrot.slane %v856, 1
        %v959 = vrot.slane %v857, 1
        %v960 = vsel %vm427, %v958, %v959
        %v961 = vrot.slane %v858, 1
        %v962 = vsel %vm427, %v959, %v961
        %v963 = vrot.slane %v859, 1
        %v964 = vrot.slane %v860, 1
        %v965 = vsel %vm427, %v963, %v964
        %v966 = vrot.slane %v861, 1
        %v967 = vsel %vm427, %v964, %v966
        %v968 = vrot.slane %v862, 1
        %v969 = vrot.slane %v863, 1
        %v970 = vsel %vm427, %v968, %v969
        %v971 = vrot.slane %v864, 1
        %v972 = vsel %vm427, %v969, %v971
        %v973 = vrot.slane %v865, 1
        %v974 = vrot.slane %v866, 1
        %v975 = vsel %vm427, %v973, %v974
        %v976 = vrot.slane %v867, 1
        %v977 = vsel %vm427, %v974, %v976
        %v978 = vrot.slane %v868, 1
        %v979 = vrot.slane %v869, 1
        %v980 = vsel %vm427, %v978, %v979
        %v981 = vrot.slane %v870, 1
        %v982 = vsel %vm427, %v979, %v981
        %v983 = vrot.slane %v871, 1
        %v984 = vrot.slane %v872, 1
        %v985 = vsel %vm427, %v983, %v984
        %v986 = vrot.slane %v873, 1
        %v987 = vsel %vm427, %v984, %v986
        %v988 = vrot.slane %v874, 1
        %v989 = vrot.slane %v875, 1
        %v990 = vsel %vm427, %v988, %v989
        %v991 = vrot.slane %v876, 1
        %v992 = vsel %vm427, %v989, %v991
        %v993 = vrot.slane %v877, 1
        %v994 = vrot.slane %v878, 1
        %v995 = vsel %vm427, %v993, %v994
        %v996 = vrot.slane %v879, 1
        %v997 = vsel %vm427, %v994, %v996
        %v998 = vrot.slane %v880, 1
        %v999 = vrot.slane %v881, 1
        %v1000 = vsel %vm427, %v998, %v999
        %v1001 = vrot.slane %v882, 1
        %v1002 = vsel %vm427, %v999, %v1001
        %v1003 = vrot.slane %v883, 1
        %v1004 = vrot.slane %v884, 1
        %v1005 = vsel %vm427, %v1003, %v1004
        %v1006 = vrot.slane %v885, 1
        %v1007 = vsel %vm427, %v1004, %v1006
        %v1008 = vrot.slane %v886, 1
        %v1009 = vrot.slane %v887, 1
        %v1010 = vsel %vm427, %v1008, %v1009
        %v1011 = vrot.slane %v888, 1
        %v1012 = vsel %vm427, %v1009, %v1011
        %v1013 = vrot.slane %v889, 1
        %v1014 = vrot.slane %v890, 1
        %v1015 = vsel %vm427, %v1013, %v1014
        %v1016 = vrot.slane %v891, 1
        %v1017 = vsel %vm427, %v1014, %v1016
        %v1018 = vrot.slane %v892, 1
        %v1019 = vrot.slane %v893, 1
        %v1020 = vsel %vm427, %v1018, %v1019
        %v1021 = vrot.slane %v894, 1
        %v1022 = vsel %vm427, %v1019, %v1021
        %v1023 = vrot.slane %v847, 2
        %v1024 = vrot.slane %v848, 2
        %v1025 = vsel %vm508, %v1023, %v1024
        %v1026 = vrot.slane %v849, 2
        %v1027 = vsel %vm508, %v1024, %v1026
        %v1028 = vrot.slane %v850, 2
        %v1029 = vrot.slane %v851, 2
        %v1030 = vsel %vm508, %v1028, %v1029
        %v1031 = vrot.slane %v852, 2
        %v1032 = vsel %vm508, %v1029, %v1031
        %v1033 = vrot.slane %v853, 2
        %v1034 = vrot.slane %v854, 2
        %v1035 = vsel %vm508, %v1033, %v1034
        %v1036 = vrot.slane %v855, 2
        %v1037 = vsel %vm508, %v1034, %v1036
        %v1038 = vrot.slane %v856, 2
        %v1039 = vrot.slane %v857, 2
        %v1040 = vsel %vm508, %v1038, %v1039
        %v1041 = vrot.slane %v858, 2
        %v1042 = vsel %vm508, %v1039, %v1041
        %v1043 = vrot.slane %v859, 2
        %v1044 = vrot.slane %v860, 2
        %v1045 = vsel %vm508, %v1043, %v1044
        %v1046 = vrot.slane %v861, 2
        %v1047 = vsel %vm508, %v1044, %v1046
        %v1048 = vrot.slane %v862, 2
        %v1049 = vrot.slane %v863, 2
        %v1050 = vsel %vm508, %v1048, %v1049
        %v1051 = vrot.slane %v864, 2
        %v1052 = vsel %vm508, %v1049, %v1051
        %v1053 = vrot.slane %v865, 2
        %v1054 = vrot.slane %v866, 2
        %v1055 = vsel %vm508, %v1053, %v1054
        %v1056 = vrot.slane %v867, 2
        %v1057 = vsel %vm508, %v1054, %v1056
        %v1058 = vrot.slane %v868, 2
        %v1059 = vrot.slane %v869, 2
        %v1060 = vsel %vm508, %v1058, %v1059
        %v1061 = vrot.slane %v870, 2
        %v1062 = vsel %vm508, %v1059, %v1061
        %v1063 = vrot.slane %v871, 2
        %v1064 = vrot.slane %v872, 2
        %v1065 = vsel %vm508, %v1063, %v1064
        %v1066 = vrot.slane %v873, 2
        %v1067 = vsel %vm508, %v1064, %v1066
        %v1068 = vrot.slane %v874, 2
        %v1069 = vrot.slane %v875, 2
        %v1070 = vsel %vm508, %v1068, %v1069
        %v1071 = vrot.slane %v876, 2
        %v1072 = vsel %vm508, %v1069, %v1071
        %v1073 = vrot.slane %v877, 2
        %v1074 = vrot.slane %v878, 2
        %v1075 = vsel %vm508, %v1073, %v1074
        %v1076 = vrot.slane %v879, 2
        %v1077 = vsel %vm508, %v1074, %v1076
        %v1078 = vrot.slane %v880, 2
        %v1079 = vrot.slane %v881, 2
        %v1080 = vsel %vm508, %v1078, %v1079
        %v1081 = vrot.slane %v882, 2
        %v1082 = vsel %vm508, %v1079, %v1081
        %v1083 = vrot.slane %v883, 2
        %v1084 = vrot.slane %v884, 2
        %v1085 = vsel %vm508, %v1083, %v1084
        %v1086 = vrot.slane %v885, 2
        %v1087 = vsel %vm508, %v1084, %v1086
        %v1088 = vrot.slane %v886, 2
        %v1089 = vrot.slane %v887, 2
        %v1090 = vsel %vm508, %v1088, %v1089
        %v1091 = vrot.slane %v888, 2
        %v1092 = vsel %vm508, %v1089, %v1091
        %v1093 = vrot.slane %v889, 2
        %v1094 = vrot.slane %v890, 2
        %v1095 = vsel %vm508, %v1093, %v1094
        %v1096 = vrot.slane %v891, 2
        %v1097 = vsel %vm508, %v1094, %v1096
        %v1098 = vrot.slane %v892, 2
        %v1099 = vrot.slane %v893, 2
        %v1100 = vsel %vm508, %v1098, %v1099
        %v1101 = vrot.slane %v894, 2
        %v1102 = vsel %vm508, %v1099, %v1101
        %1103 = vrot.lane.b32.xlu0 %v430, 60
        %v1104 = vpop.permute.xlu0 %1103
        %1105 = vrot.lane.b32.xlu0 %v432, 60
        %v1106 = vpop.permute.xlu0 %1105
        %1107 = vrot.lane.b32.xlu0 %v435, 60
        %v1108 = vpop.permute.xlu0 %1107
        %1109 = vrot.lane.b32.xlu0 %v437, 60
        %v1110 = vpop.permute.xlu0 %1109
        %1111 = vrot.lane.b32.xlu0 %v440, 60
        %v1112 = vpop.permute.xlu0 %1111
        %1113 = vrot.lane.b32.xlu0 %v442, 60
        %v1114 = vpop.permute.xlu0 %1113
        %1115 = vrot.lane.b32.xlu0 %v445, 60
        %v1116 = vpop.permute.xlu0 %1115
        %1117 = vrot.lane.b32.xlu0 %v447, 60
        %v1118 = vpop.permute.xlu0 %1117
        %1119 = vrot.lane.b32.xlu0 %v450, 60
        %v1120 = vpop.permute.xlu0 %1119
        %1121 = vrot.lane.b32.xlu0 %v452, 60
        %v1122 = vpop.permute.xlu0 %1121
        %1123 = vrot.lane.b32.xlu0 %v455, 60
        %v1124 = vpop.permute.xlu0 %1123
        %1125 = vrot.lane.b32.xlu0 %v457, 60
        %v1126 = vpop.permute.xlu0 %1125
        %1127 = vrot.lane.b32.xlu0 %v460, 60
        %v1128 = vpop.permute.xlu0 %1127
        %1129 = vrot.lane.b32.xlu0 %v462, 60
        %v1130 = vpop.permute.xlu0 %1129
        %1131 = vrot.lane.b32.xlu0 %v465, 60
        %v1132 = vpop.permute.xlu0 %1131
        %1133 = vrot.lane.b32.xlu0 %v467, 60
        %v1134 = vpop.permute.xlu0 %1133
        %1135 = vrot.lane.b32.xlu0 %v470, 60
        %v1136 = vpop.permute.xlu0 %1135
        %1137 = vrot.lane.b32.xlu0 %v472, 60
        %v1138 = vpop.permute.xlu0 %1137
        %1139 = vrot.lane.b32.xlu0 %v475, 60
        %v1140 = vpop.permute.xlu0 %1139
        %1141 = vrot.lane.b32.xlu0 %v477, 60
        %v1142 = vpop.permute.xlu0 %1141
        %1143 = vrot.lane.b32.xlu0 %v480, 60
        %v1144 = vpop.permute.xlu0 %1143
        %1145 = vrot.lane.b32.xlu0 %v482, 60
        %v1146 = vpop.permute.xlu0 %1145
        %1147 = vrot.lane.b32.xlu0 %v485, 60
        %v1148 = vpop.permute.xlu0 %1147
        %1149 = vrot.lane.b32.xlu0 %v487, 60
        %v1150 = vpop.permute.xlu0 %1149
        %1151 = vrot.lane.b32.xlu0 %v490, 60
        %v1152 = vpop.permute.xlu0 %1151
        %1153 = vrot.lane.b32.xlu0 %v492, 60
        %v1154 = vpop.permute.xlu0 %1153
        %1155 = vrot.lane.b32.xlu0 %v495, 60
        %v1156 = vpop.permute.xlu0 %1155
        %1157 = vrot.lane.b32.xlu0 %v497, 60
        %v1158 = vpop.permute.xlu0 %1157
        %1159 = vrot.lane.b32.xlu0 %v500, 60
        %v1160 = vpop.permute.xlu0 %1159
        %1161 = vrot.lane.b32.xlu0 %v502, 60
        %v1162 = vpop.permute.xlu0 %1161
        %1163 = vrot.lane.b32.xlu0 %v505, 60
        %v1164 = vpop.permute.xlu0 %1163
        %1165 = vrot.lane.b32.xlu0 %v507, 60
        %v1166 = vpop.permute.xlu0 %1165
        %1199 = vrot.lane.b32.xlu0 %v511, 120
        %v1200 = vpop.permute.xlu0 %1199
        %1201 = vrot.lane.b32.xlu0 %v513, 120
        %v1202 = vpop.permute.xlu0 %1201
        %1203 = vrot.lane.b32.xlu0 %v516, 120
        %v1204 = vpop.permute.xlu0 %1203
        %1205 = vrot.lane.b32.xlu0 %v518, 120
        %v1206 = vpop.permute.xlu0 %1205
        %1207 = vrot.lane.b32.xlu0 %v521, 120
        %v1208 = vpop.permute.xlu0 %1207
        %1209 = vrot.lane.b32.xlu0 %v523, 120
        %v1210 = vpop.permute.xlu0 %1209
        %1211 = vrot.lane.b32.xlu0 %v526, 120
        %v1212 = vpop.permute.xlu0 %1211
        %1213 = vrot.lane.b32.xlu0 %v528, 120
        %v1214 = vpop.permute.xlu0 %1213
        %1215 = vrot.lane.b32.xlu0 %v531, 120
        %v1216 = vpop.permute.xlu0 %1215
        %1217 = vrot.lane.b32.xlu0 %v533, 120
        %v1218 = vpop.permute.xlu0 %1217
        %1219 = vrot.lane.b32.xlu0 %v536, 120
        %v1220 = vpop.permute.xlu0 %1219
        %1221 = vrot.lane.b32.xlu0 %v538, 120
        %v1222 = vpop.permute.xlu0 %1221
        %1223 = vrot.lane.b32.xlu0 %v541, 120
        %v1224 = vpop.permute.xlu0 %1223
        %1225 = vrot.lane.b32.xlu0 %v543, 120
        %v1226 = vpop.permute.xlu0 %1225
        %1227 = vrot.lane.b32.xlu0 %v546, 120
        %v1228 = vpop.permute.xlu0 %1227
        %1229 = vrot.lane.b32.xlu0 %v548, 120
        %v1230 = vpop.permute.xlu0 %1229
        %1231 = vrot.lane.b32.xlu0 %v551, 120
        %v1232 = vpop.permute.xlu0 %1231
        %1233 = vrot.lane.b32.xlu0 %v553, 120
        %v1234 = vpop.permute.xlu0 %1233
        %1235 = vrot.lane.b32.xlu0 %v556, 120
        %v1236 = vpop.permute.xlu0 %1235
        %1237 = vrot.lane.b32.xlu0 %v558, 120
        %v1238 = vpop.permute.xlu0 %1237
        %1239 = vrot.lane.b32.xlu0 %v561, 120
        %v1240 = vpop.permute.xlu0 %1239
        %1241 = vrot.lane.b32.xlu0 %v563, 120
        %v1242 = vpop.permute.xlu0 %1241
        %1243 = vrot.lane.b32.xlu0 %v566, 120
        %v1244 = vpop.permute.xlu0 %1243
        %1245 = vrot.lane.b32.xlu0 %v568, 120
        %v1246 = vpop.permute.xlu0 %1245
        %1247 = vrot.lane.b32.xlu0 %v571, 120
        %v1248 = vpop.permute.xlu0 %1247
        %1249 = vrot.lane.b32.xlu0 %v573, 120
        %v1250 = vpop.permute.xlu0 %1249
        %1251 = vrot.lane.b32.xlu0 %v576, 120
        %v1252 = vpop.permute.xlu0 %1251
        %1253 = vrot.lane.b32.xlu0 %v578, 120
        %v1254 = vpop.permute.xlu0 %1253
        %1255 = vrot.lane.b32.xlu0 %v581, 120
        %v1256 = vpop.permute.xlu0 %1255
        %1257 = vrot.lane.b32.xlu0 %v583, 120
        %v1258 = vpop.permute.xlu0 %1257
        %1259 = vrot.lane.b32.xlu0 %v586, 120
        %v1260 = vpop.permute.xlu0 %1259
        %1261 = vrot.lane.b32.xlu0 %v588, 120
        %v1262 = vpop.permute.xlu0 %1261
        %1295 = vrot.lane.b32.xlu0 %v590, 52
        %v1296 = vpop.permute.xlu0 %1295
        %1297 = vrot.lane.b32.xlu0 %v591, 52
        %v1298 = vpop.permute.xlu0 %1297
        %1299 = vrot.lane.b32.xlu0 %v593, 52
        %v1300 = vpop.permute.xlu0 %1299
        %1301 = vrot.lane.b32.xlu0 %v594, 52
        %v1302 = vpop.permute.xlu0 %1301
        %1303 = vrot.lane.b32.xlu0 %v596, 52
        %v1304 = vpop.permute.xlu0 %1303
        %1305 = vrot.lane.b32.xlu0 %v597, 52
        %v1306 = vpop.permute.xlu0 %1305
        %1307 = vrot.lane.b32.xlu0 %v599, 52
        %v1308 = vpop.permute.xlu0 %1307
        %1309 = vrot.lane.b32.xlu0 %v600, 52
        %v1310 = vpop.permute.xlu0 %1309
        %1311 = vrot.lane.b32.xlu0 %v602, 52
        %v1312 = vpop.permute.xlu0 %1311
        %1313 = vrot.lane.b32.xlu0 %v603, 52
        %v1314 = vpop.permute.xlu0 %1313
        %1315 = vrot.lane.b32.xlu0 %v605, 52
        %v1316 = vpop.permute.xlu0 %1315
        %1317 = vrot.lane.b32.xlu0 %v606, 52
        %v1318 = vpop.permute.xlu0 %1317
        %1319 = vrot.lane.b32.xlu0 %v608, 52
        %v1320 = vpop.permute.xlu0 %1319
        %1321 = vrot.lane.b32.xlu0 %v609, 52
        %v1322 = vpop.permute.xlu0 %1321
        %1323 = vrot.lane.b32.xlu0 %v611, 52
        %v1324 = vpop.permute.xlu0 %1323
        %1325 = vrot.lane.b32.xlu0 %v612, 52
        %v1326 = vpop.permute.xlu0 %1325
        %1327 = vrot.lane.b32.xlu0 %v614, 52
        %v1328 = vpop.permute.xlu0 %1327
        %1329 = vrot.lane.b32.xlu0 %v615, 52
        %v1330 = vpop.permute.xlu0 %1329
        %1331 = vrot.lane.b32.xlu0 %v617, 52
        %v1332 = vpop.permute.xlu0 %1331
        %1333 = vrot.lane.b32.xlu0 %v618, 52
        %v1334 = vpop.permute.xlu0 %1333
        %1335 = vrot.lane.b32.xlu0 %v620, 52
        %v1336 = vpop.permute.xlu0 %1335
        %1337 = vrot.lane.b32.xlu0 %v621, 52
        %v1338 = vpop.permute.xlu0 %1337
        %1339 = vrot.lane.b32.xlu0 %v623, 52
        %v1340 = vpop.permute.xlu0 %1339
        %1341 = vrot.lane.b32.xlu0 %v624, 52
        %v1342 = vpop.permute.xlu0 %1341
        %1343 = vrot.lane.b32.xlu0 %v626, 52
        %v1344 = vpop.permute.xlu0 %1343
        %1345 = vrot.lane.b32.xlu0 %v627, 52
        %v1346 = vpop.permute.xlu0 %1345
        %1347 = vrot.lane.b32.xlu0 %v629, 52
        %v1348 = vpop.permute.xlu0 %1347
        %1349 = vrot.lane.b32.xlu0 %v630, 52
        %v1350 = vpop.permute.xlu0 %1349
        %1351 = vrot.lane.b32.xlu0 %v632, 52
        %v1352 = vpop.permute.xlu0 %1351
        %1353 = vrot.lane.b32.xlu0 %v633, 52
        %v1354 = vpop.permute.xlu0 %1353
        %1355 = vrot.lane.b32.xlu0 %v635, 52
        %v1356 = vpop.permute.xlu0 %1355
        %1357 = vrot.lane.b32.xlu0 %v636, 52
        %v1358 = vpop.permute.xlu0 %1357
        %1391 = vrot.lane.b32.xlu0 %v688, 112
        %v1392 = vpop.permute.xlu0 %1391
        %1393 = vrot.lane.b32.xlu0 %v690, 112
        %v1394 = vpop.permute.xlu0 %1393
        %1395 = vrot.lane.b32.xlu0 %v693, 112
        %v1396 = vpop.permute.xlu0 %1395
        %1397 = vrot.lane.b32.xlu0 %v695, 112
        %v1398 = vpop.permute.xlu0 %1397
        %1399 = vrot.lane.b32.xlu0 %v698, 112
        %v1400 = vpop.permute.xlu0 %1399
        %1401 = vrot.lane.b32.xlu0 %v700, 112
        %v1402 = vpop.permute.xlu0 %1401
        %1403 = vrot.lane.b32.xlu0 %v703, 112
        %v1404 = vpop.permute.xlu0 %1403
        %1405 = vrot.lane.b32.xlu0 %v705, 112
        %v1406 = vpop.permute.xlu0 %1405
        %1407 = vrot.lane.b32.xlu0 %v708, 112
        %v1408 = vpop.permute.xlu0 %1407
        %1409 = vrot.lane.b32.xlu0 %v710, 112
        %v1410 = vpop.permute.xlu0 %1409
        %1411 = vrot.lane.b32.xlu0 %v713, 112
        %v1412 = vpop.permute.xlu0 %1411
        %1413 = vrot.lane.b32.xlu0 %v715, 112
        %v1414 = vpop.permute.xlu0 %1413
        %1415 = vrot.lane.b32.xlu0 %v718, 112
        %v1416 = vpop.permute.xlu0 %1415
        %1417 = vrot.lane.b32.xlu0 %v720, 112
        %v1418 = vpop.permute.xlu0 %1417
        %1419 = vrot.lane.b32.xlu0 %v723, 112
        %v1420 = vpop.permute.xlu0 %1419
        %1421 = vrot.lane.b32.xlu0 %v725, 112
        %v1422 = vpop.permute.xlu0 %1421
        %1423 = vrot.lane.b32.xlu0 %v728, 112
        %v1424 = vpop.permute.xlu0 %1423
        %1425 = vrot.lane.b32.xlu0 %v730, 112
        %v1426 = vpop.permute.xlu0 %1425
        %1427 = vrot.lane.b32.xlu0 %v733, 112
        %v1428 = vpop.permute.xlu0 %1427
        %1429 = vrot.lane.b32.xlu0 %v735, 112
        %v1430 = vpop.permute.xlu0 %1429
        %1431 = vrot.lane.b32.xlu0 %v738, 112
        %v1432 = vpop.permute.xlu0 %1431
        %1433 = vrot.lane.b32.xlu0 %v740, 112
        %v1434 = vpop.permute.xlu0 %1433
        %1435 = vrot.lane.b32.xlu0 %v743, 112
        %v1436 = vpop.permute.xlu0 %1435
        %1437 = vrot.lane.b32.xlu0 %v745, 112
        %v1438 = vpop.permute.xlu0 %1437
        %1439 = vrot.lane.b32.xlu0 %v748, 112
        %v1440 = vpop.permute.xlu0 %1439
        %1441 = vrot.lane.b32.xlu0 %v750, 112
        %v1442 = vpop.permute.xlu0 %1441
        %1443 = vrot.lane.b32.xlu0 %v753, 112
        %v1444 = vpop.permute.xlu0 %1443
        %1445 = vrot.lane.b32.xlu0 %v755, 112
        %v1446 = vpop.permute.xlu0 %1445
        %1447 = vrot.lane.b32.xlu0 %v758, 112
        %v1448 = vpop.permute.xlu0 %1447
        %1449 = vrot.lane.b32.xlu0 %v760, 112
        %v1450 = vpop.permute.xlu0 %1449
        %1451 = vrot.lane.b32.xlu0 %v763, 112
        %v1452 = vpop.permute.xlu0 %1451
        %1453 = vrot.lane.b32.xlu0 %v765, 112
        %v1454 = vpop.permute.xlu0 %1453
        %1487 = vrot.lane.b32.xlu0 %v768, 44
        %v1488 = vpop.permute.xlu0 %1487
        %1489 = vrot.lane.b32.xlu0 %v770, 44
        %v1490 = vpop.permute.xlu0 %1489
        %1491 = vrot.lane.b32.xlu0 %v773, 44
        %v1492 = vpop.permute.xlu0 %1491
        %1493 = vrot.lane.b32.xlu0 %v775, 44
        %v1494 = vpop.permute.xlu0 %1493
        %1495 = vrot.lane.b32.xlu0 %v778, 44
        %v1496 = vpop.permute.xlu0 %1495
        %1497 = vrot.lane.b32.xlu0 %v780, 44
        %v1498 = vpop.permute.xlu0 %1497
        %1499 = vrot.lane.b32.xlu0 %v783, 44
        %v1500 = vpop.permute.xlu0 %1499
        %1501 = vrot.lane.b32.xlu0 %v785, 44
        %v1502 = vpop.permute.xlu0 %1501
        %1503 = vrot.lane.b32.xlu0 %v788, 44
        %v1504 = vpop.permute.xlu0 %1503
        %1505 = vrot.lane.b32.xlu0 %v790, 44
        %v1506 = vpop.permute.xlu0 %1505
        %1507 = vrot.lane.b32.xlu0 %v793, 44
        %v1508 = vpop.permute.xlu0 %1507
        %1509 = vrot.lane.b32.xlu0 %v795, 44
        %v1510 = vpop.permute.xlu0 %1509
        %1511 = vrot.lane.b32.xlu0 %v798, 44
        %v1512 = vpop.permute.xlu0 %1511
        %1513 = vrot.lane.b32.xlu0 %v800, 44
        %v1514 = vpop.permute.xlu0 %1513
        %1515 = vrot.lane.b32.xlu0 %v803, 44
        %v1516 = vpop.permute.xlu0 %1515
        %1517 = vrot.lane.b32.xlu0 %v805, 44
        %v1518 = vpop.permute.xlu0 %1517
        %1519 = vrot.lane.b32.xlu0 %v808, 44
        %v1520 = vpop.permute.xlu0 %1519
        %1521 = vrot.lane.b32.xlu0 %v810, 44
        %v1522 = vpop.permute.xlu0 %1521
        %1523 = vrot.lane.b32.xlu0 %v813, 44
        %v1524 = vpop.permute.xlu0 %1523
        %1525 = vrot.lane.b32.xlu0 %v815, 44
        %v1526 = vpop.permute.xlu0 %1525
        %1527 = vrot.lane.b32.xlu0 %v818, 44
        %v1528 = vpop.permute.xlu0 %1527
        %1529 = vrot.lane.b32.xlu0 %v820, 44
        %v1530 = vpop.permute.xlu0 %1529
        %1531 = vrot.lane.b32.xlu0 %v823, 44
        %v1532 = vpop.permute.xlu0 %1531
        %1533 = vrot.lane.b32.xlu0 %v825, 44
        %v1534 = vpop.permute.xlu0 %1533
        %1535 = vrot.lane.b32.xlu0 %v828, 44
        %v1536 = vpop.permute.xlu0 %1535
        %1537 = vrot.lane.b32.xlu0 %v830, 44
        %v1538 = vpop.permute.xlu0 %1537
        %1539 = vrot.lane.b32.xlu0 %v833, 44
        %v1540 = vpop.permute.xlu0 %1539
        %1541 = vrot.lane.b32.xlu0 %v835, 44
        %v1542 = vpop.permute.xlu0 %1541
        %1543 = vrot.lane.b32.xlu0 %v838, 44
        %v1544 = vpop.permute.xlu0 %1543
        %1545 = vrot.lane.b32.xlu0 %v840, 44
        %v1546 = vpop.permute.xlu0 %1545
        %1547 = vrot.lane.b32.xlu0 %v843, 44
        %v1548 = vpop.permute.xlu0 %1547
        %1549 = vrot.lane.b32.xlu0 %v845, 44
        %v1550 = vpop.permute.xlu0 %1549
        %1583 = vrot.lane.b32.xlu0 %v847, 104
        %v1584 = vpop.permute.xlu0 %1583
        %1585 = vrot.lane.b32.xlu0 %v848, 104
        %v1586 = vpop.permute.xlu0 %1585
        %1587 = vrot.lane.b32.xlu0 %v850, 104
        %v1588 = vpop.permute.xlu0 %1587
        %1589 = vrot.lane.b32.xlu0 %v851, 104
        %v1590 = vpop.permute.xlu0 %1589
        %1591 = vrot.lane.b32.xlu0 %v853, 104
        %v1592 = vpop.permute.xlu0 %1591
        %1593 = vrot.lane.b32.xlu0 %v854, 104
        %v1594 = vpop.permute.xlu0 %1593
        %1595 = vrot.lane.b32.xlu0 %v856, 104
        %v1596 = vpop.permute.xlu0 %1595
        %1597 = vrot.lane.b32.xlu0 %v857, 104
        %v1598 = vpop.permute.xlu0 %1597
        %1599 = vrot.lane.b32.xlu0 %v859, 104
        %v1600 = vpop.permute.xlu0 %1599
        %1601 = vrot.lane.b32.xlu0 %v860, 104
        %v1602 = vpop.permute.xlu0 %1601
        %1603 = vrot.lane.b32.xlu0 %v862, 104
        %v1604 = vpop.permute.xlu0 %1603
        %1605 = vrot.lane.b32.xlu0 %v863, 104
        %v1606 = vpop.permute.xlu0 %1605
        %1607 = vrot.lane.b32.xlu0 %v865, 104
        %v1608 = vpop.permute.xlu0 %1607
        %1609 = vrot.lane.b32.xlu0 %v866, 104
        %v1610 = vpop.permute.xlu0 %1609
        %1611 = vrot.lane.b32.xlu0 %v868, 104
        %v1612 = vpop.permute.xlu0 %1611
        %1613 = vrot.lane.b32.xlu0 %v869, 104
        %v1614 = vpop.permute.xlu0 %1613
        %1615 = vrot.lane.b32.xlu0 %v871, 104
        %v1616 = vpop.permute.xlu0 %1615
        %1617 = vrot.lane.b32.xlu0 %v872, 104
        %v1618 = vpop.permute.xlu0 %1617
        %1619 = vrot.lane.b32.xlu0 %v874, 104
        %v1620 = vpop.permute.xlu0 %1619
        %1621 = vrot.lane.b32.xlu0 %v875, 104
        %v1622 = vpop.permute.xlu0 %1621
        %1623 = vrot.lane.b32.xlu0 %v877, 104
        %v1624 = vpop.permute.xlu0 %1623
        %1625 = vrot.lane.b32.xlu0 %v878, 104
        %v1626 = vpop.permute.xlu0 %1625
        %1627 = vrot.lane.b32.xlu0 %v880, 104
        %v1628 = vpop.permute.xlu0 %1627
        %1629 = vrot.lane.b32.xlu0 %v881, 104
        %v1630 = vpop.permute.xlu0 %1629
        %1631 = vrot.lane.b32.xlu0 %v883, 104
        %v1632 = vpop.permute.xlu0 %1631
        %1633 = vrot.lane.b32.xlu0 %v884, 104
        %v1634 = vpop.permute.xlu0 %1633
        %1635 = vrot.lane.b32.xlu0 %v886, 104
        %v1636 = vpop.permute.xlu0 %1635
        %1637 = vrot.lane.b32.xlu0 %v887, 104
        %v1638 = vpop.permute.xlu0 %1637
        %1639 = vrot.lane.b32.xlu0 %v889, 104
        %v1640 = vpop.permute.xlu0 %1639
        %1641 = vrot.lane.b32.xlu0 %v890, 104
        %v1642 = vpop.permute.xlu0 %1641
        %1643 = vrot.lane.b32.xlu0 %v892, 104
        %v1644 = vpop.permute.xlu0 %1643
        %1645 = vrot.lane.b32.xlu0 %v893, 104
        %v1646 = vpop.permute.xlu0 %1645
        %1679 = vrot.lane.b32.xlu0 %v945, 36
        %v1680 = vpop.permute.xlu0 %1679
        %1681 = vrot.lane.b32.xlu0 %v947, 36
        %v1682 = vpop.permute.xlu0 %1681
        %1683 = vrot.lane.b32.xlu0 %v950, 36
        %v1684 = vpop.permute.xlu0 %1683
        %1685 = vrot.lane.b32.xlu0 %v952, 36
        %v1686 = vpop.permute.xlu0 %1685
        %1687 = vrot.lane.b32.xlu0 %v955, 36
        %v1688 = vpop.permute.xlu0 %1687
        %1689 = vrot.lane.b32.xlu0 %v957, 36
        %v1690 = vpop.permute.xlu0 %1689
        %1691 = vrot.lane.b32.xlu0 %v960, 36
        %v1692 = vpop.permute.xlu0 %1691
        %1693 = vrot.lane.b32.xlu0 %v962, 36
        %v1694 = vpop.permute.xlu0 %1693
        %1695 = vrot.lane.b32.xlu0 %v965, 36
        %v1696 = vpop.permute.xlu0 %1695
        %1697 = vrot.lane.b32.xlu0 %v967, 36
        %v1698 = vpop.permute.xlu0 %1697
        %1699 = vrot.lane.b32.xlu0 %v970, 36
        %v1700 = vpop.permute.xlu0 %1699
        %1701 = vrot.lane.b32.xlu0 %v972, 36
        %v1702 = vpop.permute.xlu0 %1701
        %1703 = vrot.lane.b32.xlu0 %v975, 36
        %v1704 = vpop.permute.xlu0 %1703
        %1705 = vrot.lane.b32.xlu0 %v977, 36
        %v1706 = vpop.permute.xlu0 %1705
        %1707 = vrot.lane.b32.xlu0 %v980, 36
        %v1708 = vpop.permute.xlu0 %1707
        %1709 = vrot.lane.b32.xlu0 %v982, 36
        %v1710 = vpop.permute.xlu0 %1709
        %1711 = vrot.lane.b32.xlu0 %v985, 36
        %v1712 = vpop.permute.xlu0 %1711
        %1713 = vrot.lane.b32.xlu0 %v987, 36
        %v1714 = vpop.permute.xlu0 %1713
        %1715 = vrot.lane.b32.xlu0 %v990, 36
        %v1716 = vpop.permute.xlu0 %1715
        %1717 = vrot.lane.b32.xlu0 %v992, 36
        %v1718 = vpop.permute.xlu0 %1717
        %1719 = vrot.lane.b32.xlu0 %v995, 36
        %v1720 = vpop.permute.xlu0 %1719
        %1721 = vrot.lane.b32.xlu0 %v997, 36
        %v1722 = vpop.permute.xlu0 %1721
        %1723 = vrot.lane.b32.xlu0 %v1000, 36
        %v1724 = vpop.permute.xlu0 %1723
        %1725 = vrot.lane.b32.xlu0 %v1002, 36
        %v1726 = vpop.permute.xlu0 %1725
        %1727 = vrot.lane.b32.xlu0 %v1005, 36
        %v1728 = vpop.permute.xlu0 %1727
        %1729 = vrot.lane.b32.xlu0 %v1007, 36
        %v1730 = vpop.permute.xlu0 %1729
        %1731 = vrot.lane.b32.xlu0 %v1010, 36
        %v1732 = vpop.permute.xlu0 %1731
        %1733 = vrot.lane.b32.xlu0 %v1012, 36
        %v1734 = vpop.permute.xlu0 %1733
        %1735 = vrot.lane.b32.xlu0 %v1015, 36
        %v1736 = vpop.permute.xlu0 %1735
        %1737 = vrot.lane.b32.xlu0 %v1017, 36
        %v1738 = vpop.permute.xlu0 %1737
        %1739 = vrot.lane.b32.xlu0 %v1020, 36
        %v1740 = vpop.permute.xlu0 %1739
        %1741 = vrot.lane.b32.xlu0 %v1022, 36
        %v1742 = vpop.permute.xlu0 %1741
        %1775 = vrot.lane.b32.xlu0 %v1025, 96
        %v1776 = vpop.permute.xlu0 %1775
        %1777 = vrot.lane.b32.xlu0 %v1027, 96
        %v1778 = vpop.permute.xlu0 %1777
        %1779 = vrot.lane.b32.xlu0 %v1030, 96
        %v1780 = vpop.permute.xlu0 %1779
        %1781 = vrot.lane.b32.xlu0 %v1032, 96
        %v1782 = vpop.permute.xlu0 %1781
        %1783 = vrot.lane.b32.xlu0 %v1035, 96
        %v1784 = vpop.permute.xlu0 %1783
        %1785 = vrot.lane.b32.xlu0 %v1037, 96
        %v1786 = vpop.permute.xlu0 %1785
        %1787 = vrot.lane.b32.xlu0 %v1040, 96
        %v1788 = vpop.permute.xlu0 %1787
        %1789 = vrot.lane.b32.xlu0 %v1042, 96
        %v1790 = vpop.permute.xlu0 %1789
        %1791 = vrot.lane.b32.xlu0 %v1045, 96
        %v1792 = vpop.permute.xlu0 %1791
        %1793 = vrot.lane.b32.xlu0 %v1047, 96
        %v1794 = vpop.permute.xlu0 %1793
        %1795 = vrot.lane.b32.xlu0 %v1050, 96
        %v1796 = vpop.permute.xlu0 %1795
        %1797 = vrot.lane.b32.xlu0 %v1052, 96
        %v1798 = vpop.permute.xlu0 %1797
        %1799 = vrot.lane.b32.xlu0 %v1055, 96
        %v1800 = vpop.permute.xlu0 %1799
        %1801 = vrot.lane.b32.xlu0 %v1057, 96
        %v1802 = vpop.permute.xlu0 %1801
        %1803 = vrot.lane.b32.xlu0 %v1060, 96
        %v1804 = vpop.permute.xlu0 %1803
        %1805 = vrot.lane.b32.xlu0 %v1062, 96
        %v1806 = vpop.permute.xlu0 %1805
        %1807 = vrot.lane.b32.xlu0 %v1065, 96
        %v1808 = vpop.permute.xlu0 %1807
        %1809 = vrot.lane.b32.xlu0 %v1067, 96
        %v1810 = vpop.permute.xlu0 %1809
        %1811 = vrot.lane.b32.xlu0 %v1070, 96
        %v1812 = vpop.permute.xlu0 %1811
        %1813 = vrot.lane.b32.xlu0 %v1072, 96
        %v1814 = vpop.permute.xlu0 %1813
        %1815 = vrot.lane.b32.xlu0 %v1075, 96
        %v1816 = vpop.permute.xlu0 %1815
        %1817 = vrot.lane.b32.xlu0 %v1077, 96
        %v1818 = vpop.permute.xlu0 %1817
        %1819 = vrot.lane.b32.xlu0 %v1080, 96
        %v1820 = vpop.permute.xlu0 %1819
        %1821 = vrot.lane.b32.xlu0 %v1082, 96
        %v1822 = vpop.permute.xlu0 %1821
        %1823 = vrot.lane.b32.xlu0 %v1085, 96
        %v1824 = vpop.permute.xlu0 %1823
        %1825 = vrot.lane.b32.xlu0 %v1087, 96
        %v1826 = vpop.permute.xlu0 %1825
        %1827 = vrot.lane.b32.xlu0 %v1090, 96
        %v1828 = vpop.permute.xlu0 %1827
        %1829 = vrot.lane.b32.xlu0 %v1092, 96
        %v1830 = vpop.permute.xlu0 %1829
        %1831 = vrot.lane.b32.xlu0 %v1095, 96
        %v1832 = vpop.permute.xlu0 %1831
        %1833 = vrot.lane.b32.xlu0 %v1097, 96
        %v1834 = vpop.permute.xlu0 %1833
        %1835 = vrot.lane.b32.xlu0 %v1100, 96
        %v1836 = vpop.permute.xlu0 %1835
        %1837 = vrot.lane.b32.xlu0 %v1102, 96
        %v1838 = vpop.permute.xlu0 %1837
        %vm1871 = vcmask 490496
        %v1872 = vsel %vm1871, %v331, %v1104
        %v1873 = vsel %vm1871, %v332, %v1106
        %v1874 = vsel %vm1871, %v334, %v1108
        %v1875 = vsel %vm1871, %v335, %v1110
        %v1876 = vsel %vm1871, %v337, %v1112
        %v1877 = vsel %vm1871, %v338, %v1114
        %v1878 = vsel %vm1871, %v340, %v1116
        %v1879 = vsel %vm1871, %v341, %v1118
        %v1880 = vsel %vm1871, %v343, %v1120
        %v1881 = vsel %vm1871, %v344, %v1122
        %v1882 = vsel %vm1871, %v346, %v1124
        %v1883 = vsel %vm1871, %v347, %v1126
        %v1884 = vsel %vm1871, %v349, %v1128
        %v1885 = vsel %vm1871, %v350, %v1130
        %v1886 = vsel %vm1871, %v352, %v1132
        %v1887 = vsel %vm1871, %v353, %v1134
        %v1888 = vsel %vm1871, %v355, %v1136
        %v1889 = vsel %vm1871, %v356, %v1138
        %v1890 = vsel %vm1871, %v358, %v1140
        %v1891 = vsel %vm1871, %v359, %v1142
        %v1892 = vsel %vm1871, %v361, %v1144
        %v1893 = vsel %vm1871, %v362, %v1146
        %v1894 = vsel %vm1871, %v364, %v1148
        %v1895 = vsel %vm1871, %v365, %v1150
        %v1896 = vsel %vm1871, %v367, %v1152
        %v1897 = vsel %vm1871, %v368, %v1154
        %v1898 = vsel %vm1871, %v370, %v1156
        %v1899 = vsel %vm1871, %v371, %v1158
        %v1900 = vsel %vm1871, %v373, %v1160
        %v1901 = vsel %vm1871, %v374, %v1162
        %v1902 = vsel %vm1871, %v376, %v1164
        %v1903 = vsel %vm1871, %v377, %v1166
        %vm1904 = vcmask 982016
        %v1905 = vsel %vm1904, %v1872, %v1200
        %v1906 = vsel %vm1904, %v1873, %v1202
        %v1907 = vsel %vm1904, %v1874, %v1204
        %v1908 = vsel %vm1904, %v1875, %v1206
        %v1909 = vsel %vm1904, %v1876, %v1208
        %v1910 = vsel %vm1904, %v1877, %v1210
        %v1911 = vsel %vm1904, %v1878, %v1212
        %v1912 = vsel %vm1904, %v1879, %v1214
        %v1913 = vsel %vm1904, %v1880, %v1216
        %v1914 = vsel %vm1904, %v1881, %v1218
        %v1915 = vsel %vm1904, %v1882, %v1220
        %v1916 = vsel %vm1904, %v1883, %v1222
        %v1917 = vsel %vm1904, %v1884, %v1224
        %v1918 = vsel %vm1904, %v1885, %v1226
        %v1919 = vsel %vm1904, %v1886, %v1228
        %v1920 = vsel %vm1904, %v1887, %v1230
        %v1921 = vsel %vm1904, %v1888, %v1232
        %v1922 = vsel %vm1904, %v1889, %v1234
        %v1923 = vsel %vm1904, %v1890, %v1236
        %v1924 = vsel %vm1904, %v1891, %v1238
        %v1925 = vsel %vm1904, %v1892, %v1240
        %v1926 = vsel %vm1904, %v1893, %v1242
        %v1927 = vsel %vm1904, %v1894, %v1244
        %v1928 = vsel %vm1904, %v1895, %v1246
        %v1929 = vsel %vm1904, %v1896, %v1248
        %v1930 = vsel %vm1904, %v1897, %v1250
        %v1931 = vsel %vm1904, %v1898, %v1252
        %v1932 = vsel %vm1904, %v1899, %v1254
        %v1933 = vsel %vm1904, %v1900, %v1256
        %v1934 = vsel %vm1904, %v1901, %v1258
        %v1935 = vsel %vm1904, %v1902, %v1260
        %v1936 = vsel %vm1904, %v1903, %v1262
        %vm1937 = vcmask 424960
        %v1938 = vsel %vm1937, %v1200, %v1296
        %v1939 = vsel %vm1937, %v1202, %v1298
        %v1940 = vsel %vm1937, %v1204, %v1300
        %v1941 = vsel %vm1937, %v1206, %v1302
        %v1942 = vsel %vm1937, %v1208, %v1304
        %v1943 = vsel %vm1937, %v1210, %v1306
        %v1944 = vsel %vm1937, %v1212, %v1308
        %v1945 = vsel %vm1937, %v1214, %v1310
        %v1946 = vsel %vm1937, %v1216, %v1312
        %v1947 = vsel %vm1937, %v1218, %v1314
        %v1948 = vsel %vm1937, %v1220, %v1316
        %v1949 = vsel %vm1937, %v1222, %v1318
        %v1950 = vsel %vm1937, %v1224, %v1320
        %v1951 = vsel %vm1937, %v1226, %v1322
        %v1952 = vsel %vm1937, %v1228, %v1324
        %v1953 = vsel %vm1937, %v1230, %v1326
        %v1954 = vsel %vm1937, %v1232, %v1328
        %v1955 = vsel %vm1937, %v1234, %v1330
        %v1956 = vsel %vm1937, %v1236, %v1332
        %v1957 = vsel %vm1937, %v1238, %v1334
        %v1958 = vsel %vm1937, %v1240, %v1336
        %v1959 = vsel %vm1937, %v1242, %v1338
        %v1960 = vsel %vm1937, %v1244, %v1340
        %v1961 = vsel %vm1937, %v1246, %v1342
        %v1962 = vsel %vm1937, %v1248, %v1344
        %v1963 = vsel %vm1937, %v1250, %v1346
        %v1964 = vsel %vm1937, %v1252, %v1348
        %v1965 = vsel %vm1937, %v1254, %v1350
        %v1966 = vsel %vm1937, %v1256, %v1352
        %v1967 = vsel %vm1937, %v1258, %v1354
        %v1968 = vsel %vm1937, %v1260, %v1356
        %v1969 = vsel %vm1937, %v1262, %v1358
        %vm1970 = vcmask 916480
        %v1971 = vsel %vm1970, %v1938, %v1392
        %v1972 = vsel %vm1970, %v1939, %v1394
        %v1973 = vsel %vm1970, %v1940, %v1396
        %v1974 = vsel %vm1970, %v1941, %v1398
        %v1975 = vsel %vm1970, %v1942, %v1400
        %v1976 = vsel %vm1970, %v1943, %v1402
        %v1977 = vsel %vm1970, %v1944, %v1404
        %v1978 = vsel %vm1970, %v1945, %v1406
        %v1979 = vsel %vm1970, %v1946, %v1408
        %v1980 = vsel %vm1970, %v1947, %v1410
        %v1981 = vsel %vm1970, %v1948, %v1412
        %v1982 = vsel %vm1970, %v1949, %v1414
        %v1983 = vsel %vm1970, %v1950, %v1416
        %v1984 = vsel %vm1970, %v1951, %v1418
        %v1985 = vsel %vm1970, %v1952, %v1420
        %v1986 = vsel %vm1970, %v1953, %v1422
        %v1987 = vsel %vm1970, %v1954, %v1424
        %v1988 = vsel %vm1970, %v1955, %v1426
        %v1989 = vsel %vm1970, %v1956, %v1428
        %v1990 = vsel %vm1970, %v1957, %v1430
        %v1991 = vsel %vm1970, %v1958, %v1432
        %v1992 = vsel %vm1970, %v1959, %v1434
        %v1993 = vsel %vm1970, %v1960, %v1436
        %v1994 = vsel %vm1970, %v1961, %v1438
        %v1995 = vsel %vm1970, %v1962, %v1440
        %v1996 = vsel %vm1970, %v1963, %v1442
        %v1997 = vsel %vm1970, %v1964, %v1444
        %v1998 = vsel %vm1970, %v1965, %v1446
        %v1999 = vsel %vm1970, %v1966, %v1448
        %v2000 = vsel %vm1970, %v1967, %v1450
        %v2001 = vsel %vm1970, %v1968, %v1452
        %v2002 = vsel %vm1970, %v1969, %v1454
        %vm2003 = vcmask 359424
        %v2004 = vsel %vm2003, %v1392, %v1488
        %v2005 = vsel %vm2003, %v1394, %v1490
        %v2006 = vsel %vm2003, %v1396, %v1492
        %v2007 = vsel %vm2003, %v1398, %v1494
        %v2008 = vsel %vm2003, %v1400, %v1496
        %v2009 = vsel %vm2003, %v1402, %v1498
        %v2010 = vsel %vm2003, %v1404, %v1500
        %v2011 = vsel %vm2003, %v1406, %v1502
        %v2012 = vsel %vm2003, %v1408, %v1504
        %v2013 = vsel %vm2003, %v1410, %v1506
        %v2014 = vsel %vm2003, %v1412, %v1508
        %v2015 = vsel %vm2003, %v1414, %v1510
        %v2016 = vsel %vm2003, %v1416, %v1512
        %v2017 = vsel %vm2003, %v1418, %v1514
        %v2018 = vsel %vm2003, %v1420, %v1516
        %v2019 = vsel %vm2003, %v1422, %v1518
        %v2020 = vsel %vm2003, %v1424, %v1520
        %v2021 = vsel %vm2003, %v1426, %v1522
        %v2022 = vsel %vm2003, %v1428, %v1524
        %v2023 = vsel %vm2003, %v1430, %v1526
        %v2024 = vsel %vm2003, %v1432, %v1528
        %v2025 = vsel %vm2003, %v1434, %v1530
        %v2026 = vsel %vm2003, %v1436, %v1532
        %v2027 = vsel %vm2003, %v1438, %v1534
        %v2028 = vsel %vm2003, %v1440, %v1536
        %v2029 = vsel %vm2003, %v1442, %v1538
        %v2030 = vsel %vm2003, %v1444, %v1540
        %v2031 = vsel %vm2003, %v1446, %v1542
        %v2032 = vsel %vm2003, %v1448, %v1544
        %v2033 = vsel %vm2003, %v1450, %v1546
        %v2034 = vsel %vm2003, %v1452, %v1548
        %v2035 = vsel %vm2003, %v1454, %v1550
        %vm2036 = vcmask 850944
        %v2037 = vsel %vm2036, %v2004, %v1584
        %v2038 = vsel %vm2036, %v2005, %v1586
        %v2039 = vsel %vm2036, %v2006, %v1588
        %v2040 = vsel %vm2036, %v2007, %v1590
        %v2041 = vsel %vm2036, %v2008, %v1592
        %v2042 = vsel %vm2036, %v2009, %v1594
        %v2043 = vsel %vm2036, %v2010, %v1596
        %v2044 = vsel %vm2036, %v2011, %v1598
        %v2045 = vsel %vm2036, %v2012, %v1600
        %v2046 = vsel %vm2036, %v2013, %v1602
        %v2047 = vsel %vm2036, %v2014, %v1604
        %v2048 = vsel %vm2036, %v2015, %v1606
        %v2049 = vsel %vm2036, %v2016, %v1608
        %v2050 = vsel %vm2036, %v2017, %v1610
        %v2051 = vsel %vm2036, %v2018, %v1612
        %v2052 = vsel %vm2036, %v2019, %v1614
        %v2053 = vsel %vm2036, %v2020, %v1616
        %v2054 = vsel %vm2036, %v2021, %v1618
        %v2055 = vsel %vm2036, %v2022, %v1620
        %v2056 = vsel %vm2036, %v2023, %v1622
        %v2057 = vsel %vm2036, %v2024, %v1624
        %v2058 = vsel %vm2036, %v2025, %v1626
        %v2059 = vsel %vm2036, %v2026, %v1628
        %v2060 = vsel %vm2036, %v2027, %v1630
        %v2061 = vsel %vm2036, %v2028, %v1632
        %v2062 = vsel %vm2036, %v2029, %v1634
        %v2063 = vsel %vm2036, %v2030, %v1636
        %v2064 = vsel %vm2036, %v2031, %v1638
        %v2065 = vsel %vm2036, %v2032, %v1640
        %v2066 = vsel %vm2036, %v2033, %v1642
        %v2067 = vsel %vm2036, %v2034, %v1644
        %v2068 = vsel %vm2036, %v2035, %v1646
        %vm2069 = vcmask 293888
        %v2070 = vsel %vm2069, %v1584, %v1680
        %v2071 = vsel %vm2069, %v1586, %v1682
        %v2072 = vsel %vm2069, %v1588, %v1684
        %v2073 = vsel %vm2069, %v1590, %v1686
        %v2074 = vsel %vm2069, %v1592, %v1688
        %v2075 = vsel %vm2069, %v1594, %v1690
        %v2076 = vsel %vm2069, %v1596, %v1692
        %v2077 = vsel %vm2069, %v1598, %v1694
        %v2078 = vsel %vm2069, %v1600, %v1696
        %v2079 = vsel %vm2069, %v1602, %v1698
        %v2080 = vsel %vm2069, %v1604, %v1700
        %v2081 = vsel %vm2069, %v1606, %v1702
        %v2082 = vsel %vm2069, %v1608, %v1704
        %v2083 = vsel %vm2069, %v1610, %v1706
        %v2084 = vsel %vm2069, %v1612, %v1708
        %v2085 = vsel %vm2069, %v1614, %v1710
        %v2086 = vsel %vm2069, %v1616, %v1712
        %v2087 = vsel %vm2069, %v1618, %v1714
        %v2088 = vsel %vm2069, %v1620, %v1716
        %v2089 = vsel %vm2069, %v1622, %v1718
        %v2090 = vsel %vm2069, %v1624, %v1720
        %v2091 = vsel %vm2069, %v1626, %v1722
        %v2092 = vsel %vm2069, %v1628, %v1724
        %v2093 = vsel %vm2069, %v1630, %v1726
        %v2094 = vsel %vm2069, %v1632, %v1728
        %v2095 = vsel %vm2069, %v1634, %v1730
        %v2096 = vsel %vm2069, %v1636, %v1732
        %v2097 = vsel %vm2069, %v1638, %v1734
        %v2098 = vsel %vm2069, %v1640, %v1736
        %v2099 = vsel %vm2069, %v1642, %v1738
        %v2100 = vsel %vm2069, %v1644, %v1740
        %v2101 = vsel %vm2069, %v1646, %v1742
        %vm2102 = vcmask 785408
        %v2103 = vsel %vm2102, %v2070, %v1776
        %v2104 = vsel %vm2102, %v2071, %v1778
        %v2105 = vsel %vm2102, %v2072, %v1780
        %v2106 = vsel %vm2102, %v2073, %v1782
        %v2107 = vsel %vm2102, %v2074, %v1784
        %v2108 = vsel %vm2102, %v2075, %v1786
        %v2109 = vsel %vm2102, %v2076, %v1788
        %v2110 = vsel %vm2102, %v2077, %v1790
        %v2111 = vsel %vm2102, %v2078, %v1792
        %v2112 = vsel %vm2102, %v2079, %v1794
        %v2113 = vsel %vm2102, %v2080, %v1796
        %v2114 = vsel %vm2102, %v2081, %v1798
        %v2115 = vsel %vm2102, %v2082, %v1800
        %v2116 = vsel %vm2102, %v2083, %v1802
        %v2117 = vsel %vm2102, %v2084, %v1804
        %v2118 = vsel %vm2102, %v2085, %v1806
        %v2119 = vsel %vm2102, %v2086, %v1808
        %v2120 = vsel %vm2102, %v2087, %v1810
        %v2121 = vsel %vm2102, %v2088, %v1812
        %v2122 = vsel %vm2102, %v2089, %v1814
        %v2123 = vsel %vm2102, %v2090, %v1816
        %v2124 = vsel %vm2102, %v2091, %v1818
        %v2125 = vsel %vm2102, %v2092, %v1820
        %v2126 = vsel %vm2102, %v2093, %v1822
        %v2127 = vsel %vm2102, %v2094, %v1824
        %v2128 = vsel %vm2102, %v2095, %v1826
        %v2129 = vsel %vm2102, %v2096, %v1828
        %v2130 = vsel %vm2102, %v2097, %v1830
        %v2131 = vsel %vm2102, %v2098, %v1832
        %v2132 = vsel %vm2102, %v2099, %v1834
        %v2133 = vsel %vm2102, %v2100, %v1836
        %v2134 = vsel %vm2102, %v2101, %v1838
        %v2135 = vld [vmem:[%s1] sm:$0xff]
        %v2136 = vld [vmem:[%s1 + $0x8] sm:$0xff]
        %v2137 = vld [vmem:[%s1 + $0x10] sm:$0xff]
        %v2138 = vld [vmem:[%s1 + $0x18] sm:$0xff]
        %v2139 = vld [vmem:[%s1 + $0x20] sm:$0xff]
        %v2140 = vld [vmem:[%s1 + $0x28] sm:$0xff]
        %v2141 = vld [vmem:[%s1 + $0x30] sm:$0xff]
        %v2142 = vld [vmem:[%s1 + $0x38] sm:$0xff]
        %v2143 = vld [vmem:[%s1 + $0x40] sm:$0xff]
        %v2144 = vld [vmem:[%s1 + $0x48] sm:$0xff]
        %v2145 = vld [vmem:[%s1 + $0x50] sm:$0xff]
        %v2146 = vld [vmem:[%s1 + $0x58] sm:$0xff]
        %v2147 = vld [vmem:[%s1 + $0x60] sm:$0xff]
        %v2148 = vld [vmem:[%s1 + $0x68] sm:$0xff]
        %v2149 = vld [vmem:[%s1 + $0x70] sm:$0xff]
        %v2150 = vld [vmem:[%s1 + $0x78] sm:$0xff]
        %v2151 = vld [vmem:[%s1 + $0x80] sm:$0xff]
        %v2152 = vld [vmem:[%s1 + $0x88] sm:$0xff]
        %v2153 = vld [vmem:[%s1 + $0x90] sm:$0xff]
        %v2154 = vld [vmem:[%s1 + $0x98] sm:$0xff]
        %v2155 = vld [vmem:[%s1 + $0xa0] sm:$0xff]
        %v2156 = vld [vmem:[%s1 + $0xa8] sm:$0xff]
        %v2157 = vld [vmem:[%s1 + $0xb0] sm:$0xff]
        %v2158 = vld [vmem:[%s1 + $0xb8] sm:$0xff]
        %v2159 = vld [vmem:[%s1 + $0xc0] sm:$0xff]
        %v2160 = vld [vmem:[%s1 + $0xc8] sm:$0xff]
        %v2161 = vld [vmem:[%s1 + $0xd0] sm:$0xff]
        %v2162 = vld [vmem:[%s1 + $0xd8] sm:$0xff]
        %v2163 = vld [vmem:[%s1 + $0xe0] sm:$0xff]
        %v2164 = vld [vmem:[%s1 + $0xe8] sm:$0xff]
        %v2165 = vld [vmem:[%s1 + $0xf0] sm:$0xff]
        %v2166 = vld [vmem:[%s1 + $0xf8] sm:$0xff]
        %v2167 = vld [vmem:[%s1 + $0x100] sm:$0xff]
        %v2168 = vld [vmem:[%s1 + $0x108] sm:$0xff]
        %v2169 = vld [vmem:[%s1 + $0x110] sm:$0xff]
        %v2170 = vld [vmem:[%s1 + $0x118] sm:$0xff]
        %v2171 = vld [vmem:[%s1 + $0x120] sm:$0xff]
        %v2172 = vld [vmem:[%s1 + $0x128] sm:$0xff]
        %v2173 = vld [vmem:[%s1 + $0x130] sm:$0xff]
        %v2174 = vld [vmem:[%s1 + $0x138] sm:$0xff]
        %v2175 = vld [vmem:[%s1 + $0x140] sm:$0xff]
        %v2176 = vld [vmem:[%s1 + $0x148] sm:$0xff]
        %v2177 = vld [vmem:[%s1 + $0x150] sm:$0xff]
        %v2178 = vld [vmem:[%s1 + $0x158] sm:$0xff]
        %v2179 = vld [vmem:[%s1 + $0x160] sm:$0xff]
        %v2180 = vld [vmem:[%s1 + $0x168] sm:$0xff]
        %v2181 = vld [vmem:[%s1 + $0x170] sm:$0xff]
        %v2182 = vld [vmem:[%s1 + $0x178] sm:$0xff]
        %v2183 = vld [vmem:[%s1 + $0x180] sm:$0xff]
        %v2184 = vld [vmem:[%s1 + $0x188] sm:$0xff]
        %v2185 = vld [vmem:[%s1 + $0x190] sm:$0xff]
        %v2186 = vld [vmem:[%s1 + $0x198] sm:$0xff]
        %v2187 = vld [vmem:[%s1 + $0x1a0] sm:$0xff]
        %v2188 = vld [vmem:[%s1 + $0x1a8] sm:$0xff]
        %v2189 = vld [vmem:[%s1 + $0x1b0] sm:$0xff]
        %v2190 = vld [vmem:[%s1 + $0x1b8] sm:$0xff]
        %v2191 = vld [vmem:[%s1 + $0x1c0] sm:$0xff]
        %v2192 = vld [vmem:[%s1 + $0x1c8] sm:$0xff]
        %v2193 = vld [vmem:[%s1 + $0x1d0] sm:$0xff]
        %v2194 = vld [vmem:[%s1 + $0x1d8] sm:$0xff]
        %v2195 = vld [vmem:[%s1 + $0x1e0] sm:$0xff]
        %v2196 = vld [vmem:[%s1 + $0x1e8] sm:$0xff]
        %v2197 = vld [vmem:[%s1 + $0x1f0] sm:$0xff]
        %v2198 = vld [vmem:[%s1 + $0x1f8] sm:$0xff]
        %v2199 = vld [vmem:[%s1 + $0x200] sm:$0xff]
        %v2200 = vld [vmem:[%s1 + $0x208] sm:$0xff]
        %v2201 = vld [vmem:[%s1 + $0x210] sm:$0xff]
        %v2202 = vld [vmem:[%s1 + $0x218] sm:$0xf]
        %v2203 = vld [vmem:[%s2] sm:$0x1]
        %v2205 = vlaneseq
        %v2206 = vshrl.u32 %v2205, 7
        %v2207 = vsub.s32 0, %v2206
        %v2208 = vrot.slane %v2203, %v2207
        %vm2210 = vcmask 228352
        %v2211 = vsel %vm2210, %v1776, 0
        %v2213 = vsel %vm2210, %v1778, 0
        %v2215 = vsel %vm2210, %v1780, 0
        %v2217 = vsel %vm2210, %v1782, 0
        %v2219 = vsel %vm2210, %v1784, 0
        %v2221 = vsel %vm2210, %v1786, 0
        %v2223 = vsel %vm2210, %v1788, 0
        %v2225 = vsel %vm2210, %v1790, 0
        %v2227 = vsel %vm2210, %v1792, 0
        %v2229 = vsel %vm2210, %v1794, 0
        %v2231 = vsel %vm2210, %v1796, 0
        %v2233 = vsel %vm2210, %v1798, 0
        %v2235 = vsel %vm2210, %v1800, 0
        %v2237 = vsel %vm2210, %v1802, 0
        %v2239 = vsel %vm2210, %v1804, 0
        %v2241 = vsel %vm2210, %v1806, 0
        %v2243 = vsel %vm2210, %v1808, 0
        %v2245 = vsel %vm2210, %v1810, 0
        %v2247 = vsel %vm2210, %v1812, 0
        %v2249 = vsel %vm2210, %v1814, 0
        %v2251 = vsel %vm2210, %v1816, 0
        %v2253 = vsel %vm2210, %v1818, 0
        %v2255 = vsel %vm2210, %v1820, 0
        %v2257 = vsel %vm2210, %v1822, 0
        %v2259 = vsel %vm2210, %v1824, 0
        %v2261 = vsel %vm2210, %v1826, 0
        %v2263 = vsel %vm2210, %v1828, 0
        %v2265 = vsel %vm2210, %v1830, 0
        %v2267 = vsel %vm2210, %v1832, 0
        %v2269 = vsel %vm2210, %v1834, 0
        %v2271 = vsel %vm2210, %v1836, 0
        %v2273 = vsel %vm2210, %v1838, 0
        %vm2275 = vcmask 1043456
        %v2277 = vsel %vm2275, %v2202, 0
        %2279 = vmatprep.subr.mxu0 0.0
        %2280 = vmatpush1.msra.mxu0 %v2135
        %2281 = vmatprep.subr.mxu0 0.0
        %2282 = vmatpush1.msra.mxu0 %v2136
        %2283 = vmatprep.subr.mxu0 0.0
        %2284 = vmatpush1.msra.mxu0 %v2137
        %2285 = vmatprep.subr.mxu0 0.0
        %2286 = vmatpush1.msra.mxu0 %v2138
        %2287 = vmatprep.subr.mxu0 0.0
        %2288 = vmatpush1.msra.mxu0 %v2139
        %2289 = vmatprep.subr.mxu0 0.0
        %2290 = vmatpush1.msra.mxu0 %v2140
        %2291 = vmatprep.subr.mxu0 0.0
        %2292 = vmatpush1.msra.mxu0 %v2141
        %2293 = vmatprep.subr.mxu0 0.0
        %2294 = vmatpush1.msra.mxu0 %v2142
        %2295 = vmatprep.subr.mxu0 0.0
        %2296 = vmatpush1.msra.mxu0 %v2143
        %2297 = vmatprep.subr.mxu0 0.0
        %2298 = vmatpush1.msra.mxu0 %v2144
        %2299 = vmatprep.subr.mxu0 0.0
        %2300 = vmatpush1.msra.mxu0 %v2145
        %2301 = vmatprep.subr.mxu0 0.0
        %2302 = vmatpush1.msra.mxu0 %v2146
        %2303 = vmatprep.subr.mxu0 0.0
        %2304 = vmatpush1.msra.mxu0 %v2147
        %2305 = vmatprep.subr.mxu0 0.0
        %2306 = vmatpush1.msra.mxu0 %v2148
        %2307 = vmatprep.subr.mxu0 0.0
        %2308 = vmatpush1.msra.mxu0 %v2149
        %2309 = vmatprep.subr.mxu0 0.0
        %2310 = vmatpush1.msra.mxu0 %v2150
        %2311 = vmatprep.subr.mxu0 0.0
        %2312 = vmatpush1.msra.mxu0 %v2151
        %2313 = vmatprep.subr.mxu0 0.0
        %2314 = vmatpush1.msra.mxu0 %v2152
        %2315 = vmatprep.subr.mxu0 0.0
        %2316 = vmatpush1.msra.mxu0 %v2153
        %2317 = vmatprep.subr.mxu0 0.0
        %2318 = vmatpush1.msra.mxu0 %v2154
        %2319 = vmatprep.subr.mxu0 0.0
        %2320 = vmatpush1.msra.mxu0 %v2155
        %2321 = vmatprep.subr.mxu0 0.0
        %2322 = vmatpush1.msra.mxu0 %v2156
        %2323 = vmatprep.subr.mxu0 0.0
        %2324 = vmatpush1.msra.mxu0 %v2157
        %2325 = vmatprep.subr.mxu0 0.0
        %2326 = vmatpush1.msra.mxu0 %v2158
        %2327 = vmatprep.subr.mxu0 0.0
        %2328 = vmatpush1.msra.mxu0 %v2159
        %2329 = vmatprep.subr.mxu0 0.0
        %2330 = vmatpush1.msra.mxu0 %v2160
        %2331 = vmatprep.subr.mxu0 0.0
        %2332 = vmatpush1.msra.mxu0 %v2161
        %2333 = vmatprep.subr.mxu0 0.0
        %2334 = vmatpush1.msra.mxu0 %v2162
        %2335 = vmatprep.subr.mxu0 0.0
        %2336 = vmatpush1.msra.mxu0 %v2163
        %2337 = vmatprep.subr.mxu0 0.0
        %2338 = vmatpush1.msra.mxu0 %v2164
        %2339 = vmatprep.subr.mxu0 0.0
        %2340 = vmatpush1.msra.mxu0 %v2165
        %2341 = vmatprep.subr.mxu0 0.0
        %2342 = vmatpush1.msra.mxu0 %v2166
        %2343 = vmatprep.mubr.f32.mxu0 %v1971
        %2344 = vmatmul.mubr.f32.gmra.mrb[0].mxu0 %v1905
        %v2345 = vpop.f32.mrb[0].mxu0
        %v2346 = vadd.f32 %v2208, %v2345
        %v2347 = vpop.f32.mrb[0].mxu0
        %2348 = vmatprep.mubr.f32.mxu0 %v1972
        %2349 = vmatmul.mubr.f32.gmra.mrb[0].mxu0 %v1906
        %v2350 = vpop.f32.mrb[0].mxu0
        %v2351 = vadd.f32 %v2208, %v2350
        %v2352 = vpop.f32.mrb[0].mxu0
        %2353 = vmatprep.mubr.f32.mxu0 %v1973
        %2354 = vmatmul.mubr.f32.gmra.mrb[0].mxu0 %v1907
        %v2355 = vpop.f32.mrb[0].mxu0
        %v2356 = vadd.f32 %v2208, %v2355
        %v2357 = vpop.f32.mrb[0].mxu0
        %2358 = vmatprep.mubr.f32.mxu0 %v1974
        %2359 = vmatmul.mubr.f32.gmra.mrb[0].mxu0 %v1908
        %v2360 = vpop.f32.mrb[0].mxu0
        %v2361 = vadd.f32 %v2208, %v2360
        %v2362 = vpop.f32.mrb[0].mxu0
        %2363 = vmatprep.mubr.f32.mxu0 %v1975
        %2364 = vmatmul.mubr.f32.gmra.mrb[0].mxu0 %v1909
        %v2365 = vpop.f32.mrb[0].mxu0
        %v2366 = vadd.f32 %v2208, %v2365
        %v2367 = vpop.f32.mrb[0].mxu0
        %2368 = vmatprep.mubr.f32.mxu0 %v1976
        %2369 = vmatmul.mubr.f32.gmra.mrb[0].mxu0 %v1910
        %v2370 = vpop.f32.mrb[0].mxu0
        %v2371 = vadd.f32 %v2208, %v2370
        %v2372 = vpop.f32.mrb[0].mxu0
        %2373 = vmatprep.mubr.f32.mxu0 %v1977
        %2374 = vmatmul.mubr.f32.gmra.mrb[0].mxu0 %v1911
        %v2375 = vpop.f32.mrb[0].mxu0
        %v2376 = vadd.f32 %v2208, %v2375
        %v2377 = vpop.f32.mrb[0].mxu0
        %2378 = vmatprep.mubr.f32.mxu0 %v1978
        %2379 = vmatmul.mubr.f32.gmra.mrb[0].mxu0 %v1912
        %v2380 = vpop.f32.mrb[0].mxu0
        %v2381 = vadd.f32 %v2208, %v2380
        %v2382 = vpop.f32.mrb[0].mxu0
        %2383 = vmatprep.mubr.f32.mxu0 %v1979
        %2384 = vmatmul.mubr.f32.gmra.mrb[0].mxu0 %v1913
        %v2385 = vpop.f32.mrb[0].mxu0
        %v2386 = vadd.f32 %v2208, %v2385
        %v2387 = vpop.f32.mrb[0].mxu0
        %2388 = vmatprep.mubr.f32.mxu0 %v1980
        %2389 = vmatmul.mubr.f32.gmra.mrb[0].mxu0 %v1914
        %v2390 = vpop.f32.mrb[0].mxu0
        %v2391 = vadd.f32 %v2208, %v2390
        %v2392 = vpop.f32.mrb[0].mxu0
        %2393 = vmatprep.mubr.f32.mxu0 %v1981
        %2394 = vmatmul.mubr.f32.gmra.mrb[0].mxu0 %v1915
        %v2395 = vpop.f32.mrb[0].mxu0
        %v2396 = vadd.f32 %v2208, %v2395
        %v2397 = vpop.f32.mrb[0].mxu0
        %2398 = vmatprep.mubr.f32.mxu0 %v1982
        %2399 = vmatmul.mubr.f32.gmra.mrb[0].mxu0 %v1916
        %v2400 = vpop.f32.mrb[0].mxu0
        %v2401 = vadd.f32 %v2208, %v2400
        %v2402 = vpop.f32.mrb[0].mxu0
        %2403 = vmatprep.mubr.f32.mxu0 %v1983
        %2404 = vmatmul.mubr.f32.gmra.mrb[0].mxu0 %v1917
        %v2405 = vpop.f32.mrb[0].mxu0
        %v2406 = vadd.f32 %v2208, %v2405
        %v2407 = vpop.f32.mrb[0].mxu0
        %2408 = vmatprep.mubr.f32.mxu0 %v1984
        %2409 = vmatmul.mubr.f32.gmra.mrb[0].mxu0 %v1918
        %v2410 = vpop.f32.mrb[0].mxu0
        %v2411 = vadd.f32 %v2208, %v2410
        %v2412 = vpop.f32.mrb[0].mxu0
        %2413 = vmatprep.mubr.f32.mxu0 %v1985
        %2414 = vmatmul.mubr.f32.gmra.mrb[0].mxu0 %v1919
        %v2415 = vpop.f32.mrb[0].mxu0
        %v2416 = vadd.f32 %v2208, %v2415
        %v2417 = vpop.f32.mrb[0].mxu0
        %2418 = vmatprep.mubr.f32.mxu0 %v1986
        %2419 = vmatmul.mubr.f32.gmra.mrb[0].mxu0 %v1920
        %v2420 = vpop.f32.mrb[0].mxu0
        %v2421 = vadd.f32 %v2208, %v2420
        %v2422 = vpop.f32.mrb[0].mxu0
        %2423 = vmatprep.mubr.f32.mxu0 %v1987
        %2424 = vmatmul.mubr.f32.gmra.mrb[0].mxu0 %v1921
        %v2425 = vpop.f32.mrb[0].mxu0
        %v2426 = vadd.f32 %v2208, %v2425
        %v2427 = vpop.f32.mrb[0].mxu0
        %2428 = vmatprep.mubr.f32.mxu0 %v1988
        %2429 = vmatmul.mubr.f32.gmra.mrb[0].mxu0 %v1922
        %v2430 = vpop.f32.mrb[0].mxu0
        %v2431 = vadd.f32 %v2208, %v2430
        %v2432 = vpop.f32.mrb[0].mxu0
        %2433 = vmatprep.mubr.f32.mxu0 %v1989
        %2434 = vmatmul.mubr.f32.gmra.mrb[0].mxu0 %v1923
        %v2435 = vpop.f32.mrb[0].mxu0
        %v2436 = vadd.f32 %v2208, %v2435
        %v2437 = vpop.f32.mrb[0].mxu0
        %2438 = vmatprep.mubr.f32.mxu0 %v1990
        %2439 = vmatmul.mubr.f32.gmra.mrb[0].mxu0 %v1924
        %v2440 = vpop.f32.mrb[0].mxu0
        %v2441 = vadd.f32 %v2208, %v2440
        %v2442 = vpop.f32.mrb[0].mxu0
        %2443 = vmatprep.mubr.f32.mxu0 %v1991
        %2444 = vmatmul.mubr.f32.gmra.mrb[0].mxu0 %v1925
        %v2445 = vpop.f32.mrb[0].mxu0
        %v2446 = vadd.f32 %v2208, %v2445
        %v2447 = vpop.f32.mrb[0].mxu0
        %2448 = vmatprep.mubr.f32.mxu0 %v1992
        %2449 = vmatmul.mubr.f32.gmra.mrb[0].mxu0 %v1926
        %v2450 = vpop.f32.mrb[0].mxu0
        %v2451 = vadd.f32 %v2208, %v2450
        %v2452 = vpop.f32.mrb[0].mxu0
        %2453 = vmatprep.mubr.f32.mxu0 %v1993
        %2454 = vmatmul.mubr.f32.gmra.mrb[0].mxu0 %v1927
        %v2455 = vpop.f32.mrb[0].mxu0
        %v2456 = vadd.f32 %v2208, %v2455
        %v2457 = vpop.f32.mrb[0].mxu0
        %2458 = vmatprep.mubr.f32.mxu0 %v1994
        %2459 = vmatmul.mubr.f32.gmra.mrb[0].mxu0 %v1928
        %v2460 = vpop.f32.mrb[0].mxu0
        %v2461 = vadd.f32 %v2208, %v2460
        %v2462 = vpop.f32.mrb[0].mxu0
        %2463 = vmatprep.mubr.f32.mxu0 %v1995
        %2464 = vmatmul.mubr.f32.gmra.mrb[0].mxu0 %v1929
        %v2465 = vpop.f32.mrb[0].mxu0
        %v2466 = vadd.f32 %v2208, %v2465
        %v2467 = vpop.f32.mrb[0].mxu0
        %2468 = vmatprep.mubr.f32.mxu0 %v1996
        %2469 = vmatmul.mubr.f32.gmra.mrb[0].mxu0 %v1930
        %v2470 = vpop.f32.mrb[0].mxu0
        %v2471 = vadd.f32 %v2208, %v2470
        %v2472 = vpop.f32.mrb[0].mxu0
        %2473 = vmatprep.mubr.f32.mxu0 %v1997
        %2474 = vmatmul.mubr.f32.gmra.mrb[0].mxu0 %v1931
        %v2475 = vpop.f32.mrb[0].mxu0
        %v2476 = vadd.f32 %v2208, %v2475
        %v2477 = vpop.f32.mrb[0].mxu0
        %2478 = vmatprep.mubr.f32.mxu0 %v1998
        %2479 = vmatmul.mubr.f32.gmra.mrb[0].mxu0 %v1932
        %v2480 = vpop.f32.mrb[0].mxu0
        %v2481 = vadd.f32 %v2208, %v2480
        %v2482 = vpop.f32.mrb[0].mxu0
        %2483 = vmatprep.mubr.f32.mxu0 %v1999
        %2484 = vmatmul.mubr.f32.gmra.mrb[0].mxu0 %v1933
        %v2485 = vpop.f32.mrb[0].mxu0
        %v2486 = vadd.f32 %v2208, %v2485
        %v2487 = vpop.f32.mrb[0].mxu0
        %2488 = vmatprep.mubr.f32.mxu0 %v2000
        %2489 = vmatmul.mubr.f32.gmra.mrb[0].mxu0 %v1934
        %v2490 = vpop.f32.mrb[0].mxu0
        %v2491 = vadd.f32 %v2208, %v2490
        %v2492 = vpop.f32.mrb[0].mxu0
        %2493 = vmatprep.mubr.f32.mxu0 %v2001
        %2494 = vmatmul.mubr.f32.gmra.mrb[0].mxu0 %v1935
        %v2495 = vpop.f32.mrb[0].mxu0
        %v2496 = vadd.f32 %v2208, %v2495
        %v2497 = vpop.f32.mrb[0].mxu0
        %2498 = vmatprep.mubr.f32.mxu0 %v2002
        %2499 = vmatmul.mubr.f32.gmra.mrb[0].mxu0 %v1936
        %v2500 = vpop.f32.mrb[0].mxu0
        %v2501 = vadd.f32 %v2208, %v2500
        %v2502 = vpop.f32.mrb[0].mxu0
        %2503 = vdwg.mxu0
        %2504 = vmatprep.subr.mxu0 0.0
        %2505 = vmatpush1.msra.mxu0 %v2167
        %2506 = vmatprep.subr.mxu0 0.0
        %2507 = vmatpush1.msra.mxu0 %v2168
        %2508 = vmatprep.subr.mxu0 0.0
        %2509 = vmatpush1.msra.mxu0 %v2169
        %2510 = vmatprep.subr.mxu0 0.0
        %2511 = vmatpush1.msra.mxu0 %v2170
        %2512 = vmatprep.subr.mxu0 0.0
        %2513 = vmatpush1.msra.mxu0 %v2171
        %2514 = vmatprep.subr.mxu0 0.0
        %2515 = vmatpush1.msra.mxu0 %v2172
        %2516 = vmatprep.subr.mxu0 0.0
        %2517 = vmatpush1.msra.mxu0 %v2173
        %2518 = vmatprep.subr.mxu0 0.0
        %2519 = vmatpush1.msra.mxu0 %v2174
        %2520 = vmatprep.subr.mxu0 0.0
        %2521 = vmatpush1.msra.mxu0 %v2175
        %2522 = vmatprep.subr.mxu0 0.0
        %2523 = vmatpush1.msra.mxu0 %v2176
        %2524 = vmatprep.subr.mxu0 0.0
        %2525 = vmatpush1.msra.mxu0 %v2177
        %2526 = vmatprep.subr.mxu0 0.0
        %2527 = vmatpush1.msra.mxu0 %v2178
        %2528 = vmatprep.subr.mxu0 0.0
        %2529 = vmatpush1.msra.mxu0 %v2179
        %2530 = vmatprep.subr.mxu0 0.0
        %2531 = vmatpush1.msra.mxu0 %v2180
        %2532 = vmatprep.subr.mxu0 0.0
        %2533 = vmatpush1.msra.mxu0 %v2181
        %2534 = vmatprep.subr.mxu0 0.0
        %2535 = vmatpush1.msra.mxu0 %v2182
        %2536 = vmatprep.subr.mxu0 0.0
        %2537 = vmatpush1.msra.mxu0 %v2183
        %2538 = vmatprep.subr.mxu0 0.0
        %2539 = vmatpush1.msra.mxu0 %v2184
        %2540 = vmatprep.subr.mxu0 0.0
        %2541 = vmatpush1.msra.mxu0 %v2185
        %2542 = vmatprep.subr.mxu0 0.0
        %2543 = vmatpush1.msra.mxu0 %v2186
        %2544 = vmatprep.subr.mxu0 0.0
        %2545 = vmatpush1.msra.mxu0 %v2187
        %2546 = vmatprep.subr.mxu0 0.0
        %2547 = vmatpush1.msra.mxu0 %v2188
        %2548 = vmatprep.subr.mxu0 0.0
        %2549 = vmatpush1.msra.mxu0 %v2189
        %2550 = vmatprep.subr.mxu0 0.0
        %2551 = vmatpush1.msra.mxu0 %v2190
        %2552 = vmatprep.subr.mxu0 0.0
        %2553 = vmatpush1.msra.mxu0 %v2191
        %2554 = vmatprep.subr.mxu0 0.0
        %2555 = vmatpush1.msra.mxu0 %v2192
        %2556 = vmatprep.subr.mxu0 0.0
        %2557 = vmatpush1.msra.mxu0 %v2193
        %2558 = vmatprep.subr.mxu0 0.0
        %2559 = vmatpush1.msra.mxu0 %v2194
        %2560 = vmatprep.subr.mxu0 0.0
        %2561 = vmatpush1.msra.mxu0 %v2195
        %2562 = vmatprep.subr.mxu0 0.0
        %2563 = vmatpush1.msra.mxu0 %v2196
        %2564 = vmatprep.subr.mxu0 0.0
        %2565 = vmatpush1.msra.mxu0 %v2197
        %2566 = vmatprep.subr.mxu0 0.0
        %2567 = vmatpush1.msra.mxu0 %v2198
        %2568 = vmatprep.mubr.f32.mxu0 %v2103
        %2569 = vmatmul.mubr.f32.gmra.mrb[0].mxu0 %v2037
        %v2570 = vpop.f32.mrb[0].mxu0
        %v2571 = vadd.f32 %v2346, %v2570
        %v2572 = vpop.f32.mrb[0].mxu0
        %2573 = vmatprep.mubr.f32.mxu0 %v2104
        %2574 = vmatmul.mubr.f32.gmra.mrb[0].mxu0 %v2038
        %v2575 = vpop.f32.mrb[0].mxu0
        %v2576 = vadd.f32 %v2351, %v2575
        %v2577 = vpop.f32.mrb[0].mxu0
        %2578 = vmatprep.mubr.f32.mxu0 %v2105
        %2579 = vmatmul.mubr.f32.gmra.mrb[0].mxu0 %v2039
        %v2580 = vpop.f32.mrb[0].mxu0
        %v2581 = vadd.f32 %v2356, %v2580
        %v2582 = vpop.f32.mrb[0].mxu0
        %2583 = vmatprep.mubr.f32.mxu0 %v2106
        %2584 = vmatmul.mubr.f32.gmra.mrb[0].mxu0 %v2040
        %v2585 = vpop.f32.mrb[0].mxu0
        %v2586 = vadd.f32 %v2361, %v2585
        %v2587 = vpop.f32.mrb[0].mxu0
        %2588 = vmatprep.mubr.f32.mxu0 %v2107
        %2589 = vmatmul.mubr.f32.gmra.mrb[0].mxu0 %v2041
        %v2590 = vpop.f32.mrb[0].mxu0
        %v2591 = vadd.f32 %v2366, %v2590
        %v2592 = vpop.f32.mrb[0].mxu0
        %2593 = vmatprep.mubr.f32.mxu0 %v2108
        %2594 = vmatmul.mubr.f32.gmra.mrb[0].mxu0 %v2042
        %v2595 = vpop.f32.mrb[0].mxu0
        %v2596 = vadd.f32 %v2371, %v2595
        %v2597 = vpop.f32.mrb[0].mxu0
        %2598 = vmatprep.mubr.f32.mxu0 %v2109
        %2599 = vmatmul.mubr.f32.gmra.mrb[0].mxu0 %v2043
        %v2600 = vpop.f32.mrb[0].mxu0
        %v2601 = vadd.f32 %v2376, %v2600
        %v2602 = vpop.f32.mrb[0].mxu0
        %2603 = vmatprep.mubr.f32.mxu0 %v2110
        %2604 = vmatmul.mubr.f32.gmra.mrb[0].mxu0 %v2044
        %v2605 = vpop.f32.mrb[0].mxu0
        %v2606 = vadd.f32 %v2381, %v2605
        %v2607 = vpop.f32.mrb[0].mxu0
        %2608 = vmatprep.mubr.f32.mxu0 %v2111
        %2609 = vmatmul.mubr.f32.gmra.mrb[0].mxu0 %v2045
        %v2610 = vpop.f32.mrb[0].mxu0
        %v2611 = vadd.f32 %v2386, %v2610
        %v2612 = vpop.f32.mrb[0].mxu0
        %2613 = vmatprep.mubr.f32.mxu0 %v2112
        %2614 = vmatmul.mubr.f32.gmra.mrb[0].mxu0 %v2046
        %v2615 = vpop.f32.mrb[0].mxu0
        %v2616 = vadd.f32 %v2391, %v2615
        %v2617 = vpop.f32.mrb[0].mxu0
        %2618 = vmatprep.mubr.f32.mxu0 %v2113
        %2619 = vmatmul.mubr.f32.gmra.mrb[0].mxu0 %v2047
        %v2620 = vpop.f32.mrb[0].mxu0
        %v2621 = vadd.f32 %v2396, %v2620
        %v2622 = vpop.f32.mrb[0].mxu0
        %2623 = vmatprep.mubr.f32.mxu0 %v2114
        %2624 = vmatmul.mubr.f32.gmra.mrb[0].mxu0 %v2048
        %v2625 = vpop.f32.mrb[0].mxu0
        %v2626 = vadd.f32 %v2401, %v2625
        %v2627 = vpop.f32.mrb[0].mxu0
        %2628 = vmatprep.mubr.f32.mxu0 %v2115
        %2629 = vmatmul.mubr.f32.gmra.mrb[0].mxu0 %v2049
        %v2630 = vpop.f32.mrb[0].mxu0
        %v2631 = vadd.f32 %v2406, %v2630
        %v2632 = vpop.f32.mrb[0].mxu0
        %2633 = vmatprep.mubr.f32.mxu0 %v2116
        %2634 = vmatmul.mubr.f32.gmra.mrb[0].mxu0 %v2050
        %v2635 = vpop.f32.mrb[0].mxu0
        %v2636 = vadd.f32 %v2411, %v2635
        %v2637 = vpop.f32.mrb[0].mxu0
        %2638 = vmatprep.mubr.f32.mxu0 %v2117
        %2639 = vmatmul.mubr.f32.gmra.mrb[0].mxu0 %v2051
        %v2640 = vpop.f32.mrb[0].mxu0
        %v2641 = vadd.f32 %v2416, %v2640
        %v2642 = vpop.f32.mrb[0].mxu0
        %2643 = vmatprep.mubr.f32.mxu0 %v2118
        %2644 = vmatmul.mubr.f32.gmra.mrb[0].mxu0 %v2052
        %v2645 = vpop.f32.mrb[0].mxu0
        %v2646 = vadd.f32 %v2421, %v2645
        %v2647 = vpop.f32.mrb[0].mxu0
        %2648 = vmatprep.mubr.f32.mxu0 %v2119
        %2649 = vmatmul.mubr.f32.gmra.mrb[0].mxu0 %v2053
        %v2650 = vpop.f32.mrb[0].mxu0
        %v2651 = vadd.f32 %v2426, %v2650
        %v2652 = vpop.f32.mrb[0].mxu0
        %2653 = vmatprep.mubr.f32.mxu0 %v2120
        %2654 = vmatmul.mubr.f32.gmra.mrb[0].mxu0 %v2054
        %v2655 = vpop.f32.mrb[0].mxu0
        %v2656 = vadd.f32 %v2431, %v2655
        %v2657 = vpop.f32.mrb[0].mxu0
        %2658 = vmatprep.mubr.f32.mxu0 %v2121
        %2659 = vmatmul.mubr.f32.gmra.mrb[0].mxu0 %v2055
        %v2660 = vpop.f32.mrb[0].mxu0
        %v2661 = vadd.f32 %v2436, %v2660
        %v2662 = vpop.f32.mrb[0].mxu0
        %2663 = vmatprep.mubr.f32.mxu0 %v2122
        %2664 = vmatmul.mubr.f32.gmra.mrb[0].mxu0 %v2056
        %v2665 = vpop.f32.mrb[0].mxu0
        %v2666 = vadd.f32 %v2441, %v2665
        %v2667 = vpop.f32.mrb[0].mxu0
        %2668 = vmatprep.mubr.f32.mxu0 %v2123
        %2669 = vmatmul.mubr.f32.gmra.mrb[0].mxu0 %v2057
        %v2670 = vpop.f32.mrb[0].mxu0
        %v2671 = vadd.f32 %v2446, %v2670
        %v2672 = vpop.f32.mrb[0].mxu0
        %2673 = vmatprep.mubr.f32.mxu0 %v2124
        %2674 = vmatmul.mubr.f32.gmra.mrb[0].mxu0 %v2058
        %v2675 = vpop.f32.mrb[0].mxu0
        %v2676 = vadd.f32 %v2451, %v2675
        %v2677 = vpop.f32.mrb[0].mxu0
        %2678 = vmatprep.mubr.f32.mxu0 %v2125
        %2679 = vmatmul.mubr.f32.gmra.mrb[0].mxu0 %v2059
        %v2680 = vpop.f32.mrb[0].mxu0
        %v2681 = vadd.f32 %v2456, %v2680
        %v2682 = vpop.f32.mrb[0].mxu0
        %2683 = vmatprep.mubr.f32.mxu0 %v2126
        %2684 = vmatmul.mubr.f32.gmra.mrb[0].mxu0 %v2060
        %v2685 = vpop.f32.mrb[0].mxu0
        %v2686 = vadd.f32 %v2461, %v2685
        %v2687 = vpop.f32.mrb[0].mxu0
        %2688 = vmatprep.mubr.f32.mxu0 %v2127
        %2689 = vmatmul.mubr.f32.gmra.mrb[0].mxu0 %v2061
        %v2690 = vpop.f32.mrb[0].mxu0
        %v2691 = vadd.f32 %v2466, %v2690
        %v2692 = vpop.f32.mrb[0].mxu0
        %2693 = vmatprep.mubr.f32.mxu0 %v2128
        %2694 = vmatmul.mubr.f32.gmra.mrb[0].mxu0 %v2062
        %v2695 = vpop.f32.mrb[0].mxu0
        %v2696 = vadd.f32 %v2471, %v2695
        %v2697 = vpop.f32.mrb[0].mxu0
        %2698 = vmatprep.mubr.f32.mxu0 %v2129
        %2699 = vmatmul.mubr.f32.gmra.mrb[0].mxu0 %v2063
        %v2700 = vpop.f32.mrb[0].mxu0
        %v2701 = vadd.f32 %v2476, %v2700
        %v2702 = vpop.f32.mrb[0].mxu0
        %2703 = vmatprep.mubr.f32.mxu0 %v2130
        %2704 = vmatmul.mubr.f32.gmra.mrb[0].mxu0 %v2064
        %v2705 = vpop.f32.mrb[0].mxu0
        %v2706 = vadd.f32 %v2481, %v2705
        %v2707 = vpop.f32.mrb[0].mxu0
        %2708 = vmatprep.mubr.f32.mxu0 %v2131
        %2709 = vmatmul.mubr.f32.gmra.mrb[0].mxu0 %v2065
        %v2710 = vpop.f32.mrb[0].mxu0
        %v2711 = vadd.f32 %v2486, %v2710
        %v2712 = vpop.f32.mrb[0].mxu0
        %2713 = vmatprep.mubr.f32.mxu0 %v2132
        %2714 = vmatmul.mubr.f32.gmra.mrb[0].mxu0 %v2066
        %v2715 = vpop.f32.mrb[0].mxu0
        %v2716 = vadd.f32 %v2491, %v2715
        %v2717 = vpop.f32.mrb[0].mxu0
        %2718 = vmatprep.mubr.f32.mxu0 %v2133
        %2719 = vmatmul.mubr.f32.gmra.mrb[0].mxu0 %v2067
        %v2720 = vpop.f32.mrb[0].mxu0
        %v2721 = vadd.f32 %v2496, %v2720
        %v2722 = vpop.f32.mrb[0].mxu0
        %2723 = vmatprep.mubr.f32.mxu0 %v2134
        %2724 = vmatmul.mubr.f32.gmra.mrb[0].mxu0 %v2068
        %v2725 = vpop.f32.mrb[0].mxu0
        %v2726 = vadd.f32 %v2501, %v2725
        %v2727 = vpop.f32.mrb[0].mxu0
        %2728 = vdwg.mxu0
        %2729 = vmatprep.subr.mxu0 0.0
        %2730 = vmatpush1.msra.mxu0 %v2199
        %2731 = vmatprep.subr.mxu0 0.0
        %2732 = vmatpush1.msra.mxu0 %v2200
        %2733 = vmatprep.subr.mxu0 0.0
        %2734 = vmatpush1.msra.mxu0 %v2201
        %2735 = vmatprep.subr.mxu0 0.0
        %2736 = vmatpush1.msra.mxu0 %v2277
        %2737 = vmatprep.subr.mxu0 0.0
        %2738 = vmatpush1.msra.mxu0 0.0
        %2739 = vmatprep.subr.mxu0 0.0
        %2740 = vmatpush1.msra.mxu0 0.0
        %2741 = vmatprep.subr.mxu0 0.0
        %2742 = vmatpush1.msra.mxu0 0.0
        %2743 = vmatprep.subr.mxu0 0.0
        %2744 = vmatpush1.msra.mxu0 0.0
        %2745 = vmatprep.subr.mxu0 0.0
        %2746 = vmatpush1.msra.mxu0 0.0
        %2747 = vmatprep.subr.mxu0 0.0
        %2748 = vmatpush1.msra.mxu0 0.0
        %2749 = vmatprep.subr.mxu0 0.0
        %2750 = vmatpush1.msra.mxu0 0.0
        %2751 = vmatprep.subr.mxu0 0.0
        %2752 = vmatpush1.msra.mxu0 0.0
        %2753 = vmatprep.subr.mxu0 0.0
        %2754 = vmatpush1.msra.mxu0 0.0
        %2755 = vmatprep.subr.mxu0 0.0
        %2756 = vmatpush1.msra.mxu0 0.0
        %2757 = vmatprep.subr.mxu0 0.0
        %2758 = vmatpush1.msra.mxu0 0.0
        %2759 = vmatprep.subr.mxu0 0.0
        %2760 = vmatpush1.msra.mxu0 0.0
        %2761 = vmatprep.subr.mxu0 0.0
        %2762 = vmatpush1.msra.mxu0 0.0
        %2763 = vmatprep.subr.mxu0 0.0
        %2764 = vmatpush1.msra.mxu0 0.0
        %2765 = vmatprep.subr.mxu0 0.0
        %2766 = vmatpush1.msra.mxu0 0.0
        %2767 = vmatprep.subr.mxu0 0.0
        %2768 = vmatpush1.msra.mxu0 0.0
        %2769 = vmatprep.subr.mxu0 0.0
        %2770 = vmatpush1.msra.mxu0 0.0
        %2771 = vmatprep.subr.mxu0 0.0
        %2772 = vmatpush1.msra.mxu0 0.0
        %2773 = vmatprep.subr.mxu0 0.0
        %2774 = vmatpush1.msra.mxu0 0.0
        %2775 = vmatprep.subr.mxu0 0.0
        %2776 = vmatpush1.msra.mxu0 0.0
        %2777 = vmatprep.subr.mxu0 0.0
        %2778 = vmatpush1.msra.mxu0 0.0
        %2779 = vmatprep.subr.mxu0 0.0
        %2780 = vmatpush1.msra.mxu0 0.0
        %2781 = vmatprep.subr.mxu0 0.0
        %2782 = vmatpush1.msra.mxu0 0.0
        %2783 = vmatprep.subr.mxu0 0.0
        %2784 = vmatpush1.msra.mxu0 0.0
        %2785 = vmatprep.subr.mxu0 0.0
        %2786 = vmatpush1.msra.mxu0 0.0
        %2787 = vmatprep.subr.mxu0 0.0
        %2788 = vmatpush1.msra.mxu0 0.0
        %2789 = vmatprep.subr.mxu0 0.0
        %2790 = vmatpush1.msra.mxu0 0.0
        %2791 = vmatprep.subr.mxu0 0.0
        %2792 = vmatpush1.msra.mxu0 0.0
        %2793 = vmatprep.mubr.f32.mxu0 0.0
        %2794 = vmatmul.mubr.f32.gmra.mrb[0].mxu0 %v2211
        %v2795 = vpop.f32.mrb[0].mxu0
        %v2796 = vadd.f32 %v2571, %v2795
        %v2797 = vpop.f32.mrb[0].mxu0
        %2798 = vmatprep.mubr.f32.mxu0 0.0
        %2799 = vmatmul.mubr.f32.gmra.mrb[0].mxu0 %v2213
        %v2800 = vpop.f32.mrb[0].mxu0
        %v2801 = vadd.f32 %v2576, %v2800
        %v2802 = vpop.f32.mrb[0].mxu0
        %2803 = vmatprep.mubr.f32.mxu0 0.0
        %2804 = vmatmul.mubr.f32.gmra.mrb[0].mxu0 %v2215
        %v2805 = vpop.f32.mrb[0].mxu0
        %v2806 = vadd.f32 %v2581, %v2805
        %v2807 = vpop.f32.mrb[0].mxu0
        %2808 = vmatprep.mubr.f32.mxu0 0.0
        %2809 = vmatmul.mubr.f32.gmra.mrb[0].mxu0 %v2217
        %v2810 = vpop.f32.mrb[0].mxu0
        %v2811 = vadd.f32 %v2586, %v2810
        %v2812 = vpop.f32.mrb[0].mxu0
        %2813 = vmatprep.mubr.f32.mxu0 0.0
        %2814 = vmatmul.mubr.f32.gmra.mrb[0].mxu0 %v2219
        %v2815 = vpop.f32.mrb[0].mxu0
        %v2816 = vadd.f32 %v2591, %v2815
        %v2817 = vpop.f32.mrb[0].mxu0
        %2818 = vmatprep.mubr.f32.mxu0 0.0
        %2819 = vmatmul.mubr.f32.gmra.mrb[0].mxu0 %v2221
        %v2820 = vpop.f32.mrb[0].mxu0
        %v2821 = vadd.f32 %v2596, %v2820
        %v2822 = vpop.f32.mrb[0].mxu0
        %2823 = vmatprep.mubr.f32.mxu0 0.0
        %2824 = vmatmul.mubr.f32.gmra.mrb[0].mxu0 %v2223
        %v2825 = vpop.f32.mrb[0].mxu0
        %v2826 = vadd.f32 %v2601, %v2825
        %v2827 = vpop.f32.mrb[0].mxu0
        %2828 = vmatprep.mubr.f32.mxu0 0.0
        %2829 = vmatmul.mubr.f32.gmra.mrb[0].mxu0 %v2225
        %v2830 = vpop.f32.mrb[0].mxu0
        %v2831 = vadd.f32 %v2606, %v2830
        %v2832 = vpop.f32.mrb[0].mxu0
        %2833 = vmatprep.mubr.f32.mxu0 0.0
        %2834 = vmatmul.mubr.f32.gmra.mrb[0].mxu0 %v2227
        %v2835 = vpop.f32.mrb[0].mxu0
        %v2836 = vadd.f32 %v2611, %v2835
        %v2837 = vpop.f32.mrb[0].mxu0
        %2838 = vmatprep.mubr.f32.mxu0 0.0
        %2839 = vmatmul.mubr.f32.gmra.mrb[0].mxu0 %v2229
        %v2840 = vpop.f32.mrb[0].mxu0
        %v2841 = vadd.f32 %v2616, %v2840
        %v2842 = vpop.f32.mrb[0].mxu0
        %2843 = vmatprep.mubr.f32.mxu0 0.0
        %2844 = vmatmul.mubr.f32.gmra.mrb[0].mxu0 %v2231
        %v2845 = vpop.f32.mrb[0].mxu0
        %v2846 = vadd.f32 %v2621, %v2845
        %v2847 = vpop.f32.mrb[0].mxu0
        %2848 = vmatprep.mubr.f32.mxu0 0.0
        %2849 = vmatmul.mubr.f32.gmra.mrb[0].mxu0 %v2233
        %v2850 = vpop.f32.mrb[0].mxu0
        %v2851 = vadd.f32 %v2626, %v2850
        %v2852 = vpop.f32.mrb[0].mxu0
        %2853 = vmatprep.mubr.f32.mxu0 0.0
        %2854 = vmatmul.mubr.f32.gmra.mrb[0].mxu0 %v2235
        %v2855 = vpop.f32.mrb[0].mxu0
        %v2856 = vadd.f32 %v2631, %v2855
        %v2857 = vpop.f32.mrb[0].mxu0
        %2858 = vmatprep.mubr.f32.mxu0 0.0
        %2859 = vmatmul.mubr.f32.gmra.mrb[0].mxu0 %v2237
        %v2860 = vpop.f32.mrb[0].mxu0
        %v2861 = vadd.f32 %v2636, %v2860
        %v2862 = vpop.f32.mrb[0].mxu0
        %2863 = vmatprep.mubr.f32.mxu0 0.0
        %2864 = vmatmul.mubr.f32.gmra.mrb[0].mxu0 %v2239
        %v2865 = vpop.f32.mrb[0].mxu0
        %v2866 = vadd.f32 %v2641, %v2865
        %v2867 = vpop.f32.mrb[0].mxu0
        %2868 = vmatprep.mubr.f32.mxu0 0.0
        %2869 = vmatmul.mubr.f32.gmra.mrb[0].mxu0 %v2241
        %v2870 = vpop.f32.mrb[0].mxu0
        %v2871 = vadd.f32 %v2646, %v2870
        %v2872 = vpop.f32.mrb[0].mxu0
        %2873 = vmatprep.mubr.f32.mxu0 0.0
        %2874 = vmatmul.mubr.f32.gmra.mrb[0].mxu0 %v2243
        %v2875 = vpop.f32.mrb[0].mxu0
        %v2876 = vadd.f32 %v2651, %v2875
        %v2877 = vpop.f32.mrb[0].mxu0
        %2878 = vmatprep.mubr.f32.mxu0 0.0
        %2879 = vmatmul.mubr.f32.gmra.mrb[0].mxu0 %v2245
        %v2880 = vpop.f32.mrb[0].mxu0
        %v2881 = vadd.f32 %v2656, %v2880
        %v2882 = vpop.f32.mrb[0].mxu0
        %2883 = vmatprep.mubr.f32.mxu0 0.0
        %2884 = vmatmul.mubr.f32.gmra.mrb[0].mxu0 %v2247
        %v2885 = vpop.f32.mrb[0].mxu0
        %v2886 = vadd.f32 %v2661, %v2885
        %v2887 = vpop.f32.mrb[0].mxu0
        %2888 = vmatprep.mubr.f32.mxu0 0.0
        %2889 = vmatmul.mubr.f32.gmra.mrb[0].mxu0 %v2249
        %v2890 = vpop.f32.mrb[0].mxu0
        %v2891 = vadd.f32 %v2666, %v2890
        %v2892 = vpop.f32.mrb[0].mxu0
        %2893 = vmatprep.mubr.f32.mxu0 0.0
        %2894 = vmatmul.mubr.f32.gmra.mrb[0].mxu0 %v2251
        %v2895 = vpop.f32.mrb[0].mxu0
        %v2896 = vadd.f32 %v2671, %v2895
        %v2897 = vpop.f32.mrb[0].mxu0
        %2898 = vmatprep.mubr.f32.mxu0 0.0
        %2899 = vmatmul.mubr.f32.gmra.mrb[0].mxu0 %v2253
        %v2900 = vpop.f32.mrb[0].mxu0
        %v2901 = vadd.f32 %v2676, %v2900
        %v2902 = vpop.f32.mrb[0].mxu0
        %2903 = vmatprep.mubr.f32.mxu0 0.0
        %2904 = vmatmul.mubr.f32.gmra.mrb[0].mxu0 %v2255
        %v2905 = vpop.f32.mrb[0].mxu0
        %v2906 = vadd.f32 %v2681, %v2905
        %v2907 = vpop.f32.mrb[0].mxu0
        %2908 = vmatprep.mubr.f32.mxu0 0.0
        %2909 = vmatmul.mubr.f32.gmra.mrb[0].mxu0 %v2257
        %v2910 = vpop.f32.mrb[0].mxu0
        %v2911 = vadd.f32 %v2686, %v2910
        %v2912 = vpop.f32.mrb[0].mxu0
        %2913 = vmatprep.mubr.f32.mxu0 0.0
        %2914 = vmatmul.mubr.f32.gmra.mrb[0].mxu0 %v2259
        %v2915 = vpop.f32.mrb[0].mxu0
        %v2916 = vadd.f32 %v2691, %v2915
        %v2917 = vpop.f32.mrb[0].mxu0
        %2918 = vmatprep.mubr.f32.mxu0 0.0
        %2919 = vmatmul.mubr.f32.gmra.mrb[0].mxu0 %v2261
        %v2920 = vpop.f32.mrb[0].mxu0
        %v2921 = vadd.f32 %v2696, %v2920
        %v2922 = vpop.f32.mrb[0].mxu0
        %2923 = vmatprep.mubr.f32.mxu0 0.0
        %2924 = vmatmul.mubr.f32.gmra.mrb[0].mxu0 %v2263
        %v2925 = vpop.f32.mrb[0].mxu0
        %v2926 = vadd.f32 %v2701, %v2925
        %v2927 = vpop.f32.mrb[0].mxu0
        %2928 = vmatprep.mubr.f32.mxu0 0.0
        %2929 = vmatmul.mubr.f32.gmra.mrb[0].mxu0 %v2265
        %v2930 = vpop.f32.mrb[0].mxu0
        %v2931 = vadd.f32 %v2706, %v2930
        %v2932 = vpop.f32.mrb[0].mxu0
        %2933 = vmatprep.mubr.f32.mxu0 0.0
        %2934 = vmatmul.mubr.f32.gmra.mrb[0].mxu0 %v2267
        %v2935 = vpop.f32.mrb[0].mxu0
        %v2936 = vadd.f32 %v2711, %v2935
        %v2937 = vpop.f32.mrb[0].mxu0
        %2938 = vmatprep.mubr.f32.mxu0 0.0
        %2939 = vmatmul.mubr.f32.gmra.mrb[0].mxu0 %v2269
        %v2940 = vpop.f32.mrb[0].mxu0
        %v2941 = vadd.f32 %v2716, %v2940
        %v2942 = vpop.f32.mrb[0].mxu0
        %2943 = vmatprep.mubr.f32.mxu0 0.0
        %2944 = vmatmul.mubr.f32.gmra.mrb[0].mxu0 %v2271
        %v2945 = vpop.f32.mrb[0].mxu0
        %v2946 = vadd.f32 %v2721, %v2945
        %v2947 = vpop.f32.mrb[0].mxu0
        %2948 = vmatprep.mubr.f32.mxu0 0.0
        %2949 = vmatmul.mubr.f32.gmra.mrb[0].mxu0 %v2273
        %v2950 = vpop.f32.mrb[0].mxu0
        %v2951 = vadd.f32 %v2726, %v2950
        %v2952 = vpop.f32.mrb[0].mxu0
        %2953 = vdwg.mxu0
        %v2954 = vmul.f32 %v2796, 0.5
        %v2955 = vmul.f32 %v2801, 0.5
        %v2956 = vmul.f32 %v2806, 0.5
        %v2957 = vmul.f32 %v2811, 0.5
        %v2958 = vmul.f32 %v2816, 0.5
        %v2959 = vmul.f32 %v2821, 0.5
        %v2960 = vmul.f32 %v2826, 0.5
        %v2961 = vmul.f32 %v2831, 0.5
        %v2962 = vmul.f32 %v2836, 0.5
        %v2963 = vmul.f32 %v2841, 0.5
        %v2964 = vmul.f32 %v2846, 0.5
        %v2965 = vmul.f32 %v2851, 0.5
        %v2966 = vmul.f32 %v2856, 0.5
        %v2967 = vmul.f32 %v2861, 0.5
        %v2968 = vmul.f32 %v2866, 0.5
        %v2969 = vmul.f32 %v2871, 0.5
        %v2970 = vmul.f32 %v2876, 0.5
        %v2971 = vmul.f32 %v2881, 0.5
        %v2972 = vmul.f32 %v2886, 0.5
        %v2973 = vmul.f32 %v2891, 0.5
        %v2974 = vmul.f32 %v2896, 0.5
        %v2975 = vmul.f32 %v2901, 0.5
        %v2976 = vmul.f32 %v2906, 0.5
        %v2977 = vmul.f32 %v2911, 0.5
        %v2978 = vmul.f32 %v2916, 0.5
        %v2979 = vmul.f32 %v2921, 0.5
        %v2980 = vmul.f32 %v2926, 0.5
        %v2981 = vmul.f32 %v2931, 0.5
        %v2982 = vmul.f32 %v2936, 0.5
        %v2983 = vmul.f32 %v2941, 0.5
        %v2984 = vmul.f32 %v2946, 0.5
        %v2985 = vmul.f32 %v2951, 0.5
        %v2986 = vmul.f32 %v2796, 0.70710677
        %v2987 = vmul.f32 %v2801, 0.70710677
        %v2988 = vmul.f32 %v2806, 0.70710677
        %v2989 = vmul.f32 %v2811, 0.70710677
        %v2990 = vmul.f32 %v2816, 0.70710677
        %v2991 = vmul.f32 %v2821, 0.70710677
        %v2992 = vmul.f32 %v2826, 0.70710677
        %v2993 = vmul.f32 %v2831, 0.70710677
        %v2994 = vmul.f32 %v2836, 0.70710677
        %v2995 = vmul.f32 %v2841, 0.70710677
        %v2996 = vmul.f32 %v2846, 0.70710677
        %v2997 = vmul.f32 %v2851, 0.70710677
        %v2998 = vmul.f32 %v2856, 0.70710677
        %v2999 = vmul.f32 %v2861, 0.70710677
        %v3000 = vmul.f32 %v2866, 0.70710677
        %v3001 = vmul.f32 %v2871, 0.70710677
        %v3002 = vmul.f32 %v2876, 0.70710677
        %v3003 = vmul.f32 %v2881, 0.70710677
        %v3004 = vmul.f32 %v2886, 0.70710677
        %v3005 = vmul.f32 %v2891, 0.70710677
        %v3006 = vmul.f32 %v2896, 0.70710677
        %v3007 = vmul.f32 %v2901, 0.70710677
        %v3008 = vmul.f32 %v2906, 0.70710677
        %v3009 = vmul.f32 %v2911, 0.70710677
        %v3010 = vmul.f32 %v2916, 0.70710677
        %v3011 = vmul.f32 %v2921, 0.70710677
        %v3012 = vmul.f32 %v2926, 0.70710677
        %v3013 = vmul.f32 %v2931, 0.70710677
        %v3014 = vmul.f32 %v2936, 0.70710677
        %v3015 = vmul.f32 %v2941, 0.70710677
        %v3016 = vmul.f32 %v2946, 0.70710677
        %v3017 = vmul.f32 %v2951, 0.70710677
        %vm3018 = vcmp.ge.f32.partialorder %v2986, 0.0
        %vm3019 = vcmp.ge.f32.partialorder %v2987, 0.0
        %vm3020 = vcmp.ge.f32.partialorder %v2988, 0.0
        %vm3021 = vcmp.ge.f32.partialorder %v2989, 0.0
        %vm3022 = vcmp.ge.f32.partialorder %v2990, 0.0
        %vm3023 = vcmp.ge.f32.partialorder %v2991, 0.0
        %vm3024 = vcmp.ge.f32.partialorder %v2992, 0.0
        %vm3025 = vcmp.ge.f32.partialorder %v2993, 0.0
        %vm3026 = vcmp.ge.f32.partialorder %v2994, 0.0
        %vm3027 = vcmp.ge.f32.partialorder %v2995, 0.0
        %vm3028 = vcmp.ge.f32.partialorder %v2996, 0.0
        %vm3029 = vcmp.ge.f32.partialorder %v2997, 0.0
        %vm3030 = vcmp.ge.f32.partialorder %v2998, 0.0
        %vm3031 = vcmp.ge.f32.partialorder %v2999, 0.0
        %vm3032 = vcmp.ge.f32.partialorder %v3000, 0.0
        %vm3033 = vcmp.ge.f32.partialorder %v3001, 0.0
        %vm3034 = vcmp.ge.f32.partialorder %v3002, 0.0
        %vm3035 = vcmp.ge.f32.partialorder %v3003, 0.0
        %vm3036 = vcmp.ge.f32.partialorder %v3004, 0.0
        %vm3037 = vcmp.ge.f32.partialorder %v3005, 0.0
        %vm3038 = vcmp.ge.f32.partialorder %v3006, 0.0
        %vm3039 = vcmp.ge.f32.partialorder %v3007, 0.0
        %vm3040 = vcmp.ge.f32.partialorder %v3008, 0.0
        %vm3041 = vcmp.ge.f32.partialorder %v3009, 0.0
        %vm3042 = vcmp.ge.f32.partialorder %v3010, 0.0
        %vm3043 = vcmp.ge.f32.partialorder %v3011, 0.0
        %vm3044 = vcmp.ge.f32.partialorder %v3012, 0.0
        %vm3045 = vcmp.ge.f32.partialorder %v3013, 0.0
        %vm3046 = vcmp.ge.f32.partialorder %v3014, 0.0
        %vm3047 = vcmp.ge.f32.partialorder %v3015, 0.0
        %vm3048 = vcmp.ge.f32.partialorder %v3016, 0.0
        %vm3049 = vcmp.ge.f32.partialorder %v3017, 0.0
        %v3050 = vsel %vm3018, 1.0, -1.0
        %v3051 = vsel %vm3019, 1.0, -1.0
        %v3052 = vsel %vm3020, 1.0, -1.0
        %v3053 = vsel %vm3021, 1.0, -1.0
        %v3054 = vsel %vm3022, 1.0, -1.0
        %v3055 = vsel %vm3023, 1.0, -1.0
        %v3056 = vsel %vm3024, 1.0, -1.0
        %v3057 = vsel %vm3025, 1.0, -1.0
        %v3058 = vsel %vm3026, 1.0, -1.0
        %v3059 = vsel %vm3027, 1.0, -1.0
        %v3060 = vsel %vm3028, 1.0, -1.0
        %v3061 = vsel %vm3029, 1.0, -1.0
        %v3062 = vsel %vm3030, 1.0, -1.0
        %v3063 = vsel %vm3031, 1.0, -1.0
        %v3064 = vsel %vm3032, 1.0, -1.0
        %v3065 = vsel %vm3033, 1.0, -1.0
        %v3066 = vsel %vm3034, 1.0, -1.0
        %v3067 = vsel %vm3035, 1.0, -1.0
        %v3068 = vsel %vm3036, 1.0, -1.0
        %v3069 = vsel %vm3037, 1.0, -1.0
        %v3070 = vsel %vm3038, 1.0, -1.0
        %v3071 = vsel %vm3039, 1.0, -1.0
        %v3072 = vsel %vm3040, 1.0, -1.0
        %v3073 = vsel %vm3041, 1.0, -1.0
        %v3074 = vsel %vm3042, 1.0, -1.0
        %v3075 = vsel %vm3043, 1.0, -1.0
        %v3076 = vsel %vm3044, 1.0, -1.0
        %v3077 = vsel %vm3045, 1.0, -1.0
        %v3078 = vsel %vm3046, 1.0, -1.0
        %v3079 = vsel %vm3047, 1.0, -1.0
        %v3080 = vsel %vm3048, 1.0, -1.0
        %v3081 = vsel %vm3049, 1.0, -1.0
        %v3082 = vand.u32 2147483647, %v2986
        %v3083 = vand.u32 2147483647, %v2987
        %v3084 = vand.u32 2147483647, %v2988
        %v3085 = vand.u32 2147483647, %v2989
        %v3086 = vand.u32 2147483647, %v2990
        %v3087 = vand.u32 2147483647, %v2991
        %v3088 = vand.u32 2147483647, %v2992
        %v3089 = vand.u32 2147483647, %v2993
        %v3090 = vand.u32 2147483647, %v2994
        %v3091 = vand.u32 2147483647, %v2995
        %v3092 = vand.u32 2147483647, %v2996
        %v3093 = vand.u32 2147483647, %v2997
        %v3094 = vand.u32 2147483647, %v2998
        %v3095 = vand.u32 2147483647, %v2999
        %v3096 = vand.u32 2147483647, %v3000
        %v3097 = vand.u32 2147483647, %v3001
        %v3098 = vand.u32 2147483647, %v3002
        %v3099 = vand.u32 2147483647, %v3003
        %v3100 = vand.u32 2147483647, %v3004
        %v3101 = vand.u32 2147483647, %v3005
        %v3102 = vand.u32 2147483647, %v3006
        %v3103 = vand.u32 2147483647, %v3007
        %v3104 = vand.u32 2147483647, %v3008
        %v3105 = vand.u32 2147483647, %v3009
        %v3106 = vand.u32 2147483647, %v3010
        %v3107 = vand.u32 2147483647, %v3011
        %v3108 = vand.u32 2147483647, %v3012
        %v3109 = vand.u32 2147483647, %v3013
        %v3110 = vand.u32 2147483647, %v3014
        %v3111 = vand.u32 2147483647, %v3015
        %v3112 = vand.u32 2147483647, %v3016
        %v3113 = vand.u32 2147483647, %v3017
        %v3114 = vmul.f32 %v3082, 0.3275911
        %v3115 = vmul.f32 %v3083, 0.3275911
        %v3116 = vmul.f32 %v3084, 0.3275911
        %v3117 = vmul.f32 %v3085, 0.3275911
        %v3118 = vmul.f32 %v3086, 0.3275911
        %v3119 = vmul.f32 %v3087, 0.3275911
        %v3120 = vmul.f32 %v3088, 0.3275911
        %v3121 = vmul.f32 %v3089, 0.3275911
        %v3122 = vmul.f32 %v3090, 0.3275911
        %v3123 = vmul.f32 %v3091, 0.3275911
        %v3124 = vmul.f32 %v3092, 0.3275911
        %v3125 = vmul.f32 %v3093, 0.3275911
        %v3126 = vmul.f32 %v3094, 0.3275911
        %v3127 = vmul.f32 %v3095, 0.3275911
        %v3128 = vmul.f32 %v3096, 0.3275911
        %v3129 = vmul.f32 %v3097, 0.3275911
        %v3130 = vmul.f32 %v3098, 0.3275911
        %v3131 = vmul.f32 %v3099, 0.3275911
        %v3132 = vmul.f32 %v3100, 0.3275911
        %v3133 = vmul.f32 %v3101, 0.3275911
        %v3134 = vmul.f32 %v3102, 0.3275911
        %v3135 = vmul.f32 %v3103, 0.3275911
        %v3136 = vmul.f32 %v3104, 0.3275911
        %v3137 = vmul.f32 %v3105, 0.3275911
        %v3138 = vmul.f32 %v3106, 0.3275911
        %v3139 = vmul.f32 %v3107, 0.3275911
        %v3140 = vmul.f32 %v3108, 0.3275911
        %v3141 = vmul.f32 %v3109, 0.3275911
        %v3142 = vmul.f32 %v3110, 0.3275911
        %v3143 = vmul.f32 %v3111, 0.3275911
        %v3144 = vmul.f32 %v3112, 0.3275911
        %v3145 = vmul.f32 %v3113, 0.3275911
        %v3146 = vadd.f32 %v3114, 1.0
        %v3147 = vadd.f32 %v3115, 1.0
        %v3148 = vadd.f32 %v3116, 1.0
        %v3149 = vadd.f32 %v3117, 1.0
        %v3150 = vadd.f32 %v3118, 1.0
        %v3151 = vadd.f32 %v3119, 1.0
        %v3152 = vadd.f32 %v3120, 1.0
        %v3153 = vadd.f32 %v3121, 1.0
        %v3154 = vadd.f32 %v3122, 1.0
        %v3155 = vadd.f32 %v3123, 1.0
        %v3156 = vadd.f32 %v3124, 1.0
        %v3157 = vadd.f32 %v3125, 1.0
        %v3158 = vadd.f32 %v3126, 1.0
        %v3159 = vadd.f32 %v3127, 1.0
        %v3160 = vadd.f32 %v3128, 1.0
        %v3161 = vadd.f32 %v3129, 1.0
        %v3162 = vadd.f32 %v3130, 1.0
        %v3163 = vadd.f32 %v3131, 1.0
        %v3164 = vadd.f32 %v3132, 1.0
        %v3165 = vadd.f32 %v3133, 1.0
        %v3166 = vadd.f32 %v3134, 1.0
        %v3167 = vadd.f32 %v3135, 1.0
        %v3168 = vadd.f32 %v3136, 1.0
        %v3169 = vadd.f32 %v3137, 1.0
        %v3170 = vadd.f32 %v3138, 1.0
        %v3171 = vadd.f32 %v3139, 1.0
        %v3172 = vadd.f32 %v3140, 1.0
        %v3173 = vadd.f32 %v3141, 1.0
        %v3174 = vadd.f32 %v3142, 1.0
        %v3175 = vadd.f32 %v3143, 1.0
        %v3176 = vadd.f32 %v3144, 1.0
        %v3177 = vadd.f32 %v3145, 1.0
        %v3178 = vrcp.pop %v3146
        %v3179 = vmul.f32 1.0, %v3178
        %v3180 = vrcp.pop %v3147
        %v3181 = vmul.f32 1.0, %v3180
        %v3182 = vrcp.pop %v3148
        %v3183 = vmul.f32 1.0, %v3182
        %v3184 = vrcp.pop %v3149
        %v3185 = vmul.f32 1.0, %v3184
        %v3186 = vrcp.pop %v3150
        %v3187 = vmul.f32 1.0, %v3186
        %v3188 = vrcp.pop %v3151
        %v3189 = vmul.f32 1.0, %v3188
        %v3190 = vrcp.pop %v3152
        %v3191 = vmul.f32 1.0, %v3190
        %v3192 = vrcp.pop %v3153
        %v3193 = vmul.f32 1.0, %v3192
        %v3194 = vrcp.pop %v3154
        %v3195 = vmul.f32 1.0, %v3194
        %v3196 = vrcp.pop %v3155
        %v3197 = vmul.f32 1.0, %v3196
        %v3198 = vrcp.pop %v3156
        %v3199 = vmul.f32 1.0, %v3198
        %v3200 = vrcp.pop %v3157
        %v3201 = vmul.f32 1.0, %v3200
        %v3202 = vrcp.pop %v3158
        %v3203 = vmul.f32 1.0, %v3202
        %v3204 = vrcp.pop %v3159
        %v3205 = vmul.f32 1.0, %v3204
        %v3206 = vrcp.pop %v3160
        %v3207 = vmul.f32 1.0, %v3206
        %v3208 = vrcp.pop %v3161
        %v3209 = vmul.f32 1.0, %v3208
        %v3210 = vrcp.pop %v3162
        %v3211 = vmul.f32 1.0, %v3210
        %v3212 = vrcp.pop %v3163
        %v3213 = vmul.f32 1.0, %v3212
        %v3214 = vrcp.pop %v3164
        %v3215 = vmul.f32 1.0, %v3214
        %v3216 = vrcp.pop %v3165
        %v3217 = vmul.f32 1.0, %v3216
        %v3218 = vrcp.pop %v3166
        %v3219 = vmul.f32 1.0, %v3218
        %v3220 = vrcp.pop %v3167
        %v3221 = vmul.f32 1.0, %v3220
        %v3222 = vrcp.pop %v3168
        %v3223 = vmul.f32 1.0, %v3222
        %v3224 = vrcp.pop %v3169
        %v3225 = vmul.f32 1.0, %v3224
        %v3226 = vrcp.pop %v3170
        %v3227 = vmul.f32 1.0, %v3226
        %v3228 = vrcp.pop %v3171
        %v3229 = vmul.f32 1.0, %v3228
        %v3230 = vrcp.pop %v3172
        %v3231 = vmul.f32 1.0, %v3230
        %v3232 = vrcp.pop %v3173
        %v3233 = vmul.f32 1.0, %v3232
        %v3234 = vrcp.pop %v3174
        %v3235 = vmul.f32 1.0, %v3234
        %v3236 = vrcp.pop %v3175
        %v3237 = vmul.f32 1.0, %v3236
        %v3238 = vrcp.pop %v3176
        %v3239 = vmul.f32 1.0, %v3238
        %v3240 = vrcp.pop %v3177
        %v3241 = vmul.f32 1.0, %v3240
        %v3242 = vmul.f32 %v3179, 1.0614054
        %v3243 = vmul.f32 %v3181, 1.0614054
        %v3244 = vmul.f32 %v3183, 1.0614054
        %v3245 = vmul.f32 %v3185, 1.0614054
        %v3246 = vmul.f32 %v3187, 1.0614054
        %v3247 = vmul.f32 %v3189, 1.0614054
        %v3248 = vmul.f32 %v3191, 1.0614054
        %v3249 = vmul.f32 %v3193, 1.0614054
        %v3250 = vmul.f32 %v3195, 1.0614054
        %v3251 = vmul.f32 %v3197, 1.0614054
        %v3252 = vmul.f32 %v3199, 1.0614054
        %v3253 = vmul.f32 %v3201, 1.0614054
        %v3254 = vmul.f32 %v3203, 1.0614054
        %v3255 = vmul.f32 %v3205, 1.0614054
        %v3256 = vmul.f32 %v3207, 1.0614054
        %v3257 = vmul.f32 %v3209, 1.0614054
        %v3258 = vmul.f32 %v3211, 1.0614054
        %v3259 = vmul.f32 %v3213, 1.0614054
        %v3260 = vmul.f32 %v3215, 1.0614054
        %v3261 = vmul.f32 %v3217, 1.0614054
        %v3262 = vmul.f32 %v3219, 1.0614054
        %v3263 = vmul.f32 %v3221, 1.0614054
        %v3264 = vmul.f32 %v3223, 1.0614054
        %v3265 = vmul.f32 %v3225, 1.0614054
        %v3266 = vmul.f32 %v3227, 1.0614054
        %v3267 = vmul.f32 %v3229, 1.0614054
        %v3268 = vmul.f32 %v3231, 1.0614054
        %v3269 = vmul.f32 %v3233, 1.0614054
        %v3270 = vmul.f32 %v3235, 1.0614054
        %v3271 = vmul.f32 %v3237, 1.0614054
        %v3272 = vmul.f32 %v3239, 1.0614054
        %v3273 = vmul.f32 %v3241, 1.0614054
        %v3274 = vadd.f32 %v3242, -1.4531521
        %v3275 = vadd.f32 %v3243, -1.4531521
        %v3276 = vadd.f32 %v3244, -1.4531521
        %v3277 = vadd.f32 %v3245, -1.4531521
        %v3278 = vadd.f32 %v3246, -1.4531521
        %v3279 = vadd.f32 %v3247, -1.4531521
        %v3280 = vadd.f32 %v3248, -1.4531521
        %v3281 = vadd.f32 %v3249, -1.4531521
        %v3282 = vadd.f32 %v3250, -1.4531521
        %v3283 = vadd.f32 %v3251, -1.4531521
        %v3284 = vadd.f32 %v3252, -1.4531521
        %v3285 = vadd.f32 %v3253, -1.4531521
        %v3286 = vadd.f32 %v3254, -1.4531521
        %v3287 = vadd.f32 %v3255, -1.4531521
        %v3288 = vadd.f32 %v3256, -1.4531521
        %v3289 = vadd.f32 %v3257, -1.4531521
        %v3290 = vadd.f32 %v3258, -1.4531521
        %v3291 = vadd.f32 %v3259, -1.4531521
        %v3292 = vadd.f32 %v3260, -1.4531521
        %v3293 = vadd.f32 %v3261, -1.4531521
        %v3294 = vadd.f32 %v3262, -1.4531521
        %v3295 = vadd.f32 %v3263, -1.4531521
        %v3296 = vadd.f32 %v3264, -1.4531521
        %v3297 = vadd.f32 %v3265, -1.4531521
        %v3298 = vadd.f32 %v3266, -1.4531521
        %v3299 = vadd.f32 %v3267, -1.4531521
        %v3300 = vadd.f32 %v3268, -1.4531521
        %v3301 = vadd.f32 %v3269, -1.4531521
        %v3302 = vadd.f32 %v3270, -1.4531521
        %v3303 = vadd.f32 %v3271, -1.4531521
        %v3304 = vadd.f32 %v3272, -1.4531521
        %v3305 = vadd.f32 %v3273, -1.4531521
        %v3306 = vmul.f32 %v3274, %v3179
        %v3307 = vmul.f32 %v3275, %v3181
        %v3308 = vmul.f32 %v3276, %v3183
        %v3309 = vmul.f32 %v3277, %v3185
        %v3310 = vmul.f32 %v3278, %v3187
        %v3311 = vmul.f32 %v3279, %v3189
        %v3312 = vmul.f32 %v3280, %v3191
        %v3313 = vmul.f32 %v3281, %v3193
        %v3314 = vmul.f32 %v3282, %v3195
        %v3315 = vmul.f32 %v3283, %v3197
        %v3316 = vmul.f32 %v3284, %v3199
        %v3317 = vmul.f32 %v3285, %v3201
        %v3318 = vmul.f32 %v3286, %v3203
        %v3319 = vmul.f32 %v3287, %v3205
        %v3320 = vmul.f32 %v3288, %v3207
        %v3321 = vmul.f32 %v3289, %v3209
        %v3322 = vmul.f32 %v3290, %v3211
        %v3323 = vmul.f32 %v3291, %v3213
        %v3324 = vmul.f32 %v3292, %v3215
        %v3325 = vmul.f32 %v3293, %v3217
        %v3326 = vmul.f32 %v3294, %v3219
        %v3327 = vmul.f32 %v3295, %v3221
        %v3328 = vmul.f32 %v3296, %v3223
        %v3329 = vmul.f32 %v3297, %v3225
        %v3330 = vmul.f32 %v3298, %v3227
        %v3331 = vmul.f32 %v3299, %v3229
        %v3332 = vmul.f32 %v3300, %v3231
        %v3333 = vmul.f32 %v3301, %v3233
        %v3334 = vmul.f32 %v3302, %v3235
        %v3335 = vmul.f32 %v3303, %v3237
        %v3336 = vmul.f32 %v3304, %v3239
        %v3337 = vmul.f32 %v3305, %v3241
        %v3338 = vadd.f32 %v3306, 1.4214138
        %v3339 = vadd.f32 %v3307, 1.4214138
        %v3340 = vadd.f32 %v3308, 1.4214138
        %v3341 = vadd.f32 %v3309, 1.4214138
        %v3342 = vadd.f32 %v3310, 1.4214138
        %v3343 = vadd.f32 %v3311, 1.4214138
        %v3344 = vadd.f32 %v3312, 1.4214138
        %v3345 = vadd.f32 %v3313, 1.4214138
        %v3346 = vadd.f32 %v3314, 1.4214138
        %v3347 = vadd.f32 %v3315, 1.4214138
        %v3348 = vadd.f32 %v3316, 1.4214138
        %v3349 = vadd.f32 %v3317, 1.4214138
        %v3350 = vadd.f32 %v3318, 1.4214138
        %v3351 = vadd.f32 %v3319, 1.4214138
        %v3352 = vadd.f32 %v3320, 1.4214138
        %v3353 = vadd.f32 %v3321, 1.4214138
        %v3354 = vadd.f32 %v3322, 1.4214138
        %v3355 = vadd.f32 %v3323, 1.4214138
        %v3356 = vadd.f32 %v3324, 1.4214138
        %v3357 = vadd.f32 %v3325, 1.4214138
        %v3358 = vadd.f32 %v3326, 1.4214138
        %v3359 = vadd.f32 %v3327, 1.4214138
        %v3360 = vadd.f32 %v3328, 1.4214138
        %v3361 = vadd.f32 %v3329, 1.4214138
        %v3362 = vadd.f32 %v3330, 1.4214138
        %v3363 = vadd.f32 %v3331, 1.4214138
        %v3364 = vadd.f32 %v3332, 1.4214138
        %v3365 = vadd.f32 %v3333, 1.4214138
        %v3366 = vadd.f32 %v3334, 1.4214138
        %v3367 = vadd.f32 %v3335, 1.4214138
        %v3368 = vadd.f32 %v3336, 1.4214138
        %v3369 = vadd.f32 %v3337, 1.4214138
        %v3370 = vmul.f32 %v3338, %v3179
        %v3371 = vmul.f32 %v3339, %v3181
        %v3372 = vmul.f32 %v3340, %v3183
        %v3373 = vmul.f32 %v3341, %v3185
        %v3374 = vmul.f32 %v3342, %v3187
        %v3375 = vmul.f32 %v3343, %v3189
        %v3376 = vmul.f32 %v3344, %v3191
        %v3377 = vmul.f32 %v3345, %v3193
        %v3378 = vmul.f32 %v3346, %v3195
        %v3379 = vmul.f32 %v3347, %v3197
        %v3380 = vmul.f32 %v3348, %v3199
        %v3381 = vmul.f32 %v3349, %v3201
        %v3382 = vmul.f32 %v3350, %v3203
        %v3383 = vmul.f32 %v3351, %v3205
        %v3384 = vmul.f32 %v3352, %v3207
        %v3385 = vmul.f32 %v3353, %v3209
        %v3386 = vmul.f32 %v3354, %v3211
        %v3387 = vmul.f32 %v3355, %v3213
        %v3388 = vmul.f32 %v3356, %v3215
        %v3389 = vmul.f32 %v3357, %v3217
        %v3390 = vmul.f32 %v3358, %v3219
        %v3391 = vmul.f32 %v3359, %v3221
        %v3392 = vmul.f32 %v3360, %v3223
        %v3393 = vmul.f32 %v3361, %v3225
        %v3394 = vmul.f32 %v3362, %v3227
        %v3395 = vmul.f32 %v3363, %v3229
        %v3396 = vmul.f32 %v3364, %v3231
        %v3397 = vmul.f32 %v3365, %v3233
        %v3398 = vmul.f32 %v3366, %v3235
        %v3399 = vmul.f32 %v3367, %v3237
        %v3400 = vmul.f32 %v3368, %v3239
        %v3401 = vmul.f32 %v3369, %v3241
        %v3402 = vadd.f32 %v3370, -0.28449672
        %v3403 = vadd.f32 %v3371, -0.28449672
        %v3404 = vadd.f32 %v3372, -0.28449672
        %v3405 = vadd.f32 %v3373, -0.28449672
        %v3406 = vadd.f32 %v3374, -0.28449672
        %v3407 = vadd.f32 %v3375, -0.28449672
        %v3408 = vadd.f32 %v3376, -0.28449672
        %v3409 = vadd.f32 %v3377, -0.28449672
        %v3410 = vadd.f32 %v3378, -0.28449672
        %v3411 = vadd.f32 %v3379, -0.28449672
        %v3412 = vadd.f32 %v3380, -0.28449672
        %v3413 = vadd.f32 %v3381, -0.28449672
        %v3414 = vadd.f32 %v3382, -0.28449672
        %v3415 = vadd.f32 %v3383, -0.28449672
        %v3416 = vadd.f32 %v3384, -0.28449672
        %v3417 = vadd.f32 %v3385, -0.28449672
        %v3418 = vadd.f32 %v3386, -0.28449672
        %v3419 = vadd.f32 %v3387, -0.28449672
        %v3420 = vadd.f32 %v3388, -0.28449672
        %v3421 = vadd.f32 %v3389, -0.28449672
        %v3422 = vadd.f32 %v3390, -0.28449672
        %v3423 = vadd.f32 %v3391, -0.28449672
        %v3424 = vadd.f32 %v3392, -0.28449672
        %v3425 = vadd.f32 %v3393, -0.28449672
        %v3426 = vadd.f32 %v3394, -0.28449672
        %v3427 = vadd.f32 %v3395, -0.28449672
        %v3428 = vadd.f32 %v3396, -0.28449672
        %v3429 = vadd.f32 %v3397, -0.28449672
        %v3430 = vadd.f32 %v3398, -0.28449672
        %v3431 = vadd.f32 %v3399, -0.28449672
        %v3432 = vadd.f32 %v3400, -0.28449672
        %v3433 = vadd.f32 %v3401, -0.28449672
        %v3434 = vmul.f32 %v3402, %v3179
        %v3435 = vmul.f32 %v3403, %v3181
        %v3436 = vmul.f32 %v3404, %v3183
        %v3437 = vmul.f32 %v3405, %v3185
        %v3438 = vmul.f32 %v3406, %v3187
        %v3439 = vmul.f32 %v3407, %v3189
        %v3440 = vmul.f32 %v3408, %v3191
        %v3441 = vmul.f32 %v3409, %v3193
        %v3442 = vmul.f32 %v3410, %v3195
        %v3443 = vmul.f32 %v3411, %v3197
        %v3444 = vmul.f32 %v3412, %v3199
        %v3445 = vmul.f32 %v3413, %v3201
        %v3446 = vmul.f32 %v3414, %v3203
        %v3447 = vmul.f32 %v3415, %v3205
        %v3448 = vmul.f32 %v3416, %v3207
        %v3449 = vmul.f32 %v3417, %v3209
        %v3450 = vmul.f32 %v3418, %v3211
        %v3451 = vmul.f32 %v3419, %v3213
        %v3452 = vmul.f32 %v3420, %v3215
        %v3453 = vmul.f32 %v3421, %v3217
        %v3454 = vmul.f32 %v3422, %v3219
        %v3455 = vmul.f32 %v3423, %v3221
        %v3456 = vmul.f32 %v3424, %v3223
        %v3457 = vmul.f32 %v3425, %v3225
        %v3458 = vmul.f32 %v3426, %v3227
        %v3459 = vmul.f32 %v3427, %v3229
        %v3460 = vmul.f32 %v3428, %v3231
        %v3461 = vmul.f32 %v3429, %v3233
        %v3462 = vmul.f32 %v3430, %v3235
        %v3463 = vmul.f32 %v3431, %v3237
        %v3464 = vmul.f32 %v3432, %v3239
        %v3465 = vmul.f32 %v3433, %v3241
        %v3466 = vadd.f32 %v3434, 0.2548296
        %v3467 = vadd.f32 %v3435, 0.2548296
        %v3468 = vadd.f32 %v3436, 0.2548296
        %v3469 = vadd.f32 %v3437, 0.2548296
        %v3470 = vadd.f32 %v3438, 0.2548296
        %v3471 = vadd.f32 %v3439, 0.2548296
        %v3472 = vadd.f32 %v3440, 0.2548296
        %v3473 = vadd.f32 %v3441, 0.2548296
        %v3474 = vadd.f32 %v3442, 0.2548296
        %v3475 = vadd.f32 %v3443, 0.2548296
        %v3476 = vadd.f32 %v3444, 0.2548296
        %v3477 = vadd.f32 %v3445, 0.2548296
        %v3478 = vadd.f32 %v3446, 0.2548296
        %v3479 = vadd.f32 %v3447, 0.2548296
        %v3480 = vadd.f32 %v3448, 0.2548296
        %v3481 = vadd.f32 %v3449, 0.2548296
        %v3482 = vadd.f32 %v3450, 0.2548296
        %v3483 = vadd.f32 %v3451, 0.2548296
        %v3484 = vadd.f32 %v3452, 0.2548296
        %v3485 = vadd.f32 %v3453, 0.2548296
        %v3486 = vadd.f32 %v3454, 0.2548296
        %v3487 = vadd.f32 %v3455, 0.2548296
        %v3488 = vadd.f32 %v3456, 0.2548296
        %v3489 = vadd.f32 %v3457, 0.2548296
        %v3490 = vadd.f32 %v3458, 0.2548296
        %v3491 = vadd.f32 %v3459, 0.2548296
        %v3492 = vadd.f32 %v3460, 0.2548296
        %v3493 = vadd.f32 %v3461, 0.2548296
        %v3494 = vadd.f32 %v3462, 0.2548296
        %v3495 = vadd.f32 %v3463, 0.2548296
        %v3496 = vadd.f32 %v3464, 0.2548296
        %v3497 = vadd.f32 %v3465, 0.2548296
        %v3498 = vmul.f32 %v3466, %v3179
        %v3499 = vmul.f32 %v3467, %v3181
        %v3500 = vmul.f32 %v3468, %v3183
        %v3501 = vmul.f32 %v3469, %v3185
        %v3502 = vmul.f32 %v3470, %v3187
        %v3503 = vmul.f32 %v3471, %v3189
        %v3504 = vmul.f32 %v3472, %v3191
        %v3505 = vmul.f32 %v3473, %v3193
        %v3506 = vmul.f32 %v3474, %v3195
        %v3507 = vmul.f32 %v3475, %v3197
        %v3508 = vmul.f32 %v3476, %v3199
        %v3509 = vmul.f32 %v3477, %v3201
        %v3510 = vmul.f32 %v3478, %v3203
        %v3511 = vmul.f32 %v3479, %v3205
        %v3512 = vmul.f32 %v3480, %v3207
        %v3513 = vmul.f32 %v3481, %v3209
        %v3514 = vmul.f32 %v3482, %v3211
        %v3515 = vmul.f32 %v3483, %v3213
        %v3516 = vmul.f32 %v3484, %v3215
        %v3517 = vmul.f32 %v3485, %v3217
        %v3518 = vmul.f32 %v3486, %v3219
        %v3519 = vmul.f32 %v3487, %v3221
        %v3520 = vmul.f32 %v3488, %v3223
        %v3521 = vmul.f32 %v3489, %v3225
        %v3522 = vmul.f32 %v3490, %v3227
        %v3523 = vmul.f32 %v3491, %v3229
        %v3524 = vmul.f32 %v3492, %v3231
        %v3525 = vmul.f32 %v3493, %v3233
        %v3526 = vmul.f32 %v3494, %v3235
        %v3527 = vmul.f32 %v3495, %v3237
        %v3528 = vmul.f32 %v3496, %v3239
        %v3529 = vmul.f32 %v3497, %v3241
        %v3530 = vsub.f32 0.0, %v3082
        %v3531 = vsub.f32 0.0, %v3083
        %v3532 = vsub.f32 0.0, %v3084
        %v3533 = vsub.f32 0.0, %v3085
        %v3534 = vsub.f32 0.0, %v3086
        %v3535 = vsub.f32 0.0, %v3087
        %v3536 = vsub.f32 0.0, %v3088
        %v3537 = vsub.f32 0.0, %v3089
        %v3538 = vsub.f32 0.0, %v3090
        %v3539 = vsub.f32 0.0, %v3091
        %v3540 = vsub.f32 0.0, %v3092
        %v3541 = vsub.f32 0.0, %v3093
        %v3542 = vsub.f32 0.0, %v3094
        %v3543 = vsub.f32 0.0, %v3095
        %v3544 = vsub.f32 0.0, %v3096
        %v3545 = vsub.f32 0.0, %v3097
        %v3546 = vsub.f32 0.0, %v3098
        %v3547 = vsub.f32 0.0, %v3099
        %v3548 = vsub.f32 0.0, %v3100
        %v3549 = vsub.f32 0.0, %v3101
        %v3550 = vsub.f32 0.0, %v3102
        %v3551 = vsub.f32 0.0, %v3103
        %v3552 = vsub.f32 0.0, %v3104
        %v3553 = vsub.f32 0.0, %v3105
        %v3554 = vsub.f32 0.0, %v3106
        %v3555 = vsub.f32 0.0, %v3107
        %v3556 = vsub.f32 0.0, %v3108
        %v3557 = vsub.f32 0.0, %v3109
        %v3558 = vsub.f32 0.0, %v3110
        %v3559 = vsub.f32 0.0, %v3111
        %v3560 = vsub.f32 0.0, %v3112
        %v3561 = vsub.f32 0.0, %v3113
        %v3562 = vmul.f32 %v3530, %v3082
        %v3563 = vmul.f32 %v3531, %v3083
        %v3564 = vmul.f32 %v3532, %v3084
        %v3565 = vmul.f32 %v3533, %v3085
        %v3566 = vmul.f32 %v3534, %v3086
        %v3567 = vmul.f32 %v3535, %v3087
        %v3568 = vmul.f32 %v3536, %v3088
        %v3569 = vmul.f32 %v3537, %v3089
        %v3570 = vmul.f32 %v3538, %v3090
        %v3571 = vmul.f32 %v3539, %v3091
        %v3572 = vmul.f32 %v3540, %v3092
        %v3573 = vmul.f32 %v3541, %v3093
        %v3574 = vmul.f32 %v3542, %v3094
        %v3575 = vmul.f32 %v3543, %v3095
        %v3576 = vmul.f32 %v3544, %v3096
        %v3577 = vmul.f32 %v3545, %v3097
        %v3578 = vmul.f32 %v3546, %v3098
        %v3579 = vmul.f32 %v3547, %v3099
        %v3580 = vmul.f32 %v3548, %v3100
        %v3581 = vmul.f32 %v3549, %v3101
        %v3582 = vmul.f32 %v3550, %v3102
        %v3583 = vmul.f32 %v3551, %v3103
        %v3584 = vmul.f32 %v3552, %v3104
        %v3585 = vmul.f32 %v3553, %v3105
        %v3586 = vmul.f32 %v3554, %v3106
        %v3587 = vmul.f32 %v3555, %v3107
        %v3588 = vmul.f32 %v3556, %v3108
        %v3589 = vmul.f32 %v3557, %v3109
        %v3590 = vmul.f32 %v3558, %v3110
        %v3591 = vmul.f32 %v3559, %v3111
        %v3592 = vmul.f32 %v3560, %v3112
        %v3593 = vmul.f32 %v3561, %v3113
        %v3594 = vmul.f32 %v3562, 1.442695
        %v3595 = vpow.pop %v3594
        %v3596 = vmul.f32 %v3563, 1.442695
        %v3597 = vpow.pop %v3596
        %v3598 = vmul.f32 %v3564, 1.442695
        %v3599 = vpow.pop %v3598
        %v3600 = vmul.f32 %v3565, 1.442695
        %v3601 = vpow.pop %v3600
        %v3602 = vmul.f32 %v3566, 1.442695
        %v3603 = vpow.pop %v3602
        %v3604 = vmul.f32 %v3567, 1.442695
        %v3605 = vpow.pop %v3604
        %v3606 = vmul.f32 %v3568, 1.442695
        %v3607 = vpow.pop %v3606
        %v3608 = vmul.f32 %v3569, 1.442695
        %v3609 = vpow.pop %v3608
        %v3610 = vmul.f32 %v3570, 1.442695
        %v3611 = vpow.pop %v3610
        %v3612 = vmul.f32 %v3571, 1.442695
        %v3613 = vpow.pop %v3612
        %v3614 = vmul.f32 %v3572, 1.442695
        %v3615 = vpow.pop %v3614
        %v3616 = vmul.f32 %v3573, 1.442695
        %v3617 = vpow.pop %v3616
        %v3618 = vmul.f32 %v3574, 1.442695
        %v3619 = vpow.pop %v3618
        %v3620 = vmul.f32 %v3575, 1.442695
        %v3621 = vpow.pop %v3620
        %v3622 = vmul.f32 %v3576, 1.442695
        %v3623 = vpow.pop %v3622
        %v3624 = vmul.f32 %v3577, 1.442695
        %v3625 = vpow.pop %v3624
        %v3626 = vmul.f32 %v3578, 1.442695
        %v3627 = vpow.pop %v3626
        %v3628 = vmul.f32 %v3579, 1.442695
        %v3629 = vpow.pop %v3628
        %v3630 = vmul.f32 %v3580, 1.442695
        %v3631 = vpow.pop %v3630
        %v3632 = vmul.f32 %v3581, 1.442695
        %v3633 = vpow.pop %v3632
        %v3634 = vmul.f32 %v3582, 1.442695
        %v3635 = vpow.pop %v3634
        %v3636 = vmul.f32 %v3583, 1.442695
        %v3637 = vpow.pop %v3636
        %v3638 = vmul.f32 %v3584, 1.442695
        %v3639 = vpow.pop %v3638
        %v3640 = vmul.f32 %v3585, 1.442695
        %v3641 = vpow.pop %v3640
        %v3642 = vmul.f32 %v3586, 1.442695
        %v3643 = vpow.pop %v3642
        %v3644 = vmul.f32 %v3587, 1.442695
        %v3645 = vpow.pop %v3644
        %v3646 = vmul.f32 %v3588, 1.442695
        %v3647 = vpow.pop %v3646
        %v3648 = vmul.f32 %v3589, 1.442695
        %v3649 = vpow.pop %v3648
        %v3650 = vmul.f32 %v3590, 1.442695
        %v3651 = vpow.pop %v3650
        %v3652 = vmul.f32 %v3591, 1.442695
        %v3653 = vpow.pop %v3652
        %v3654 = vmul.f32 %v3592, 1.442695
        %v3655 = vpow.pop %v3654
        %v3656 = vmul.f32 %v3593, 1.442695
        %v3657 = vpow.pop %v3656
        %v3658 = vmul.f32 %v3498, %v3595
        %v3659 = vmul.f32 %v3499, %v3597
        %v3660 = vmul.f32 %v3500, %v3599
        %v3661 = vmul.f32 %v3501, %v3601
        %v3662 = vmul.f32 %v3502, %v3603
        %v3663 = vmul.f32 %v3503, %v3605
        %v3664 = vmul.f32 %v3504, %v3607
        %v3665 = vmul.f32 %v3505, %v3609
        %v3666 = vmul.f32 %v3506, %v3611
        %v3667 = vmul.f32 %v3507, %v3613
        %v3668 = vmul.f32 %v3508, %v3615
        %v3669 = vmul.f32 %v3509, %v3617
        %v3670 = vmul.f32 %v3510, %v3619
        %v3671 = vmul.f32 %v3511, %v3621
        %v3672 = vmul.f32 %v3512, %v3623
        %v3673 = vmul.f32 %v3513, %v3625
        %v3674 = vmul.f32 %v3514, %v3627
        %v3675 = vmul.f32 %v3515, %v3629
        %v3676 = vmul.f32 %v3516, %v3631
        %v3677 = vmul.f32 %v3517, %v3633
        %v3678 = vmul.f32 %v3518, %v3635
        %v3679 = vmul.f32 %v3519, %v3637
        %v3680 = vmul.f32 %v3520, %v3639
        %v3681 = vmul.f32 %v3521, %v3641
        %v3682 = vmul.f32 %v3522, %v3643
        %v3683 = vmul.f32 %v3523, %v3645
        %v3684 = vmul.f32 %v3524, %v3647
        %v3685 = vmul.f32 %v3525, %v3649
        %v3686 = vmul.f32 %v3526, %v3651
        %v3687 = vmul.f32 %v3527, %v3653
        %v3688 = vmul.f32 %v3528, %v3655
        %v3689 = vmul.f32 %v3529, %v3657
        %v3690 = vsub.f32 1.0, %v3658
        %v3691 = vsub.f32 1.0, %v3659
        %v3692 = vsub.f32 1.0, %v3660
        %v3693 = vsub.f32 1.0, %v3661
        %v3694 = vsub.f32 1.0, %v3662
        %v3695 = vsub.f32 1.0, %v3663
        %v3696 = vsub.f32 1.0, %v3664
        %v3697 = vsub.f32 1.0, %v3665
        %v3698 = vsub.f32 1.0, %v3666
        %v3699 = vsub.f32 1.0, %v3667
        %v3700 = vsub.f32 1.0, %v3668
        %v3701 = vsub.f32 1.0, %v3669
        %v3702 = vsub.f32 1.0, %v3670
        %v3703 = vsub.f32 1.0, %v3671
        %v3704 = vsub.f32 1.0, %v3672
        %v3705 = vsub.f32 1.0, %v3673
        %v3706 = vsub.f32 1.0, %v3674
        %v3707 = vsub.f32 1.0, %v3675
        %v3708 = vsub.f32 1.0, %v3676
        %v3709 = vsub.f32 1.0, %v3677
        %v3710 = vsub.f32 1.0, %v3678
        %v3711 = vsub.f32 1.0, %v3679
        %v3712 = vsub.f32 1.0, %v3680
        %v3713 = vsub.f32 1.0, %v3681
        %v3714 = vsub.f32 1.0, %v3682
        %v3715 = vsub.f32 1.0, %v3683
        %v3716 = vsub.f32 1.0, %v3684
        %v3717 = vsub.f32 1.0, %v3685
        %v3718 = vsub.f32 1.0, %v3686
        %v3719 = vsub.f32 1.0, %v3687
        %v3720 = vsub.f32 1.0, %v3688
        %v3721 = vsub.f32 1.0, %v3689
        %v3722 = vmul.f32 %v3050, %v3690
        %v3723 = vmul.f32 %v3051, %v3691
        %v3724 = vmul.f32 %v3052, %v3692
        %v3725 = vmul.f32 %v3053, %v3693
        %v3726 = vmul.f32 %v3054, %v3694
        %v3727 = vmul.f32 %v3055, %v3695
        %v3728 = vmul.f32 %v3056, %v3696
        %v3729 = vmul.f32 %v3057, %v3697
        %v3730 = vmul.f32 %v3058, %v3698
        %v3731 = vmul.f32 %v3059, %v3699
        %v3732 = vmul.f32 %v3060, %v3700
        %v3733 = vmul.f32 %v3061, %v3701
        %v3734 = vmul.f32 %v3062, %v3702
        %v3735 = vmul.f32 %v3063, %v3703
        %v3736 = vmul.f32 %v3064, %v3704
        %v3737 = vmul.f32 %v3065, %v3705
        %v3738 = vmul.f32 %v3066, %v3706
        %v3739 = vmul.f32 %v3067, %v3707
        %v3740 = vmul.f32 %v3068, %v3708
        %v3741 = vmul.f32 %v3069, %v3709
        %v3742 = vmul.f32 %v3070, %v3710
        %v3743 = vmul.f32 %v3071, %v3711
        %v3744 = vmul.f32 %v3072, %v3712
        %v3745 = vmul.f32 %v3073, %v3713
        %v3746 = vmul.f32 %v3074, %v3714
        %v3747 = vmul.f32 %v3075, %v3715
        %v3748 = vmul.f32 %v3076, %v3716
        %v3749 = vmul.f32 %v3077, %v3717
        %v3750 = vmul.f32 %v3078, %v3718
        %v3751 = vmul.f32 %v3079, %v3719
        %v3752 = vmul.f32 %v3080, %v3720
        %v3753 = vmul.f32 %v3081, %v3721
        %v3754 = vadd.f32 %v3722, 1.0
        %v3755 = vadd.f32 %v3723, 1.0
        %v3756 = vadd.f32 %v3724, 1.0
        %v3757 = vadd.f32 %v3725, 1.0
        %v3758 = vadd.f32 %v3726, 1.0
        %v3759 = vadd.f32 %v3727, 1.0
        %v3760 = vadd.f32 %v3728, 1.0
        %v3761 = vadd.f32 %v3729, 1.0
        %v3762 = vadd.f32 %v3730, 1.0
        %v3763 = vadd.f32 %v3731, 1.0
        %v3764 = vadd.f32 %v3732, 1.0
        %v3765 = vadd.f32 %v3733, 1.0
        %v3766 = vadd.f32 %v3734, 1.0
        %v3767 = vadd.f32 %v3735, 1.0
        %v3768 = vadd.f32 %v3736, 1.0
        %v3769 = vadd.f32 %v3737, 1.0
        %v3770 = vadd.f32 %v3738, 1.0
        %v3771 = vadd.f32 %v3739, 1.0
        %v3772 = vadd.f32 %v3740, 1.0
        %v3773 = vadd.f32 %v3741, 1.0
        %v3774 = vadd.f32 %v3742, 1.0
        %v3775 = vadd.f32 %v3743, 1.0
        %v3776 = vadd.f32 %v3744, 1.0
        %v3777 = vadd.f32 %v3745, 1.0
        %v3778 = vadd.f32 %v3746, 1.0
        %v3779 = vadd.f32 %v3747, 1.0
        %v3780 = vadd.f32 %v3748, 1.0
        %v3781 = vadd.f32 %v3749, 1.0
        %v3782 = vadd.f32 %v3750, 1.0
        %v3783 = vadd.f32 %v3751, 1.0
        %v3784 = vadd.f32 %v3752, 1.0
        %v3785 = vadd.f32 %v3753, 1.0
        %v3786 = vmul.f32 %v2954, %v3754
        %v3787 = vmul.f32 %v2955, %v3755
        %v3788 = vmul.f32 %v2956, %v3756
        %v3789 = vmul.f32 %v2957, %v3757
        %v3790 = vmul.f32 %v2958, %v3758
        %v3791 = vmul.f32 %v2959, %v3759
        %v3792 = vmul.f32 %v2960, %v3760
        %v3793 = vmul.f32 %v2961, %v3761
        %v3794 = vmul.f32 %v2962, %v3762
        %v3795 = vmul.f32 %v2963, %v3763
        %v3796 = vmul.f32 %v2964, %v3764
        %v3797 = vmul.f32 %v2965, %v3765
        %v3798 = vmul.f32 %v2966, %v3766
        %v3799 = vmul.f32 %v2967, %v3767
        %v3800 = vmul.f32 %v2968, %v3768
        %v3801 = vmul.f32 %v2969, %v3769
        %v3802 = vmul.f32 %v2970, %v3770
        %v3803 = vmul.f32 %v2971, %v3771
        %v3804 = vmul.f32 %v2972, %v3772
        %v3805 = vmul.f32 %v2973, %v3773
        %v3806 = vmul.f32 %v2974, %v3774
        %v3807 = vmul.f32 %v2975, %v3775
        %v3808 = vmul.f32 %v2976, %v3776
        %v3809 = vmul.f32 %v2977, %v3777
        %v3810 = vmul.f32 %v2978, %v3778
        %v3811 = vmul.f32 %v2979, %v3779
        %v3812 = vmul.f32 %v2980, %v3780
        %v3813 = vmul.f32 %v2981, %v3781
        %v3814 = vmul.f32 %v2982, %v3782
        %v3815 = vmul.f32 %v2983, %v3783
        %v3816 = vmul.f32 %v2984, %v3784
        %v3817 = vmul.f32 %v2985, %v3785
        %vm3850 = vcmask 1040384
        %v3851 = vrot.slane %v3786, 7
        %v3852 = vrot.slane %v3787, 7
        %v3853 = vsel %vm3850, %v3851, %v3852
        %v3854 = vrot.slane %v3788, 7
        %v3855 = vrot.slane %v3789, 7
        %v3856 = vsel %vm3850, %v3854, %v3855
        %v3857 = vrot.slane %v3790, 7
        %v3858 = vrot.slane %v3791, 7
        %v3859 = vsel %vm3850, %v3857, %v3858
        %v3860 = vrot.slane %v3792, 7
        %v3861 = vrot.slane %v3793, 7
        %v3862 = vsel %vm3850, %v3860, %v3861
        %v3863 = vrot.slane %v3794, 7
        %v3864 = vrot.slane %v3795, 7
        %v3865 = vsel %vm3850, %v3863, %v3864
        %v3866 = vrot.slane %v3796, 7
        %v3867 = vrot.slane %v3797, 7
        %v3868 = vsel %vm3850, %v3866, %v3867
        %v3869 = vrot.slane %v3798, 7
        %v3870 = vrot.slane %v3799, 7
        %v3871 = vsel %vm3850, %v3869, %v3870
        %v3872 = vrot.slane %v3800, 7
        %v3873 = vrot.slane %v3801, 7
        %v3874 = vsel %vm3850, %v3872, %v3873
        %v3875 = vrot.slane %v3802, 7
        %v3876 = vrot.slane %v3803, 7
        %v3877 = vsel %vm3850, %v3875, %v3876
        %v3878 = vrot.slane %v3804, 7
        %v3879 = vrot.slane %v3805, 7
        %v3880 = vsel %vm3850, %v3878, %v3879
        %v3881 = vrot.slane %v3806, 7
        %v3882 = vrot.slane %v3807, 7
        %v3883 = vsel %vm3850, %v3881, %v3882
        %v3884 = vrot.slane %v3808, 7
        %v3885 = vrot.slane %v3809, 7
        %v3886 = vsel %vm3850, %v3884, %v3885
        %v3887 = vrot.slane %v3810, 7
        %v3888 = vrot.slane %v3811, 7
        %v3889 = vsel %vm3850, %v3887, %v3888
        %v3890 = vrot.slane %v3812, 7
        %v3891 = vrot.slane %v3813, 7
        %v3892 = vsel %vm3850, %v3890, %v3891
        %v3893 = vrot.slane %v3814, 7
        %v3894 = vrot.slane %v3815, 7
        %v3895 = vsel %vm3850, %v3893, %v3894
        %v3896 = vrot.slane %v3816, 7
        %v3897 = vrot.slane %v3817, 7
        %v3898 = vsel %vm3850, %v3896, %v3897
        %v3947 = vsel %vm3850, 0.0, %v3851
        %v3948 = vsel %vm3850, 0.0, %v3854
        %v3949 = vsel %vm3850, 0.0, %v3857
        %v3950 = vsel %vm3850, 0.0, %v3860
        %v3951 = vsel %vm3850, 0.0, %v3863
        %v3952 = vsel %vm3850, 0.0, %v3866
        %v3953 = vsel %vm3850, 0.0, %v3869
        %v3954 = vsel %vm3850, 0.0, %v3872
        %v3955 = vsel %vm3850, 0.0, %v3875
        %v3956 = vsel %vm3850, 0.0, %v3878
        %v3957 = vsel %vm3850, 0.0, %v3881
        %v3958 = vsel %vm3850, 0.0, %v3884
        %v3959 = vsel %vm3850, 0.0, %v3887
        %v3960 = vsel %vm3850, 0.0, %v3890
        %v3961 = vsel %vm3850, 0.0, %v3893
        %v3962 = vsel %vm3850, 0.0, %v3896
        %v3963 = vsel %vm3850, %v3852, 0.0
        %v3964 = vsel %vm3850, %v3855, 0.0
        %v3965 = vsel %vm3850, %v3858, 0.0
        %v3966 = vsel %vm3850, %v3861, 0.0
        %v3967 = vsel %vm3850, %v3864, 0.0
        %v3968 = vsel %vm3850, %v3867, 0.0
        %v3969 = vsel %vm3850, %v3870, 0.0
        %v3970 = vsel %vm3850, %v3873, 0.0
        %v3971 = vsel %vm3850, %v3876, 0.0
        %v3972 = vsel %vm3850, %v3879, 0.0
        %v3973 = vsel %vm3850, %v3882, 0.0
        %v3974 = vsel %vm3850, %v3885, 0.0
        %v3975 = vsel %vm3850, %v3888, 0.0
        %v3976 = vsel %vm3850, %v3891, 0.0
        %v3977 = vsel %vm3850, %v3894, 0.0
        %v3978 = vsel %vm3850, %v3897, 0.0
        %vm3979 = vcmask 162816
        %3980 = vst.msk [vmem:[#allocation2] sm:$0xff] %vm3979, 0.0
        %3981 = vst.msk [vmem:[#allocation2 + $0x8] sm:$0xff] %vm3979, 0.0
        %vm3982 = vcmask 156672
        %3983 = vst.msk [vmem:[#allocation2 + $0x10] sm:$0x3] %vm3982, 0.0
        %s3984 = scalar_lea.vmem [#allocation2], 408
        %3985 = vst.msk [vmem:[%s3984] sm:$0xff] %vm3979, 0.0
        %3986 = vst.msk [vmem:[%s3984 + $0x8] sm:$0xff] %vm3979, 0.0
        %3987 = vst.msk [vmem:[%s3984 + $0x10] sm:$0x3] %vm3982, 0.0
        %s3988 = scalar_lea.vmem [#allocation2], 24
        %3989 = vst.msk [vmem:[%s3988] sm:$0xff] %vm3979, %v3947
        %3990 = vst.msk [vmem:[%s3988 + $0x8] sm:$0xff] %vm3979, %v3853
        %3991 = vst.msk [vmem:[%s3988 + $0x10] sm:$0x3] %vm3982, %v3963
        %3992 = vst.msk [vmem:[%s3988 + $0x18] sm:$0xff] %vm3979, %v3948
        %3993 = vst.msk [vmem:[%s3988 + $0x20] sm:$0xff] %vm3979, %v3856
        %3994 = vst.msk [vmem:[%s3988 + $0x28] sm:$0x3] %vm3982, %v3964
        %3995 = vst.msk [vmem:[%s3988 + $0x30] sm:$0xff] %vm3979, %v3949
        %3996 = vst.msk [vmem:[%s3988 + $0x38] sm:$0xff] %vm3979, %v3859
        %3997 = vst.msk [vmem:[%s3988 + $0x40] sm:$0x3] %vm3982, %v3965
        %3998 = vst.msk [vmem:[%s3988 + $0x48] sm:$0xff] %vm3979, %v3950
        %3999 = vst.msk [vmem:[%s3988 + $0x50] sm:$0xff] %vm3979, %v3862
        %4000 = vst.msk [vmem:[%s3988 + $0x58] sm:$0x3] %vm3982, %v3966
        %4001 = vst.msk [vmem:[%s3988 + $0x60] sm:$0xff] %vm3979, %v3951
        %4002 = vst.msk [vmem:[%s3988 + $0x68] sm:$0xff] %vm3979, %v3865
        %4003 = vst.msk [vmem:[%s3988 + $0x70] sm:$0x3] %vm3982, %v3967
        %4004 = vst.msk [vmem:[%s3988 + $0x78] sm:$0xff] %vm3979, %v3952
        %4005 = vst.msk [vmem:[%s3988 + $0x80] sm:$0xff] %vm3979, %v3868
        %4006 = vst.msk [vmem:[%s3988 + $0x88] sm:$0x3] %vm3982, %v3968
        %4007 = vst.msk [vmem:[%s3988 + $0x90] sm:$0xff] %vm3979, %v3953
        %4008 = vst.msk [vmem:[%s3988 + $0x98] sm:$0xff] %vm3979, %v3871
        %4009 = vst.msk [vmem:[%s3988 + $0xa0] sm:$0x3] %vm3982, %v3969
        %4010 = vst.msk [vmem:[%s3988 + $0xa8] sm:$0xff] %vm3979, %v3954
        %4011 = vst.msk [vmem:[%s3988 + $0xb0] sm:$0xff] %vm3979, %v3874
        %4012 = vst.msk [vmem:[%s3988 + $0xb8] sm:$0x3] %vm3982, %v3970
        %4013 = vst.msk [vmem:[%s3988 + $0xc0] sm:$0xff] %vm3979, %v3955
        %4014 = vst.msk [vmem:[%s3988 + $0xc8] sm:$0xff] %vm3979, %v3877
        %4015 = vst.msk [vmem:[%s3988 + $0xd0] sm:$0x3] %vm3982, %v3971
        %4016 = vst.msk [vmem:[%s3988 + $0xd8] sm:$0xff] %vm3979, %v3956
        %4017 = vst.msk [vmem:[%s3988 + $0xe0] sm:$0xff] %vm3979, %v3880
        %4018 = vst.msk [vmem:[%s3988 + $0xe8] sm:$0x3] %vm3982, %v3972
        %4019 = vst.msk [vmem:[%s3988 + $0xf0] sm:$0xff] %vm3979, %v3957
        %4020 = vst.msk [vmem:[%s3988 + $0xf8] sm:$0xff] %vm3979, %v3883
        %4021 = vst.msk [vmem:[%s3988 + $0x100] sm:$0x3] %vm3982, %v3973
        %4022 = vst.msk [vmem:[%s3988 + $0x108] sm:$0xff] %vm3979, %v3958
        %4023 = vst.msk [vmem:[%s3988 + $0x110] sm:$0xff] %vm3979, %v3886
        %4024 = vst.msk [vmem:[%s3988 + $0x118] sm:$0x3] %vm3982, %v3974
        %4025 = vst.msk [vmem:[%s3988 + $0x120] sm:$0xff] %vm3979, %v3959
        %4026 = vst.msk [vmem:[%s3988 + $0x128] sm:$0xff] %vm3979, %v3889
        %4027 = vst.msk [vmem:[%s3988 + $0x130] sm:$0x3] %vm3982, %v3975
        %4028 = vst.msk [vmem:[%s3988 + $0x138] sm:$0xff] %vm3979, %v3960
        %4029 = vst.msk [vmem:[%s3988 + $0x140] sm:$0xff] %vm3979, %v3892
        %4030 = vst.msk [vmem:[%s3988 + $0x148] sm:$0x3] %vm3982, %v3976
        %4031 = vst.msk [vmem:[%s3988 + $0x150] sm:$0xff] %vm3979, %v3961
        %4032 = vst.msk [vmem:[%s3988 + $0x158] sm:$0xff] %vm3979, %v3895
        %4033 = vst.msk [vmem:[%s3988 + $0x160] sm:$0x3] %vm3982, %v3977
        %4034 = vst.msk [vmem:[%s3988 + $0x168] sm:$0xff] %vm3979, %v3962
        %4035 = vst.msk [vmem:[%s3988 + $0x170] sm:$0xff] %vm3979, %v3898
        %4036 = vst.msk [vmem:[%s3988 + $0x178] sm:$0x3] %vm3982, %v3978
        %v4037 = vld [vmem:[#allocation2] sm:$0xff]
        %v4038 = vld [vmem:[#allocation2 + $0x8] sm:$0xff]
        %v4039 = vld [vmem:[#allocation2 + $0x10] sm:$0x3]
        %v4040 = vld [vmem:[#allocation2 + $0x18] sm:$0xff]
        %v4041 = vld [vmem:[#allocation2 + $0x20] sm:$0xff]
        %v4042 = vld [vmem:[#allocation2 + $0x28] sm:$0x3]
        %v4043 = vld [vmem:[#allocation2 + $0x30] sm:$0xff]
        %v4044 = vld [vmem:[#allocation2 + $0x38] sm:$0xff]
        %v4045 = vld [vmem:[#allocation2 + $0x40] sm:$0x3]
        %v4046 = vld [vmem:[#allocation2 + $0x48] sm:$0xff]
        %v4047 = vld [vmem:[#allocation2 + $0x50] sm:$0xff]
        %v4048 = vld [vmem:[#allocation2 + $0x58] sm:$0x3]
        %v4049 = vld [vmem:[#allocation2 + $0x60] sm:$0xff]
        %v4050 = vld [vmem:[#allocation2 + $0x68] sm:$0xff]
        %v4051 = vld [vmem:[#allocation2 + $0x70] sm:$0x3]
        %v4052 = vld [vmem:[#allocation2 + $0x78] sm:$0xff]
        %v4053 = vld [vmem:[#allocation2 + $0x80] sm:$0xff]
        %v4054 = vld [vmem:[#allocation2 + $0x88] sm:$0x3]
        %v4055 = vld [vmem:[#allocation2 + $0x90] sm:$0xff]
        %v4056 = vld [vmem:[#allocation2 + $0x98] sm:$0xff]
        %v4057 = vld [vmem:[#allocation2 + $0xa0] sm:$0x3]
        %v4058 = vld [vmem:[#allocation2 + $0xa8] sm:$0xff]
        %v4059 = vld [vmem:[#allocation2 + $0xb0] sm:$0xff]
        %v4060 = vld [vmem:[#allocation2 + $0xb8] sm:$0x3]
        %v4061 = vld [vmem:[#allocation2 + $0xc0] sm:$0xff]
        %v4062 = vld [vmem:[#allocation2 + $0xc8] sm:$0xff]
        %v4063 = vld [vmem:[#allocation2 + $0xd0] sm:$0x3]
        %v4064 = vld [vmem:[#allocation2 + $0xd8] sm:$0xff]
        %v4065 = vld [vmem:[#allocation2 + $0xe0] sm:$0xff]
        %v4066 = vld [vmem:[#allocation2 + $0xe8] sm:$0x3]
        %v4067 = vld [vmem:[#allocation2 + $0xf0] sm:$0xff]
        %v4068 = vld [vmem:[#allocation2 + $0xf8] sm:$0xff]
        %v4069 = vld [vmem:[#allocation2 + $0x100] sm:$0x3]
        %v4070 = vld [vmem:[#allocation2 + $0x108] sm:$0xff]
        %v4071 = vld [vmem:[#allocation2 + $0x110] sm:$0xff]
        %v4072 = vld [vmem:[#allocation2 + $0x118] sm:$0x3]
        %v4073 = vld [vmem:[#allocation2 + $0x120] sm:$0xff]
        %v4074 = vld [vmem:[#allocation2 + $0x128] sm:$0xff]
        %v4075 = vld [vmem:[#allocation2 + $0x130] sm:$0x3]
        %v4076 = vld [vmem:[#allocation2 + $0x138] sm:$0xff]
        %v4077 = vld [vmem:[#allocation2 + $0x140] sm:$0xff]
        %v4078 = vld [vmem:[#allocation2 + $0x148] sm:$0x3]
        %v4079 = vld [vmem:[#allocation2 + $0x150] sm:$0xff]
        %v4080 = vld [vmem:[#allocation2 + $0x158] sm:$0xff]
        %v4081 = vld [vmem:[#allocation2 + $0x160] sm:$0x3]
        %v4082 = vld [vmem:[#allocation2 + $0x168] sm:$0xff]
        %v4083 = vld [vmem:[#allocation2 + $0x170] sm:$0xff]
        %v4084 = vld [vmem:[#allocation2 + $0x178] sm:$0x3]
        %v4133 = vrot.slane %v4037, 1
        %v4134 = vrot.slane %v4038, 1
        %v4135 = vsel %vm427, %v4133, %v4134
        %v4136 = vrot.slane %v4039, 1
        %v4137 = vsel %vm427, %v4134, %v4136
        %v4138 = vrot.slane %v4040, 1
        %v4139 = vrot.slane %v4041, 1
        %v4140 = vsel %vm427, %v4138, %v4139
        %v4141 = vrot.slane %v4042, 1
        %v4142 = vsel %vm427, %v4139, %v4141
        %v4143 = vrot.slane %v4043, 1
        %v4144 = vrot.slane %v4044, 1
        %v4145 = vsel %vm427, %v4143, %v4144
        %v4146 = vrot.slane %v4045, 1
        %v4147 = vsel %vm427, %v4144, %v4146
        %v4148 = vrot.slane %v4046, 1
        %v4149 = vrot.slane %v4047, 1
        %v4150 = vsel %vm427, %v4148, %v4149
        %v4151 = vrot.slane %v4048, 1
        %v4152 = vsel %vm427, %v4149, %v4151
        %v4153 = vrot.slane %v4049, 1
        %v4154 = vrot.slane %v4050, 1
        %v4155 = vsel %vm427, %v4153, %v4154
        %v4156 = vrot.slane %v4051, 1
        %v4157 = vsel %vm427, %v4154, %v4156
        %v4158 = vrot.slane %v4052, 1
        %v4159 = vrot.slane %v4053, 1
        %v4160 = vsel %vm427, %v4158, %v4159
        %v4161 = vrot.slane %v4054, 1
        %v4162 = vsel %vm427, %v4159, %v4161
        %v4163 = vrot.slane %v4055, 1
        %v4164 = vrot.slane %v4056, 1
        %v4165 = vsel %vm427, %v4163, %v4164
        %v4166 = vrot.slane %v4057, 1
        %v4167 = vsel %vm427, %v4164, %v4166
        %v4168 = vrot.slane %v4058, 1
        %v4169 = vrot.slane %v4059, 1
        %v4170 = vsel %vm427, %v4168, %v4169
        %v4171 = vrot.slane %v4060, 1
        %v4172 = vsel %vm427, %v4169, %v4171
        %v4173 = vrot.slane %v4061, 1
        %v4174 = vrot.slane %v4062, 1
        %v4175 = vsel %vm427, %v4173, %v4174
        %v4176 = vrot.slane %v4063, 1
        %v4177 = vsel %vm427, %v4174, %v4176
        %v4178 = vrot.slane %v4064, 1
        %v4179 = vrot.slane %v4065, 1
        %v4180 = vsel %vm427, %v4178, %v4179
        %v4181 = vrot.slane %v4066, 1
        %v4182 = vsel %vm427, %v4179, %v4181
        %v4183 = vrot.slane %v4067, 1
        %v4184 = vrot.slane %v4068, 1
        %v4185 = vsel %vm427, %v4183, %v4184
        %v4186 = vrot.slane %v4069, 1
        %v4187 = vsel %vm427, %v4184, %v4186
        %v4188 = vrot.slane %v4070, 1
        %v4189 = vrot.slane %v4071, 1
        %v4190 = vsel %vm427, %v4188, %v4189
        %v4191 = vrot.slane %v4072, 1
        %v4192 = vsel %vm427, %v4189, %v4191
        %v4193 = vrot.slane %v4073, 1
        %v4194 = vrot.slane %v4074, 1
        %v4195 = vsel %vm427, %v4193, %v4194
        %v4196 = vrot.slane %v4075, 1
        %v4197 = vsel %vm427, %v4194, %v4196
        %v4198 = vrot.slane %v4076, 1
        %v4199 = vrot.slane %v4077, 1
        %v4200 = vsel %vm427, %v4198, %v4199
        %v4201 = vrot.slane %v4078, 1
        %v4202 = vsel %vm427, %v4199, %v4201
        %v4203 = vrot.slane %v4079, 1
        %v4204 = vrot.slane %v4080, 1
        %v4205 = vsel %vm427, %v4203, %v4204
        %v4206 = vrot.slane %v4081, 1
        %v4207 = vsel %vm427, %v4204, %v4206
        %v4208 = vrot.slane %v4082, 1
        %v4209 = vrot.slane %v4083, 1
        %v4210 = vsel %vm427, %v4208, %v4209
        %v4211 = vrot.slane %v4084, 1
        %v4212 = vsel %vm427, %v4209, %v4211
        %v4213 = vrot.slane %v4037, 2
        %v4214 = vrot.slane %v4038, 2
        %v4215 = vsel %vm508, %v4213, %v4214
        %v4216 = vrot.slane %v4039, 2
        %v4217 = vsel %vm508, %v4214, %v4216
        %v4218 = vrot.slane %v4040, 2
        %v4219 = vrot.slane %v4041, 2
        %v4220 = vsel %vm508, %v4218, %v4219
        %v4221 = vrot.slane %v4042, 2
        %v4222 = vsel %vm508, %v4219, %v4221
        %v4223 = vrot.slane %v4043, 2
        %v4224 = vrot.slane %v4044, 2
        %v4225 = vsel %vm508, %v4223, %v4224
        %v4226 = vrot.slane %v4045, 2
        %v4227 = vsel %vm508, %v4224, %v4226
        %v4228 = vrot.slane %v4046, 2
        %v4229 = vrot.slane %v4047, 2
        %v4230 = vsel %vm508, %v4228, %v4229
        %v4231 = vrot.slane %v4048, 2
        %v4232 = vsel %vm508, %v4229, %v4231
        %v4233 = vrot.slane %v4049, 2
        %v4234 = vrot.slane %v4050, 2
        %v4235 = vsel %vm508, %v4233, %v4234
        %v4236 = vrot.slane %v4051, 2
        %v4237 = vsel %vm508, %v4234, %v4236
        %v4238 = vrot.slane %v4052, 2
        %v4239 = vrot.slane %v4053, 2
        %v4240 = vsel %vm508, %v4238, %v4239
        %v4241 = vrot.slane %v4054, 2
        %v4242 = vsel %vm508, %v4239, %v4241
        %v4243 = vrot.slane %v4055, 2
        %v4244 = vrot.slane %v4056, 2
        %v4245 = vsel %vm508, %v4243, %v4244
        %v4246 = vrot.slane %v4057, 2
        %v4247 = vsel %vm508, %v4244, %v4246
        %v4248 = vrot.slane %v4058, 2
        %v4249 = vrot.slane %v4059, 2
        %v4250 = vsel %vm508, %v4248, %v4249
        %v4251 = vrot.slane %v4060, 2
        %v4252 = vsel %vm508, %v4249, %v4251
        %v4253 = vrot.slane %v4061, 2
        %v4254 = vrot.slane %v4062, 2
        %v4255 = vsel %vm508, %v4253, %v4254
        %v4256 = vrot.slane %v4063, 2
        %v4257 = vsel %vm508, %v4254, %v4256
        %v4258 = vrot.slane %v4064, 2
        %v4259 = vrot.slane %v4065, 2
        %v4260 = vsel %vm508, %v4258, %v4259
        %v4261 = vrot.slane %v4066, 2
        %v4262 = vsel %vm508, %v4259, %v4261
        %v4263 = vrot.slane %v4067, 2
        %v4264 = vrot.slane %v4068, 2
        %v4265 = vsel %vm508, %v4263, %v4264
        %v4266 = vrot.slane %v4069, 2
        %v4267 = vsel %vm508, %v4264, %v4266
        %v4268 = vrot.slane %v4070, 2
        %v4269 = vrot.slane %v4071, 2
        %v4270 = vsel %vm508, %v4268, %v4269
        %v4271 = vrot.slane %v4072, 2
        %v4272 = vsel %vm508, %v4269, %v4271
        %v4273 = vrot.slane %v4073, 2
        %v4274 = vrot.slane %v4074, 2
        %v4275 = vsel %vm508, %v4273, %v4274
        %v4276 = vrot.slane %v4075, 2
        %v4277 = vsel %vm508, %v4274, %v4276
        %v4278 = vrot.slane %v4076, 2
        %v4279 = vrot.slane %v4077, 2
        %v4280 = vsel %vm508, %v4278, %v4279
        %v4281 = vrot.slane %v4078, 2
        %v4282 = vsel %vm508, %v4279, %v4281
        %v4283 = vrot.slane %v4079, 2
        %v4284 = vrot.slane %v4080, 2
        %v4285 = vsel %vm508, %v4283, %v4284
        %v4286 = vrot.slane %v4081, 2
        %v4287 = vsel %vm508, %v4284, %v4286
        %v4288 = vrot.slane %v4082, 2
        %v4289 = vrot.slane %v4083, 2
        %v4290 = vsel %vm508, %v4288, %v4289
        %v4291 = vrot.slane %v4084, 2
        %v4292 = vsel %vm508, %v4289, %v4291
        %v4293 = vld [vmem:[%s3988] sm:$0xff]
        %v4294 = vld [vmem:[%s3988 + $0x8] sm:$0xff]
        %v4295 = vld [vmem:[%s3988 + $0x10] sm:$0x3]
        %v4296 = vld [vmem:[%s3988 + $0x18] sm:$0xff]
        %v4297 = vld [vmem:[%s3988 + $0x20] sm:$0xff]
        %v4298 = vld [vmem:[%s3988 + $0x28] sm:$0x3]
        %v4299 = vld [vmem:[%s3988 + $0x30] sm:$0xff]
        %v4300 = vld [vmem:[%s3988 + $0x38] sm:$0xff]
        %v4301 = vld [vmem:[%s3988 + $0x40] sm:$0x3]
        %v4302 = vld [vmem:[%s3988 + $0x48] sm:$0xff]
        %v4303 = vld [vmem:[%s3988 + $0x50] sm:$0xff]
        %v4304 = vld [vmem:[%s3988 + $0x58] sm:$0x3]
        %v4305 = vld [vmem:[%s3988 + $0x60] sm:$0xff]
        %v4306 = vld [vmem:[%s3988 + $0x68] sm:$0xff]
        %v4307 = vld [vmem:[%s3988 + $0x70] sm:$0x3]
        %v4308 = vld [vmem:[%s3988 + $0x78] sm:$0xff]
        %v4309 = vld [vmem:[%s3988 + $0x80] sm:$0xff]
        %v4310 = vld [vmem:[%s3988 + $0x88] sm:$0x3]
        %v4311 = vld [vmem:[%s3988 + $0x90] sm:$0xff]
        %v4312 = vld [vmem:[%s3988 + $0x98] sm:$0xff]
        %v4313 = vld [vmem:[%s3988 + $0xa0] sm:$0x3]
        %v4314 = vld [vmem:[%s3988 + $0xa8] sm:$0xff]
        %v4315 = vld [vmem:[%s3988 + $0xb0] sm:$0xff]
        %v4316 = vld [vmem:[%s3988 + $0xb8] sm:$0x3]
        %v4317 = vld [vmem:[%s3988 + $0xc0] sm:$0xff]
        %v4318 = vld [vmem:[%s3988 + $0xc8] sm:$0xff]
        %v4319 = vld [vmem:[%s3988 + $0xd0] sm:$0x3]
        %v4320 = vld [vmem:[%s3988 + $0xd8] sm:$0xff]
        %v4321 = vld [vmem:[%s3988 + $0xe0] sm:$0xff]
        %v4322 = vld [vmem:[%s3988 + $0xe8] sm:$0x3]
        %v4323 = vld [vmem:[%s3988 + $0xf0] sm:$0xff]
        %v4324 = vld [vmem:[%s3988 + $0xf8] sm:$0xff]
        %v4325 = vld [vmem:[%s3988 + $0x100] sm:$0x3]
        %v4326 = vld [vmem:[%s3988 + $0x108] sm:$0xff]
        %v4327 = vld [vmem:[%s3988 + $0x110] sm:$0xff]
        %v4328 = vld [vmem:[%s3988 + $0x118] sm:$0x3]
        %v4329 = vld [vmem:[%s3988 + $0x120] sm:$0xff]
        %v4330 = vld [vmem:[%s3988 + $0x128] sm:$0xff]
        %v4331 = vld [vmem:[%s3988 + $0x130] sm:$0x3]
        %v4332 = vld [vmem:[%s3988 + $0x138] sm:$0xff]
        %v4333 = vld [vmem:[%s3988 + $0x140] sm:$0xff]
        %v4334 = vld [vmem:[%s3988 + $0x148] sm:$0x3]
        %v4335 = vld [vmem:[%s3988 + $0x150] sm:$0xff]
        %v4336 = vld [vmem:[%s3988 + $0x158] sm:$0xff]
        %v4337 = vld [vmem:[%s3988 + $0x160] sm:$0x3]
        %v4338 = vld [vmem:[%s3988 + $0x168] sm:$0xff]
        %v4339 = vld [vmem:[%s3988 + $0x170] sm:$0xff]
        %v4340 = vld [vmem:[%s3988 + $0x178] sm:$0x3]
        %v4389 = vrot.slane %v4293, 1
        %v4390 = vrot.slane %v4294, 1
        %v4391 = vsel %vm427, %v4389, %v4390
        %v4392 = vrot.slane %v4295, 1
        %v4393 = vsel %vm427, %v4390, %v4392
        %v4394 = vrot.slane %v4296, 1
        %v4395 = vrot.slane %v4297, 1
        %v4396 = vsel %vm427, %v4394, %v4395
        %v4397 = vrot.slane %v4298, 1
        %v4398 = vsel %vm427, %v4395, %v4397
        %v4399 = vrot.slane %v4299, 1
        %v4400 = vrot.slane %v4300, 1
        %v4401 = vsel %vm427, %v4399, %v4400
        %v4402 = vrot.slane %v4301, 1
        %v4403 = vsel %vm427, %v4400, %v4402
        %v4404 = vrot.slane %v4302, 1
        %v4405 = vrot.slane %v4303, 1
        %v4406 = vsel %vm427, %v4404, %v4405
        %v4407 = vrot.slane %v4304, 1
        %v4408 = vsel %vm427, %v4405, %v4407
        %v4409 = vrot.slane %v4305, 1
        %v4410 = vrot.slane %v4306, 1
        %v4411 = vsel %vm427, %v4409, %v4410
        %v4412 = vrot.slane %v4307, 1
        %v4413 = vsel %vm427, %v4410, %v4412
        %v4414 = vrot.slane %v4308, 1
        %v4415 = vrot.slane %v4309, 1
        %v4416 = vsel %vm427, %v4414, %v4415
        %v4417 = vrot.slane %v4310, 1
        %v4418 = vsel %vm427, %v4415, %v4417
        %v4419 = vrot.slane %v4311, 1
        %v4420 = vrot.slane %v4312, 1
        %v4421 = vsel %vm427, %v4419, %v4420
        %v4422 = vrot.slane %v4313, 1
        %v4423 = vsel %vm427, %v4420, %v4422
        %v4424 = vrot.slane %v4314, 1
        %v4425 = vrot.slane %v4315, 1
        %v4426 = vsel %vm427, %v4424, %v4425
        %v4427 = vrot.slane %v4316, 1
        %v4428 = vsel %vm427, %v4425, %v4427
        %v4429 = vrot.slane %v4317, 1
        %v4430 = vrot.slane %v4318, 1
        %v4431 = vsel %vm427, %v4429, %v4430
        %v4432 = vrot.slane %v4319, 1
        %v4433 = vsel %vm427, %v4430, %v4432
        %v4434 = vrot.slane %v4320, 1
        %v4435 = vrot.slane %v4321, 1
        %v4436 = vsel %vm427, %v4434, %v4435
        %v4437 = vrot.slane %v4322, 1
        %v4438 = vsel %vm427, %v4435, %v4437
        %v4439 = vrot.slane %v4323, 1
        %v4440 = vrot.slane %v4324, 1
        %v4441 = vsel %vm427, %v4439, %v4440
        %v4442 = vrot.slane %v4325, 1
        %v4443 = vsel %vm427, %v4440, %v4442
        %v4444 = vrot.slane %v4326, 1
        %v4445 = vrot.slane %v4327, 1
        %v4446 = vsel %vm427, %v4444, %v4445
        %v4447 = vrot.slane %v4328, 1
        %v4448 = vsel %vm427, %v4445, %v4447
        %v4449 = vrot.slane %v4329, 1
        %v4450 = vrot.slane %v4330, 1
        %v4451 = vsel %vm427, %v4449, %v4450
        %v4452 = vrot.slane %v4331, 1
        %v4453 = vsel %vm427, %v4450, %v4452
        %v4454 = vrot.slane %v4332, 1
        %v4455 = vrot.slane %v4333, 1
        %v4456 = vsel %vm427, %v4454, %v4455
        %v4457 = vrot.slane %v4334, 1
        %v4458 = vsel %vm427, %v4455, %v4457
        %v4459 = vrot.slane %v4335, 1
        %v4460 = vrot.slane %v4336, 1
        %v4461 = vsel %vm427, %v4459, %v4460
        %v4462 = vrot.slane %v4337, 1
        %v4463 = vsel %vm427, %v4460, %v4462
        %v4464 = vrot.slane %v4338, 1
        %v4465 = vrot.slane %v4339, 1
        %v4466 = vsel %vm427, %v4464, %v4465
        %v4467 = vrot.slane %v4340, 1
        %v4468 = vsel %vm427, %v4465, %v4467
        %v4469 = vrot.slane %v4293, 2
        %v4470 = vrot.slane %v4294, 2
        %v4471 = vsel %vm508, %v4469, %v4470
        %v4472 = vrot.slane %v4295, 2
        %v4473 = vsel %vm508, %v4470, %v4472
        %v4474 = vrot.slane %v4296, 2
        %v4475 = vrot.slane %v4297, 2
        %v4476 = vsel %vm508, %v4474, %v4475
        %v4477 = vrot.slane %v4298, 2
        %v4478 = vsel %vm508, %v4475, %v4477
        %v4479 = vrot.slane %v4299, 2
        %v4480 = vrot.slane %v4300, 2
        %v4481 = vsel %vm508, %v4479, %v4480
        %v4482 = vrot.slane %v4301, 2
        %v4483 = vsel %vm508, %v4480, %v4482
        %v4484 = vrot.slane %v4302, 2
        %v4485 = vrot.slane %v4303, 2
        %v4486 = vsel %vm508, %v4484, %v4485
        %v4487 = vrot.slane %v4304, 2
        %v4488 = vsel %vm508, %v4485, %v4487
        %v4489 = vrot.slane %v4305, 2
        %v4490 = vrot.slane %v4306, 2
        %v4491 = vsel %vm508, %v4489, %v4490
        %v4492 = vrot.slane %v4307, 2
        %v4493 = vsel %vm508, %v4490, %v4492
        %v4494 = vrot.slane %v4308, 2
        %v4495 = vrot.slane %v4309, 2
        %v4496 = vsel %vm508, %v4494, %v4495
        %v4497 = vrot.slane %v4310, 2
        %v4498 = vsel %vm508, %v4495, %v4497
        %v4499 = vrot.slane %v4311, 2
        %v4500 = vrot.slane %v4312, 2
        %v4501 = vsel %vm508, %v4499, %v4500
        %v4502 = vrot.slane %v4313, 2
        %v4503 = vsel %vm508, %v4500, %v4502
        %v4504 = vrot.slane %v4314, 2
        %v4505 = vrot.slane %v4315, 2
        %v4506 = vsel %vm508, %v4504, %v4505
        %v4507 = vrot.slane %v4316, 2
        %v4508 = vsel %vm508, %v4505, %v4507
        %v4509 = vrot.slane %v4317, 2
        %v4510 = vrot.slane %v4318, 2
        %v4511 = vsel %vm508, %v4509, %v4510
        %v4512 = vrot.slane %v4319, 2
        %v4513 = vsel %vm508, %v4510, %v4512
        %v4514 = vrot.slane %v4320, 2
        %v4515 = vrot.slane %v4321, 2
        %v4516 = vsel %vm508, %v4514, %v4515
        %v4517 = vrot.slane %v4322, 2
        %v4518 = vsel %vm508, %v4515, %v4517
        %v4519 = vrot.slane %v4323, 2
        %v4520 = vrot.slane %v4324, 2
        %v4521 = vsel %vm508, %v4519, %v4520
        %v4522 = vrot.slane %v4325, 2
        %v4523 = vsel %vm508, %v4520, %v4522
        %v4524 = vrot.slane %v4326, 2
        %v4525 = vrot.slane %v4327, 2
        %v4526 = vsel %vm508, %v4524, %v4525
        %v4527 = vrot.slane %v4328, 2
        %v4528 = vsel %vm508, %v4525, %v4527
        %v4529 = vrot.slane %v4329, 2
        %v4530 = vrot.slane %v4330, 2
        %v4531 = vsel %vm508, %v4529, %v4530
        %v4532 = vrot.slane %v4331, 2
        %v4533 = vsel %vm508, %v4530, %v4532
        %v4534 = vrot.slane %v4332, 2
        %v4535 = vrot.slane %v4333, 2
        %v4536 = vsel %vm508, %v4534, %v4535
        %v4537 = vrot.slane %v4334, 2
        %v4538 = vsel %vm508, %v4535, %v4537
        %v4539 = vrot.slane %v4335, 2
        %v4540 = vrot.slane %v4336, 2
        %v4541 = vsel %vm508, %v4539, %v4540
        %v4542 = vrot.slane %v4337, 2
        %v4543 = vsel %vm508, %v4540, %v4542
        %v4544 = vrot.slane %v4338, 2
        %v4545 = vrot.slane %v4339, 2
        %v4546 = vsel %vm508, %v4544, %v4545
        %v4547 = vrot.slane %v4340, 2
        %v4548 = vsel %vm508, %v4545, %v4547
        %s4549 = scalar_lea.vmem [#allocation2], 48
        %v4550 = vld [vmem:[%s4549] sm:$0xff]
        %v4551 = vld [vmem:[%s4549 + $0x8] sm:$0xff]
        %v4552 = vld [vmem:[%s4549 + $0x10] sm:$0x3]
        %v4553 = vld [vmem:[%s4549 + $0x18] sm:$0xff]
        %v4554 = vld [vmem:[%s4549 + $0x20] sm:$0xff]
        %v4555 = vld [vmem:[%s4549 + $0x28] sm:$0x3]
        %v4556 = vld [vmem:[%s4549 + $0x30] sm:$0xff]
        %v4557 = vld [vmem:[%s4549 + $0x38] sm:$0xff]
        %v4558 = vld [vmem:[%s4549 + $0x40] sm:$0x3]
        %v4559 = vld [vmem:[%s4549 + $0x48] sm:$0xff]
        %v4560 = vld [vmem:[%s4549 + $0x50] sm:$0xff]
        %v4561 = vld [vmem:[%s4549 + $0x58] sm:$0x3]
        %v4562 = vld [vmem:[%s4549 + $0x60] sm:$0xff]
        %v4563 = vld [vmem:[%s4549 + $0x68] sm:$0xff]
        %v4564 = vld [vmem:[%s4549 + $0x70] sm:$0x3]
        %v4565 = vld [vmem:[%s4549 + $0x78] sm:$0xff]
        %v4566 = vld [vmem:[%s4549 + $0x80] sm:$0xff]
        %v4567 = vld [vmem:[%s4549 + $0x88] sm:$0x3]
        %v4568 = vld [vmem:[%s4549 + $0x90] sm:$0xff]
        %v4569 = vld [vmem:[%s4549 + $0x98] sm:$0xff]
        %v4570 = vld [vmem:[%s4549 + $0xa0] sm:$0x3]
        %v4571 = vld [vmem:[%s4549 + $0xa8] sm:$0xff]
        %v4572 = vld [vmem:[%s4549 + $0xb0] sm:$0xff]
        %v4573 = vld [vmem:[%s4549 + $0xb8] sm:$0x3]
        %v4574 = vld [vmem:[%s4549 + $0xc0] sm:$0xff]
        %v4575 = vld [vmem:[%s4549 + $0xc8] sm:$0xff]
        %v4576 = vld [vmem:[%s4549 + $0xd0] sm:$0x3]
        %v4577 = vld [vmem:[%s4549 + $0xd8] sm:$0xff]
        %v4578 = vld [vmem:[%s4549 + $0xe0] sm:$0xff]
        %v4579 = vld [vmem:[%s4549 + $0xe8] sm:$0x3]
        %v4580 = vld [vmem:[%s4549 + $0xf0] sm:$0xff]
        %v4581 = vld [vmem:[%s4549 + $0xf8] sm:$0xff]
        %v4582 = vld [vmem:[%s4549 + $0x100] sm:$0x3]
        %v4583 = vld [vmem:[%s4549 + $0x108] sm:$0xff]
        %v4584 = vld [vmem:[%s4549 + $0x110] sm:$0xff]
        %v4585 = vld [vmem:[%s4549 + $0x118] sm:$0x3]
        %v4586 = vld [vmem:[%s4549 + $0x120] sm:$0xff]
        %v4587 = vld [vmem:[%s4549 + $0x128] sm:$0xff]
        %v4588 = vld [vmem:[%s4549 + $0x130] sm:$0x3]
        %v4589 = vld [vmem:[%s4549 + $0x138] sm:$0xff]
        %v4590 = vld [vmem:[%s4549 + $0x140] sm:$0xff]
        %v4591 = vld [vmem:[%s4549 + $0x148] sm:$0x3]
        %v4592 = vld [vmem:[%s4549 + $0x150] sm:$0xff]
        %v4593 = vld [vmem:[%s4549 + $0x158] sm:$0xff]
        %v4594 = vld [vmem:[%s4549 + $0x160] sm:$0x3]
        %v4595 = vld [vmem:[%s4549 + $0x168] sm:$0xff]
        %v4596 = vld [vmem:[%s4549 + $0x170] sm:$0xff]
        %v4597 = vld [vmem:[%s4549 + $0x178] sm:$0x3]
        %v4646 = vrot.slane %v4550, 1
        %v4647 = vrot.slane %v4551, 1
        %v4648 = vsel %vm427, %v4646, %v4647
        %v4649 = vrot.slane %v4552, 1
        %v4650 = vsel %vm427, %v4647, %v4649
        %v4651 = vrot.slane %v4553, 1
        %v4652 = vrot.slane %v4554, 1
        %v4653 = vsel %vm427, %v4651, %v4652
        %v4654 = vrot.slane %v4555, 1
        %v4655 = vsel %vm427, %v4652, %v4654
        %v4656 = vrot.slane %v4556, 1
        %v4657 = vrot.slane %v4557, 1
        %v4658 = vsel %vm427, %v4656, %v4657
        %v4659 = vrot.slane %v4558, 1
        %v4660 = vsel %vm427, %v4657, %v4659
        %v4661 = vrot.slane %v4559, 1
        %v4662 = vrot.slane %v4560, 1
        %v4663 = vsel %vm427, %v4661, %v4662
        %v4664 = vrot.slane %v4561, 1
        %v4665 = vsel %vm427, %v4662, %v4664
        %v4666 = vrot.slane %v4562, 1
        %v4667 = vrot.slane %v4563, 1
        %v4668 = vsel %vm427, %v4666, %v4667
        %v4669 = vrot.slane %v4564, 1
        %v4670 = vsel %vm427, %v4667, %v4669
        %v4671 = vrot.slane %v4565, 1
        %v4672 = vrot.slane %v4566, 1
        %v4673 = vsel %vm427, %v4671, %v4672
        %v4674 = vrot.slane %v4567, 1
        %v4675 = vsel %vm427, %v4672, %v4674
        %v4676 = vrot.slane %v4568, 1
        %v4677 = vrot.slane %v4569, 1
        %v4678 = vsel %vm427, %v4676, %v4677
        %v4679 = vrot.slane %v4570, 1
        %v4680 = vsel %vm427, %v4677, %v4679
        %v4681 = vrot.slane %v4571, 1
        %v4682 = vrot.slane %v4572, 1
        %v4683 = vsel %vm427, %v4681, %v4682
        %v4684 = vrot.slane %v4573, 1
        %v4685 = vsel %vm427, %v4682, %v4684
        %v4686 = vrot.slane %v4574, 1
        %v4687 = vrot.slane %v4575, 1
        %v4688 = vsel %vm427, %v4686, %v4687
        %v4689 = vrot.slane %v4576, 1
        %v4690 = vsel %vm427, %v4687, %v4689
        %v4691 = vrot.slane %v4577, 1
        %v4692 = vrot.slane %v4578, 1
        %v4693 = vsel %vm427, %v4691, %v4692
        %v4694 = vrot.slane %v4579, 1
        %v4695 = vsel %vm427, %v4692, %v4694
        %v4696 = vrot.slane %v4580, 1
        %v4697 = vrot.slane %v4581, 1
        %v4698 = vsel %vm427, %v4696, %v4697
        %v4699 = vrot.slane %v4582, 1
        %v4700 = vsel %vm427, %v4697, %v4699
        %v4701 = vrot.slane %v4583, 1
        %v4702 = vrot.slane %v4584, 1
        %v4703 = vsel %vm427, %v4701, %v4702
        %v4704 = vrot.slane %v4585, 1
        %v4705 = vsel %vm427, %v4702, %v4704
        %v4706 = vrot.slane %v4586, 1
        %v4707 = vrot.slane %v4587, 1
        %v4708 = vsel %vm427, %v4706, %v4707
        %v4709 = vrot.slane %v4588, 1
        %v4710 = vsel %vm427, %v4707, %v4709
        %v4711 = vrot.slane %v4589, 1
        %v4712 = vrot.slane %v4590, 1
        %v4713 = vsel %vm427, %v4711, %v4712
        %v4714 = vrot.slane %v4591, 1
        %v4715 = vsel %vm427, %v4712, %v4714
        %v4716 = vrot.slane %v4592, 1
        %v4717 = vrot.slane %v4593, 1
        %v4718 = vsel %vm427, %v4716, %v4717
        %v4719 = vrot.slane %v4594, 1
        %v4720 = vsel %vm427, %v4717, %v4719
        %v4721 = vrot.slane %v4595, 1
        %v4722 = vrot.slane %v4596, 1
        %v4723 = vsel %vm427, %v4721, %v4722
        %v4724 = vrot.slane %v4597, 1
        %v4725 = vsel %vm427, %v4722, %v4724
        %v4726 = vrot.slane %v4550, 2
        %v4727 = vrot.slane %v4551, 2
        %v4728 = vsel %vm508, %v4726, %v4727
        %v4729 = vrot.slane %v4552, 2
        %v4730 = vsel %vm508, %v4727, %v4729
        %v4731 = vrot.slane %v4553, 2
        %v4732 = vrot.slane %v4554, 2
        %v4733 = vsel %vm508, %v4731, %v4732
        %v4734 = vrot.slane %v4555, 2
        %v4735 = vsel %vm508, %v4732, %v4734
        %v4736 = vrot.slane %v4556, 2
        %v4737 = vrot.slane %v4557, 2
        %v4738 = vsel %vm508, %v4736, %v4737
        %v4739 = vrot.slane %v4558, 2
        %v4740 = vsel %vm508, %v4737, %v4739
        %v4741 = vrot.slane %v4559, 2
        %v4742 = vrot.slane %v4560, 2
        %v4743 = vsel %vm508, %v4741, %v4742
        %v4744 = vrot.slane %v4561, 2
        %v4745 = vsel %vm508, %v4742, %v4744
        %v4746 = vrot.slane %v4562, 2
        %v4747 = vrot.slane %v4563, 2
        %v4748 = vsel %vm508, %v4746, %v4747
        %v4749 = vrot.slane %v4564, 2
        %v4750 = vsel %vm508, %v4747, %v4749
        %v4751 = vrot.slane %v4565, 2
        %v4752 = vrot.slane %v4566, 2
        %v4753 = vsel %vm508, %v4751, %v4752
        %v4754 = vrot.slane %v4567, 2
        %v4755 = vsel %vm508, %v4752, %v4754
        %v4756 = vrot.slane %v4568, 2
        %v4757 = vrot.slane %v4569, 2
        %v4758 = vsel %vm508, %v4756, %v4757
        %v4759 = vrot.slane %v4570, 2
        %v4760 = vsel %vm508, %v4757, %v4759
        %v4761 = vrot.slane %v4571, 2
        %v4762 = vrot.slane %v4572, 2
        %v4763 = vsel %vm508, %v4761, %v4762
        %v4764 = vrot.slane %v4573, 2
        %v4765 = vsel %vm508, %v4762, %v4764
        %v4766 = vrot.slane %v4574, 2
        %v4767 = vrot.slane %v4575, 2
        %v4768 = vsel %vm508, %v4766, %v4767
        %v4769 = vrot.slane %v4576, 2
        %v4770 = vsel %vm508, %v4767, %v4769
        %v4771 = vrot.slane %v4577, 2
        %v4772 = vrot.slane %v4578, 2
        %v4773 = vsel %vm508, %v4771, %v4772
        %v4774 = vrot.slane %v4579, 2
        %v4775 = vsel %vm508, %v4772, %v4774
        %v4776 = vrot.slane %v4580, 2
        %v4777 = vrot.slane %v4581, 2
        %v4778 = vsel %vm508, %v4776, %v4777
        %v4779 = vrot.slane %v4582, 2
        %v4780 = vsel %vm508, %v4777, %v4779
        %v4781 = vrot.slane %v4583, 2
        %v4782 = vrot.slane %v4584, 2
        %v4783 = vsel %vm508, %v4781, %v4782
        %v4784 = vrot.slane %v4585, 2
        %v4785 = vsel %vm508, %v4782, %v4784
        %v4786 = vrot.slane %v4586, 2
        %v4787 = vrot.slane %v4587, 2
        %v4788 = vsel %vm508, %v4786, %v4787
        %v4789 = vrot.slane %v4588, 2
        %v4790 = vsel %vm508, %v4787, %v4789
        %v4791 = vrot.slane %v4589, 2
        %v4792 = vrot.slane %v4590, 2
        %v4793 = vsel %vm508, %v4791, %v4792
        %v4794 = vrot.slane %v4591, 2
        %v4795 = vsel %vm508, %v4792, %v4794
        %v4796 = vrot.slane %v4592, 2
        %v4797 = vrot.slane %v4593, 2
        %v4798 = vsel %vm508, %v4796, %v4797
        %v4799 = vrot.slane %v4594, 2
        %v4800 = vsel %vm508, %v4797, %v4799
        %v4801 = vrot.slane %v4595, 2
        %v4802 = vrot.slane %v4596, 2
        %v4803 = vsel %vm508, %v4801, %v4802
        %v4804 = vrot.slane %v4597, 2
        %v4805 = vsel %vm508, %v4802, %v4804
        %4806 = vrot.lane.b32.xlu0 %v4135, 20
        %v4807 = vpop.permute.xlu0 %4806
        %4808 = vrot.lane.b32.xlu0 %v4137, 20
        %v4809 = vpop.permute.xlu0 %4808
        %4810 = vrot.lane.b32.xlu0 %v4140, 20
        %v4811 = vpop.permute.xlu0 %4810
        %4812 = vrot.lane.b32.xlu0 %v4142, 20
        %v4813 = vpop.permute.xlu0 %4812
        %4814 = vrot.lane.b32.xlu0 %v4145, 20
        %v4815 = vpop.permute.xlu0 %4814
        %4816 = vrot.lane.b32.xlu0 %v4147, 20
        %v4817 = vpop.permute.xlu0 %4816
        %4818 = vrot.lane.b32.xlu0 %v4150, 20
        %v4819 = vpop.permute.xlu0 %4818
        %4820 = vrot.lane.b32.xlu0 %v4152, 20
        %v4821 = vpop.permute.xlu0 %4820
        %4822 = vrot.lane.b32.xlu0 %v4155, 20
        %v4823 = vpop.permute.xlu0 %4822
        %4824 = vrot.lane.b32.xlu0 %v4157, 20
        %v4825 = vpop.permute.xlu0 %4824
        %4826 = vrot.lane.b32.xlu0 %v4160, 20
        %v4827 = vpop.permute.xlu0 %4826
        %4828 = vrot.lane.b32.xlu0 %v4162, 20
        %v4829 = vpop.permute.xlu0 %4828
        %4830 = vrot.lane.b32.xlu0 %v4165, 20
        %v4831 = vpop.permute.xlu0 %4830
        %4832 = vrot.lane.b32.xlu0 %v4167, 20
        %v4833 = vpop.permute.xlu0 %4832
        %4834 = vrot.lane.b32.xlu0 %v4170, 20
        %v4835 = vpop.permute.xlu0 %4834
        %4836 = vrot.lane.b32.xlu0 %v4172, 20
        %v4837 = vpop.permute.xlu0 %4836
        %4838 = vrot.lane.b32.xlu0 %v4175, 20
        %v4839 = vpop.permute.xlu0 %4838
        %4840 = vrot.lane.b32.xlu0 %v4177, 20
        %v4841 = vpop.permute.xlu0 %4840
        %4842 = vrot.lane.b32.xlu0 %v4180, 20
        %v4843 = vpop.permute.xlu0 %4842
        %4844 = vrot.lane.b32.xlu0 %v4182, 20
        %v4845 = vpop.permute.xlu0 %4844
        %4846 = vrot.lane.b32.xlu0 %v4185, 20
        %v4847 = vpop.permute.xlu0 %4846
        %4848 = vrot.lane.b32.xlu0 %v4187, 20
        %v4849 = vpop.permute.xlu0 %4848
        %4850 = vrot.lane.b32.xlu0 %v4190, 20
        %v4851 = vpop.permute.xlu0 %4850
        %4852 = vrot.lane.b32.xlu0 %v4192, 20
        %v4853 = vpop.permute.xlu0 %4852
        %4854 = vrot.lane.b32.xlu0 %v4195, 20
        %v4855 = vpop.permute.xlu0 %4854
        %4856 = vrot.lane.b32.xlu0 %v4197, 20
        %v4857 = vpop.permute.xlu0 %4856
        %4858 = vrot.lane.b32.xlu0 %v4200, 20
        %v4859 = vpop.permute.xlu0 %4858
        %4860 = vrot.lane.b32.xlu0 %v4202, 20
        %v4861 = vpop.permute.xlu0 %4860
        %4862 = vrot.lane.b32.xlu0 %v4205, 20
        %v4863 = vpop.permute.xlu0 %4862
        %4864 = vrot.lane.b32.xlu0 %v4207, 20
        %v4865 = vpop.permute.xlu0 %4864
        %4866 = vrot.lane.b32.xlu0 %v4210, 20
        %v4867 = vpop.permute.xlu0 %4866
        %4868 = vrot.lane.b32.xlu0 %v4212, 20
        %v4869 = vpop.permute.xlu0 %4868
        %4902 = vrot.lane.b32.xlu0 %v4215, 40
        %v4903 = vpop.permute.xlu0 %4902
        %4904 = vrot.lane.b32.xlu0 %v4217, 40
        %v4905 = vpop.permute.xlu0 %4904
        %4906 = vrot.lane.b32.xlu0 %v4220, 40
        %v4907 = vpop.permute.xlu0 %4906
        %4908 = vrot.lane.b32.xlu0 %v4222, 40
        %v4909 = vpop.permute.xlu0 %4908
        %4910 = vrot.lane.b32.xlu0 %v4225, 40
        %v4911 = vpop.permute.xlu0 %4910
        %4912 = vrot.lane.b32.xlu0 %v4227, 40
        %v4913 = vpop.permute.xlu0 %4912
        %4914 = vrot.lane.b32.xlu0 %v4230, 40
        %v4915 = vpop.permute.xlu0 %4914
        %4916 = vrot.lane.b32.xlu0 %v4232, 40
        %v4917 = vpop.permute.xlu0 %4916
        %4918 = vrot.lane.b32.xlu0 %v4235, 40
        %v4919 = vpop.permute.xlu0 %4918
        %4920 = vrot.lane.b32.xlu0 %v4237, 40
        %v4921 = vpop.permute.xlu0 %4920
        %4922 = vrot.lane.b32.xlu0 %v4240, 40
        %v4923 = vpop.permute.xlu0 %4922
        %4924 = vrot.lane.b32.xlu0 %v4242, 40
        %v4925 = vpop.permute.xlu0 %4924
        %4926 = vrot.lane.b32.xlu0 %v4245, 40
        %v4927 = vpop.permute.xlu0 %4926
        %4928 = vrot.lane.b32.xlu0 %v4247, 40
        %v4929 = vpop.permute.xlu0 %4928
        %4930 = vrot.lane.b32.xlu0 %v4250, 40
        %v4931 = vpop.permute.xlu0 %4930
        %4932 = vrot.lane.b32.xlu0 %v4252, 40
        %v4933 = vpop.permute.xlu0 %4932
        %4934 = vrot.lane.b32.xlu0 %v4255, 40
        %v4935 = vpop.permute.xlu0 %4934
        %4936 = vrot.lane.b32.xlu0 %v4257, 40
        %v4937 = vpop.permute.xlu0 %4936
        %4938 = vrot.lane.b32.xlu0 %v4260, 40
        %v4939 = vpop.permute.xlu0 %4938
        %4940 = vrot.lane.b32.xlu0 %v4262, 40
        %v4941 = vpop.permute.xlu0 %4940
        %4942 = vrot.lane.b32.xlu0 %v4265, 40
        %v4943 = vpop.permute.xlu0 %4942
        %4944 = vrot.lane.b32.xlu0 %v4267, 40
        %v4945 = vpop.permute.xlu0 %4944
        %4946 = vrot.lane.b32.xlu0 %v4270, 40
        %v4947 = vpop.permute.xlu0 %4946
        %4948 = vrot.lane.b32.xlu0 %v4272, 40
        %v4949 = vpop.permute.xlu0 %4948
        %4950 = vrot.lane.b32.xlu0 %v4275, 40
        %v4951 = vpop.permute.xlu0 %4950
        %4952 = vrot.lane.b32.xlu0 %v4277, 40
        %v4953 = vpop.permute.xlu0 %4952
        %4954 = vrot.lane.b32.xlu0 %v4280, 40
        %v4955 = vpop.permute.xlu0 %4954
        %4956 = vrot.lane.b32.xlu0 %v4282, 40
        %v4957 = vpop.permute.xlu0 %4956
        %4958 = vrot.lane.b32.xlu0 %v4285, 40
        %v4959 = vpop.permute.xlu0 %4958
        %4960 = vrot.lane.b32.xlu0 %v4287, 40
        %v4961 = vpop.permute.xlu0 %4960
        %4962 = vrot.lane.b32.xlu0 %v4290, 40
        %v4963 = vpop.permute.xlu0 %4962
        %4964 = vrot.lane.b32.xlu0 %v4292, 40
        %v4965 = vpop.permute.xlu0 %4964
        %4998 = vrot.lane.b32.xlu0 %v4293, 60
        %v4999 = vpop.permute.xlu0 %4998
        %5000 = vrot.lane.b32.xlu0 %v4294, 60
        %v5001 = vpop.permute.xlu0 %5000
        %5002 = vrot.lane.b32.xlu0 %v4296, 60
        %v5003 = vpop.permute.xlu0 %5002
        %5004 = vrot.lane.b32.xlu0 %v4297, 60
        %v5005 = vpop.permute.xlu0 %5004
        %5006 = vrot.lane.b32.xlu0 %v4299, 60
        %v5007 = vpop.permute.xlu0 %5006
        %5008 = vrot.lane.b32.xlu0 %v4300, 60
        %v5009 = vpop.permute.xlu0 %5008
        %5010 = vrot.lane.b32.xlu0 %v4302, 60
        %v5011 = vpop.permute.xlu0 %5010
        %5012 = vrot.lane.b32.xlu0 %v4303, 60
        %v5013 = vpop.permute.xlu0 %5012
        %5014 = vrot.lane.b32.xlu0 %v4305, 60
        %v5015 = vpop.permute.xlu0 %5014
        %5016 = vrot.lane.b32.xlu0 %v4306, 60
        %v5017 = vpop.permute.xlu0 %5016
        %5018 = vrot.lane.b32.xlu0 %v4308, 60
        %v5019 = vpop.permute.xlu0 %5018
        %5020 = vrot.lane.b32.xlu0 %v4309, 60
        %v5021 = vpop.permute.xlu0 %5020
        %5022 = vrot.lane.b32.xlu0 %v4311, 60
        %v5023 = vpop.permute.xlu0 %5022
        %5024 = vrot.lane.b32.xlu0 %v4312, 60
        %v5025 = vpop.permute.xlu0 %5024
        %5026 = vrot.lane.b32.xlu0 %v4314, 60
        %v5027 = vpop.permute.xlu0 %5026
        %5028 = vrot.lane.b32.xlu0 %v4315, 60
        %v5029 = vpop.permute.xlu0 %5028
        %5030 = vrot.lane.b32.xlu0 %v4317, 60
        %v5031 = vpop.permute.xlu0 %5030
        %5032 = vrot.lane.b32.xlu0 %v4318, 60
        %v5033 = vpop.permute.xlu0 %5032
        %5034 = vrot.lane.b32.xlu0 %v4320, 60
        %v5035 = vpop.permute.xlu0 %5034
        %5036 = vrot.lane.b32.xlu0 %v4321, 60
        %v5037 = vpop.permute.xlu0 %5036
        %5038 = vrot.lane.b32.xlu0 %v4323, 60
        %v5039 = vpop.permute.xlu0 %5038
        %5040 = vrot.lane.b32.xlu0 %v4324, 60
        %v5041 = vpop.permute.xlu0 %5040
        %5042 = vrot.lane.b32.xlu0 %v4326, 60
        %v5043 = vpop.permute.xlu0 %5042
        %5044 = vrot.lane.b32.xlu0 %v4327, 60
        %v5045 = vpop.permute.xlu0 %5044
        %5046 = vrot.lane.b32.xlu0 %v4329, 60
        %v5047 = vpop.permute.xlu0 %5046
        %5048 = vrot.lane.b32.xlu0 %v4330, 60
        %v5049 = vpop.permute.xlu0 %5048
        %5050 = vrot.lane.b32.xlu0 %v4332, 60
        %v5051 = vpop.permute.xlu0 %5050
        %5052 = vrot.lane.b32.xlu0 %v4333, 60
        %v5053 = vpop.permute.xlu0 %5052
        %5054 = vrot.lane.b32.xlu0 %v4335, 60
        %v5055 = vpop.permute.xlu0 %5054
        %5056 = vrot.lane.b32.xlu0 %v4336, 60
        %v5057 = vpop.permute.xlu0 %5056
        %5058 = vrot.lane.b32.xlu0 %v4338, 60
        %v5059 = vpop.permute.xlu0 %5058
        %5060 = vrot.lane.b32.xlu0 %v4339, 60
        %v5061 = vpop.permute.xlu0 %5060
        %5094 = vrot.lane.b32.xlu0 %v4391, 80
        %v5095 = vpop.permute.xlu0 %5094
        %5096 = vrot.lane.b32.xlu0 %v4393, 80
        %v5097 = vpop.permute.xlu0 %5096
        %5098 = vrot.lane.b32.xlu0 %v4396, 80
        %v5099 = vpop.permute.xlu0 %5098
        %5100 = vrot.lane.b32.xlu0 %v4398, 80
        %v5101 = vpop.permute.xlu0 %5100
        %5102 = vrot.lane.b32.xlu0 %v4401, 80
        %v5103 = vpop.permute.xlu0 %5102
        %5104 = vrot.lane.b32.xlu0 %v4403, 80
        %v5105 = vpop.permute.xlu0 %5104
        %5106 = vrot.lane.b32.xlu0 %v4406, 80
        %v5107 = vpop.permute.xlu0 %5106
        %5108 = vrot.lane.b32.xlu0 %v4408, 80
        %v5109 = vpop.permute.xlu0 %5108
        %5110 = vrot.lane.b32.xlu0 %v4411, 80
        %v5111 = vpop.permute.xlu0 %5110
        %5112 = vrot.lane.b32.xlu0 %v4413, 80
        %v5113 = vpop.permute.xlu0 %5112
        %5114 = vrot.lane.b32.xlu0 %v4416, 80
        %v5115 = vpop.permute.xlu0 %5114
        %5116 = vrot.lane.b32.xlu0 %v4418, 80
        %v5117 = vpop.permute.xlu0 %5116
        %5118 = vrot.lane.b32.xlu0 %v4421, 80
        %v5119 = vpop.permute.xlu0 %5118
        %5120 = vrot.lane.b32.xlu0 %v4423, 80
        %v5121 = vpop.permute.xlu0 %5120
        %5122 = vrot.lane.b32.xlu0 %v4426, 80
        %v5123 = vpop.permute.xlu0 %5122
        %5124 = vrot.lane.b32.xlu0 %v4428, 80
        %v5125 = vpop.permute.xlu0 %5124
        %5126 = vrot.lane.b32.xlu0 %v4431, 80
        %v5127 = vpop.permute.xlu0 %5126
        %5128 = vrot.lane.b32.xlu0 %v4433, 80
        %v5129 = vpop.permute.xlu0 %5128
        %5130 = vrot.lane.b32.xlu0 %v4436, 80
        %v5131 = vpop.permute.xlu0 %5130
        %5132 = vrot.lane.b32.xlu0 %v4438, 80
        %v5133 = vpop.permute.xlu0 %5132
        %5134 = vrot.lane.b32.xlu0 %v4441, 80
        %v5135 = vpop.permute.xlu0 %5134
        %5136 = vrot.lane.b32.xlu0 %v4443, 80
        %v5137 = vpop.permute.xlu0 %5136
        %5138 = vrot.lane.b32.xlu0 %v4446, 80
        %v5139 = vpop.permute.xlu0 %5138
        %5140 = vrot.lane.b32.xlu0 %v4448, 80
        %v5141 = vpop.permute.xlu0 %5140
        %5142 = vrot.lane.b32.xlu0 %v4451, 80
        %v5143 = vpop.permute.xlu0 %5142
        %5144 = vrot.lane.b32.xlu0 %v4453, 80
        %v5145 = vpop.permute.xlu0 %5144
        %5146 = vrot.lane.b32.xlu0 %v4456, 80
        %v5147 = vpop.permute.xlu0 %5146
        %5148 = vrot.lane.b32.xlu0 %v4458, 80
        %v5149 = vpop.permute.xlu0 %5148
        %5150 = vrot.lane.b32.xlu0 %v4461, 80
        %v5151 = vpop.permute.xlu0 %5150
        %5152 = vrot.lane.b32.xlu0 %v4463, 80
        %v5153 = vpop.permute.xlu0 %5152
        %5154 = vrot.lane.b32.xlu0 %v4466, 80
        %v5155 = vpop.permute.xlu0 %5154
        %5156 = vrot.lane.b32.xlu0 %v4468, 80
        %v5157 = vpop.permute.xlu0 %5156
        %5190 = vrot.lane.b32.xlu0 %v4471, 100
        %v5191 = vpop.permute.xlu0 %5190
        %5192 = vrot.lane.b32.xlu0 %v4473, 100
        %v5193 = vpop.permute.xlu0 %5192
        %5194 = vrot.lane.b32.xlu0 %v4476, 100
        %v5195 = vpop.permute.xlu0 %5194
        %5196 = vrot.lane.b32.xlu0 %v4478, 100
        %v5197 = vpop.permute.xlu0 %5196
        %5198 = vrot.lane.b32.xlu0 %v4481, 100
        %v5199 = vpop.permute.xlu0 %5198
        %5200 = vrot.lane.b32.xlu0 %v4483, 100
        %v5201 = vpop.permute.xlu0 %5200
        %5202 = vrot.lane.b32.xlu0 %v4486, 100
        %v5203 = vpop.permute.xlu0 %5202
        %5204 = vrot.lane.b32.xlu0 %v4488, 100
        %v5205 = vpop.permute.xlu0 %5204
        %5206 = vrot.lane.b32.xlu0 %v4491, 100
        %v5207 = vpop.permute.xlu0 %5206
        %5208 = vrot.lane.b32.xlu0 %v4493, 100
        %v5209 = vpop.permute.xlu0 %5208
        %5210 = vrot.lane.b32.xlu0 %v4496, 100
        %v5211 = vpop.permute.xlu0 %5210
        %5212 = vrot.lane.b32.xlu0 %v4498, 100
        %v5213 = vpop.permute.xlu0 %5212
        %5214 = vrot.lane.b32.xlu0 %v4501, 100
        %v5215 = vpop.permute.xlu0 %5214
        %5216 = vrot.lane.b32.xlu0 %v4503, 100
        %v5217 = vpop.permute.xlu0 %5216
        %5218 = vrot.lane.b32.xlu0 %v4506, 100
        %v5219 = vpop.permute.xlu0 %5218
        %5220 = vrot.lane.b32.xlu0 %v4508, 100
        %v5221 = vpop.permute.xlu0 %5220
        %5222 = vrot.lane.b32.xlu0 %v4511, 100
        %v5223 = vpop.permute.xlu0 %5222
        %5224 = vrot.lane.b32.xlu0 %v4513, 100
        %v5225 = vpop.permute.xlu0 %5224
        %5226 = vrot.lane.b32.xlu0 %v4516, 100
        %v5227 = vpop.permute.xlu0 %5226
        %5228 = vrot.lane.b32.xlu0 %v4518, 100
        %v5229 = vpop.permute.xlu0 %5228
        %5230 = vrot.lane.b32.xlu0 %v4521, 100
        %v5231 = vpop.permute.xlu0 %5230
        %5232 = vrot.lane.b32.xlu0 %v4523, 100
        %v5233 = vpop.permute.xlu0 %5232
        %5234 = vrot.lane.b32.xlu0 %v4526, 100
        %v5235 = vpop.permute.xlu0 %5234
        %5236 = vrot.lane.b32.xlu0 %v4528, 100
        %v5237 = vpop.permute.xlu0 %5236
        %5238 = vrot.lane.b32.xlu0 %v4531, 100
        %v5239 = vpop.permute.xlu0 %5238
        %5240 = vrot.lane.b32.xlu0 %v4533, 100
        %v5241 = vpop.permute.xlu0 %5240
        %5242 = vrot.lane.b32.xlu0 %v4536, 100
        %v5243 = vpop.permute.xlu0 %5242
        %5244 = vrot.lane.b32.xlu0 %v4538, 100
        %v5245 = vpop.permute.xlu0 %5244
        %5246 = vrot.lane.b32.xlu0 %v4541, 100
        %v5247 = vpop.permute.xlu0 %5246
        %5248 = vrot.lane.b32.xlu0 %v4543, 100
        %v5249 = vpop.permute.xlu0 %5248
        %5250 = vrot.lane.b32.xlu0 %v4546, 100
        %v5251 = vpop.permute.xlu0 %5250
        %5252 = vrot.lane.b32.xlu0 %v4548, 100
        %v5253 = vpop.permute.xlu0 %5252
        %5286 = vrot.lane.b32.xlu0 %v4550, 120
        %v5287 = vpop.permute.xlu0 %5286
        %5288 = vrot.lane.b32.xlu0 %v4551, 120
        %v5289 = vpop.permute.xlu0 %5288
        %5290 = vrot.lane.b32.xlu0 %v4553, 120
        %v5291 = vpop.permute.xlu0 %5290
        %5292 = vrot.lane.b32.xlu0 %v4554, 120
        %v5293 = vpop.permute.xlu0 %5292
        %5294 = vrot.lane.b32.xlu0 %v4556, 120
        %v5295 = vpop.permute.xlu0 %5294
        %5296 = vrot.lane.b32.xlu0 %v4557, 120
        %v5297 = vpop.permute.xlu0 %5296
        %5298 = vrot.lane.b32.xlu0 %v4559, 120
        %v5299 = vpop.permute.xlu0 %5298
        %5300 = vrot.lane.b32.xlu0 %v4560, 120
        %v5301 = vpop.permute.xlu0 %5300
        %5302 = vrot.lane.b32.xlu0 %v4562, 120
        %v5303 = vpop.permute.xlu0 %5302
        %5304 = vrot.lane.b32.xlu0 %v4563, 120
        %v5305 = vpop.permute.xlu0 %5304
        %5306 = vrot.lane.b32.xlu0 %v4565, 120
        %v5307 = vpop.permute.xlu0 %5306
        %5308 = vrot.lane.b32.xlu0 %v4566, 120
        %v5309 = vpop.permute.xlu0 %5308
        %5310 = vrot.lane.b32.xlu0 %v4568, 120
        %v5311 = vpop.permute.xlu0 %5310
        %5312 = vrot.lane.b32.xlu0 %v4569, 120
        %v5313 = vpop.permute.xlu0 %5312
        %5314 = vrot.lane.b32.xlu0 %v4571, 120
        %v5315 = vpop.permute.xlu0 %5314
        %5316 = vrot.lane.b32.xlu0 %v4572, 120
        %v5317 = vpop.permute.xlu0 %5316
        %5318 = vrot.lane.b32.xlu0 %v4574, 120
        %v5319 = vpop.permute.xlu0 %5318
        %5320 = vrot.lane.b32.xlu0 %v4575, 120
        %v5321 = vpop.permute.xlu0 %5320
        %5322 = vrot.lane.b32.xlu0 %v4577, 120
        %v5323 = vpop.permute.xlu0 %5322
        %5324 = vrot.lane.b32.xlu0 %v4578, 120
        %v5325 = vpop.permute.xlu0 %5324
        %5326 = vrot.lane.b32.xlu0 %v4580, 120
        %v5327 = vpop.permute.xlu0 %5326
        %5328 = vrot.lane.b32.xlu0 %v4581, 120
        %v5329 = vpop.permute.xlu0 %5328
        %5330 = vrot.lane.b32.xlu0 %v4583, 120
        %v5331 = vpop.permute.xlu0 %5330
        %5332 = vrot.lane.b32.xlu0 %v4584, 120
        %v5333 = vpop.permute.xlu0 %5332
        %5334 = vrot.lane.b32.xlu0 %v4586, 120
        %v5335 = vpop.permute.xlu0 %5334
        %5336 = vrot.lane.b32.xlu0 %v4587, 120
        %v5337 = vpop.permute.xlu0 %5336
        %5338 = vrot.lane.b32.xlu0 %v4589, 120
        %v5339 = vpop.permute.xlu0 %5338
        %5340 = vrot.lane.b32.xlu0 %v4590, 120
        %v5341 = vpop.permute.xlu0 %5340
        %5342 = vrot.lane.b32.xlu0 %v4592, 120
        %v5343 = vpop.permute.xlu0 %5342
        %5344 = vrot.lane.b32.xlu0 %v4593, 120
        %v5345 = vpop.permute.xlu0 %5344
        %5346 = vrot.lane.b32.xlu0 %v4595, 120
        %v5347 = vpop.permute.xlu0 %5346
        %5348 = vrot.lane.b32.xlu0 %v4596, 120
        %v5349 = vpop.permute.xlu0 %5348
        %5382 = vrot.lane.b32.xlu0 %v4648, 12
        %v5383 = vpop.permute.xlu0 %5382
        %5384 = vrot.lane.b32.xlu0 %v4650, 12
        %v5385 = vpop.permute.xlu0 %5384
        %5386 = vrot.lane.b32.xlu0 %v4653, 12
        %v5387 = vpop.permute.xlu0 %5386
        %5388 = vrot.lane.b32.xlu0 %v4655, 12
        %v5389 = vpop.permute.xlu0 %5388
        %5390 = vrot.lane.b32.xlu0 %v4658, 12
        %v5391 = vpop.permute.xlu0 %5390
        %5392 = vrot.lane.b32.xlu0 %v4660, 12
        %v5393 = vpop.permute.xlu0 %5392
        %5394 = vrot.lane.b32.xlu0 %v4663, 12
        %v5395 = vpop.permute.xlu0 %5394
        %5396 = vrot.lane.b32.xlu0 %v4665, 12
        %v5397 = vpop.permute.xlu0 %5396
        %5398 = vrot.lane.b32.xlu0 %v4668, 12
        %v5399 = vpop.permute.xlu0 %5398
        %5400 = vrot.lane.b32.xlu0 %v4670, 12
        %v5401 = vpop.permute.xlu0 %5400
        %5402 = vrot.lane.b32.xlu0 %v4673, 12
        %v5403 = vpop.permute.xlu0 %5402
        %5404 = vrot.lane.b32.xlu0 %v4675, 12
        %v5405 = vpop.permute.xlu0 %5404
        %5406 = vrot.lane.b32.xlu0 %v4678, 12
        %v5407 = vpop.permute.xlu0 %5406
        %5408 = vrot.lane.b32.xlu0 %v4680, 12
        %v5409 = vpop.permute.xlu0 %5408
        %5410 = vrot.lane.b32.xlu0 %v4683, 12
        %v5411 = vpop.permute.xlu0 %5410
        %5412 = vrot.lane.b32.xlu0 %v4685, 12
        %v5413 = vpop.permute.xlu0 %5412
        %5414 = vrot.lane.b32.xlu0 %v4688, 12
        %v5415 = vpop.permute.xlu0 %5414
        %5416 = vrot.lane.b32.xlu0 %v4690, 12
        %v5417 = vpop.permute.xlu0 %5416
        %5418 = vrot.lane.b32.xlu0 %v4693, 12
        %v5419 = vpop.permute.xlu0 %5418
        %5420 = vrot.lane.b32.xlu0 %v4695, 12
        %v5421 = vpop.permute.xlu0 %5420
        %5422 = vrot.lane.b32.xlu0 %v4698, 12
        %v5423 = vpop.permute.xlu0 %5422
        %5424 = vrot.lane.b32.xlu0 %v4700, 12
        %v5425 = vpop.permute.xlu0 %5424
        %5426 = vrot.lane.b32.xlu0 %v4703, 12
        %v5427 = vpop.permute.xlu0 %5426
        %5428 = vrot.lane.b32.xlu0 %v4705, 12
        %v5429 = vpop.permute.xlu0 %5428
        %5430 = vrot.lane.b32.xlu0 %v4708, 12
        %v5431 = vpop.permute.xlu0 %5430
        %5432 = vrot.lane.b32.xlu0 %v4710, 12
        %v5433 = vpop.permute.xlu0 %5432
        %5434 = vrot.lane.b32.xlu0 %v4713, 12
        %v5435 = vpop.permute.xlu0 %5434
        %5436 = vrot.lane.b32.xlu0 %v4715, 12
        %v5437 = vpop.permute.xlu0 %5436
        %5438 = vrot.lane.b32.xlu0 %v4718, 12
        %v5439 = vpop.permute.xlu0 %5438
        %5440 = vrot.lane.b32.xlu0 %v4720, 12
        %v5441 = vpop.permute.xlu0 %5440
        %5442 = vrot.lane.b32.xlu0 %v4723, 12
        %v5443 = vpop.permute.xlu0 %5442
        %5444 = vrot.lane.b32.xlu0 %v4725, 12
        %v5445 = vpop.permute.xlu0 %5444
        %5478 = vrot.lane.b32.xlu0 %v4728, 32
        %v5479 = vpop.permute.xlu0 %5478
        %5480 = vrot.lane.b32.xlu0 %v4730, 32
        %v5481 = vpop.permute.xlu0 %5480
        %5482 = vrot.lane.b32.xlu0 %v4733, 32
        %v5483 = vpop.permute.xlu0 %5482
        %5484 = vrot.lane.b32.xlu0 %v4735, 32
        %v5485 = vpop.permute.xlu0 %5484
        %5486 = vrot.lane.b32.xlu0 %v4738, 32
        %v5487 = vpop.permute.xlu0 %5486
        %5488 = vrot.lane.b32.xlu0 %v4740, 32
        %v5489 = vpop.permute.xlu0 %5488
        %5490 = vrot.lane.b32.xlu0 %v4743, 32
        %v5491 = vpop.permute.xlu0 %5490
        %5492 = vrot.lane.b32.xlu0 %v4745, 32
        %v5493 = vpop.permute.xlu0 %5492
        %5494 = vrot.lane.b32.xlu0 %v4748, 32
        %v5495 = vpop.permute.xlu0 %5494
        %5496 = vrot.lane.b32.xlu0 %v4750, 32
        %v5497 = vpop.permute.xlu0 %5496
        %5498 = vrot.lane.b32.xlu0 %v4753, 32
        %v5499 = vpop.permute.xlu0 %5498
        %5500 = vrot.lane.b32.xlu0 %v4755, 32
        %v5501 = vpop.permute.xlu0 %5500
        %5502 = vrot.lane.b32.xlu0 %v4758, 32
        %v5503 = vpop.permute.xlu0 %5502
        %5504 = vrot.lane.b32.xlu0 %v4760, 32
        %v5505 = vpop.permute.xlu0 %5504
        %5506 = vrot.lane.b32.xlu0 %v4763, 32
        %v5507 = vpop.permute.xlu0 %5506
        %5508 = vrot.lane.b32.xlu0 %v4765, 32
        %v5509 = vpop.permute.xlu0 %5508
        %5510 = vrot.lane.b32.xlu0 %v4768, 32
        %v5511 = vpop.permute.xlu0 %5510
        %5512 = vrot.lane.b32.xlu0 %v4770, 32
        %v5513 = vpop.permute.xlu0 %5512
        %5514 = vrot.lane.b32.xlu0 %v4773, 32
        %v5515 = vpop.permute.xlu0 %5514
        %5516 = vrot.lane.b32.xlu0 %v4775, 32
        %v5517 = vpop.permute.xlu0 %5516
        %5518 = vrot.lane.b32.xlu0 %v4778, 32
        %v5519 = vpop.permute.xlu0 %5518
        %5520 = vrot.lane.b32.xlu0 %v4780, 32
        %v5521 = vpop.permute.xlu0 %5520
        %5522 = vrot.lane.b32.xlu0 %v4783, 32
        %v5523 = vpop.permute.xlu0 %5522
        %5524 = vrot.lane.b32.xlu0 %v4785, 32
        %v5525 = vpop.permute.xlu0 %5524
        %5526 = vrot.lane.b32.xlu0 %v4788, 32
        %v5527 = vpop.permute.xlu0 %5526
        %5528 = vrot.lane.b32.xlu0 %v4790, 32
        %v5529 = vpop.permute.xlu0 %5528
        %5530 = vrot.lane.b32.xlu0 %v4793, 32
        %v5531 = vpop.permute.xlu0 %5530
        %5532 = vrot.lane.b32.xlu0 %v4795, 32
        %v5533 = vpop.permute.xlu0 %5532
        %5534 = vrot.lane.b32.xlu0 %v4798, 32
        %v5535 = vpop.permute.xlu0 %5534
        %5536 = vrot.lane.b32.xlu0 %v4800, 32
        %v5537 = vpop.permute.xlu0 %5536
        %5538 = vrot.lane.b32.xlu0 %v4803, 32
        %v5539 = vpop.permute.xlu0 %5538
        %5540 = vrot.lane.b32.xlu0 %v4805, 32
        %v5541 = vpop.permute.xlu0 %5540
        %v5574 = vsel %vm3979, %v4037, %v4807
        %v5575 = vsel %vm3979, %v4038, %v4809
        %v5576 = vsel %vm3979, %v4040, %v4811
        %v5577 = vsel %vm3979, %v4041, %v4813
        %v5578 = vsel %vm3979, %v4043, %v4815
        %v5579 = vsel %vm3979, %v4044, %v4817
        %v5580 = vsel %vm3979, %v4046, %v4819
        %v5581 = vsel %vm3979, %v4047, %v4821
        %v5582 = vsel %vm3979, %v4049, %v4823
        %v5583 = vsel %vm3979, %v4050, %v4825
        %v5584 = vsel %vm3979, %v4052, %v4827
        %v5585 = vsel %vm3979, %v4053, %v4829
        %v5586 = vsel %vm3979, %v4055, %v4831
        %v5587 = vsel %vm3979, %v4056, %v4833
        %v5588 = vsel %vm3979, %v4058, %v4835
        %v5589 = vsel %vm3979, %v4059, %v4837
        %v5590 = vsel %vm3979, %v4061, %v4839
        %v5591 = vsel %vm3979, %v4062, %v4841
        %v5592 = vsel %vm3979, %v4064, %v4843
        %v5593 = vsel %vm3979, %v4065, %v4845
        %v5594 = vsel %vm3979, %v4067, %v4847
        %v5595 = vsel %vm3979, %v4068, %v4849
        %v5596 = vsel %vm3979, %v4070, %v4851
        %v5597 = vsel %vm3979, %v4071, %v4853
        %v5598 = vsel %vm3979, %v4073, %v4855
        %v5599 = vsel %vm3979, %v4074, %v4857
        %v5600 = vsel %vm3979, %v4076, %v4859
        %v5601 = vsel %vm3979, %v4077, %v4861
        %v5602 = vsel %vm3979, %v4079, %v4863
        %v5603 = vsel %vm3979, %v4080, %v4865
        %v5604 = vsel %vm3979, %v4082, %v4867
        %v5605 = vsel %vm3979, %v4083, %v4869
        %vm5606 = vcmask 326656
        %v5607 = vsel %vm5606, %v5574, %v4903
        %v5608 = vsel %vm5606, %v5575, %v4905
        %v5609 = vsel %vm5606, %v5576, %v4907
        %v5610 = vsel %vm5606, %v5577, %v4909
        %v5611 = vsel %vm5606, %v5578, %v4911
        %v5612 = vsel %vm5606, %v5579, %v4913
        %v5613 = vsel %vm5606, %v5580, %v4915
        %v5614 = vsel %vm5606, %v5581, %v4917
        %v5615 = vsel %vm5606, %v5582, %v4919
        %v5616 = vsel %vm5606, %v5583, %v4921
        %v5617 = vsel %vm5606, %v5584, %v4923
        %v5618 = vsel %vm5606, %v5585, %v4925
        %v5619 = vsel %vm5606, %v5586, %v4927
        %v5620 = vsel %vm5606, %v5587, %v4929
        %v5621 = vsel %vm5606, %v5588, %v4931
        %v5622 = vsel %vm5606, %v5589, %v4933
        %v5623 = vsel %vm5606, %v5590, %v4935
        %v5624 = vsel %vm5606, %v5591, %v4937
        %v5625 = vsel %vm5606, %v5592, %v4939
        %v5626 = vsel %vm5606, %v5593, %v4941
        %v5627 = vsel %vm5606, %v5594, %v4943
        %v5628 = vsel %vm5606, %v5595, %v4945
        %v5629 = vsel %vm5606, %v5596, %v4947
        %v5630 = vsel %vm5606, %v5597, %v4949
        %v5631 = vsel %vm5606, %v5598, %v4951
        %v5632 = vsel %vm5606, %v5599, %v4953
        %v5633 = vsel %vm5606, %v5600, %v4955
        %v5634 = vsel %vm5606, %v5601, %v4957
        %v5635 = vsel %vm5606, %v5602, %v4959
        %v5636 = vsel %vm5606, %v5603, %v4961
        %v5637 = vsel %vm5606, %v5604, %v4963
        %v5638 = vsel %vm5606, %v5605, %v4965
        %v5639 = vsel %vm1871, %v5607, %v4999
        %v5640 = vsel %vm1871, %v5608, %v5001
        %v5641 = vsel %vm1871, %v5609, %v5003
        %v5642 = vsel %vm1871, %v5610, %v5005
        %v5643 = vsel %vm1871, %v5611, %v5007
        %v5644 = vsel %vm1871, %v5612, %v5009
        %v5645 = vsel %vm1871, %v5613, %v5011
        %v5646 = vsel %vm1871, %v5614, %v5013
        %v5647 = vsel %vm1871, %v5615, %v5015
        %v5648 = vsel %vm1871, %v5616, %v5017
        %v5649 = vsel %vm1871, %v5617, %v5019
        %v5650 = vsel %vm1871, %v5618, %v5021
        %v5651 = vsel %vm1871, %v5619, %v5023
        %v5652 = vsel %vm1871, %v5620, %v5025
        %v5653 = vsel %vm1871, %v5621, %v5027
        %v5654 = vsel %vm1871, %v5622, %v5029
        %v5655 = vsel %vm1871, %v5623, %v5031
        %v5656 = vsel %vm1871, %v5624, %v5033
        %v5657 = vsel %vm1871, %v5625, %v5035
        %v5658 = vsel %vm1871, %v5626, %v5037
        %v5659 = vsel %vm1871, %v5627, %v5039
        %v5660 = vsel %vm1871, %v5628, %v5041
        %v5661 = vsel %vm1871, %v5629, %v5043
        %v5662 = vsel %vm1871, %v5630, %v5045
        %v5663 = vsel %vm1871, %v5631, %v5047
        %v5664 = vsel %vm1871, %v5632, %v5049
        %v5665 = vsel %vm1871, %v5633, %v5051
        %v5666 = vsel %vm1871, %v5634, %v5053
        %v5667 = vsel %vm1871, %v5635, %v5055
        %v5668 = vsel %vm1871, %v5636, %v5057
        %v5669 = vsel %vm1871, %v5637, %v5059
        %v5670 = vsel %vm1871, %v5638, %v5061
        %vm5671 = vcmask 654336
        %v5672 = vsel %vm5671, %v5639, %v5095
        %v5673 = vsel %vm5671, %v5640, %v5097
        %v5674 = vsel %vm5671, %v5641, %v5099
        %v5675 = vsel %vm5671, %v5642, %v5101
        %v5676 = vsel %vm5671, %v5643, %v5103
        %v5677 = vsel %vm5671, %v5644, %v5105
        %v5678 = vsel %vm5671, %v5645, %v5107
        %v5679 = vsel %vm5671, %v5646, %v5109
        %v5680 = vsel %vm5671, %v5647, %v5111
        %v5681 = vsel %vm5671, %v5648, %v5113
        %v5682 = vsel %vm5671, %v5649, %v5115
        %v5683 = vsel %vm5671, %v5650, %v5117
        %v5684 = vsel %vm5671, %v5651, %v5119
        %v5685 = vsel %vm5671, %v5652, %v5121
        %v5686 = vsel %vm5671, %v5653, %v5123
        %v5687 = vsel %vm5671, %v5654, %v5125
        %v5688 = vsel %vm5671, %v5655, %v5127
        %v5689 = vsel %vm5671, %v5656, %v5129
        %v5690 = vsel %vm5671, %v5657, %v5131
        %v5691 = vsel %vm5671, %v5658, %v5133
        %v5692 = vsel %vm5671, %v5659, %v5135
        %v5693 = vsel %vm5671, %v5660, %v5137
        %v5694 = vsel %vm5671, %v5661, %v5139
        %v5695 = vsel %vm5671, %v5662, %v5141
        %v5696 = vsel %vm5671, %v5663, %v5143
        %v5697 = vsel %vm5671, %v5664, %v5145
        %v5698 = vsel %vm5671, %v5665, %v5147
        %v5699 = vsel %vm5671, %v5666, %v5149
        %v5700 = vsel %vm5671, %v5667, %v5151
        %v5701 = vsel %vm5671, %v5668, %v5153
        %v5702 = vsel %vm5671, %v5669, %v5155
        %v5703 = vsel %vm5671, %v5670, %v5157
        %vm5704 = vcmask 818176
        %v5705 = vsel %vm5704, %v5672, %v5191
        %v5706 = vsel %vm5704, %v5673, %v5193
        %v5707 = vsel %vm5704, %v5674, %v5195
        %v5708 = vsel %vm5704, %v5675, %v5197
        %v5709 = vsel %vm5704, %v5676, %v5199
        %v5710 = vsel %vm5704, %v5677, %v5201
        %v5711 = vsel %vm5704, %v5678, %v5203
        %v5712 = vsel %vm5704, %v5679, %v5205
        %v5713 = vsel %vm5704, %v5680, %v5207
        %v5714 = vsel %vm5704, %v5681, %v5209
        %v5715 = vsel %vm5704, %v5682, %v5211
        %v5716 = vsel %vm5704, %v5683, %v5213
        %v5717 = vsel %vm5704, %v5684, %v5215
        %v5718 = vsel %vm5704, %v5685, %v5217
        %v5719 = vsel %vm5704, %v5686, %v5219
        %v5720 = vsel %vm5704, %v5687, %v5221
        %v5721 = vsel %vm5704, %v5688, %v5223
        %v5722 = vsel %vm5704, %v5689, %v5225
        %v5723 = vsel %vm5704, %v5690, %v5227
        %v5724 = vsel %vm5704, %v5691, %v5229
        %v5725 = vsel %vm5704, %v5692, %v5231
        %v5726 = vsel %vm5704, %v5693, %v5233
        %v5727 = vsel %vm5704, %v5694, %v5235
        %v5728 = vsel %vm5704, %v5695, %v5237
        %v5729 = vsel %vm5704, %v5696, %v5239
        %v5730 = vsel %vm5704, %v5697, %v5241
        %v5731 = vsel %vm5704, %v5698, %v5243
        %v5732 = vsel %vm5704, %v5699, %v5245
        %v5733 = vsel %vm5704, %v5700, %v5247
        %v5734 = vsel %vm5704, %v5701, %v5249
        %v5735 = vsel %vm5704, %v5702, %v5251
        %v5736 = vsel %vm5704, %v5703, %v5253
        %v5737 = vsel %vm1904, %v5705, %v5287
        %v5738 = vsel %vm1904, %v5706, %v5289
        %v5739 = vsel %vm1904, %v5707, %v5291
        %v5740 = vsel %vm1904, %v5708, %v5293
        %v5741 = vsel %vm1904, %v5709, %v5295
        %v5742 = vsel %vm1904, %v5710, %v5297
        %v5743 = vsel %vm1904, %v5711, %v5299
        %v5744 = vsel %vm1904, %v5712, %v5301
        %v5745 = vsel %vm1904, %v5713, %v5303
        %v5746 = vsel %vm1904, %v5714, %v5305
        %v5747 = vsel %vm1904, %v5715, %v5307
        %v5748 = vsel %vm1904, %v5716, %v5309
        %v5749 = vsel %vm1904, %v5717, %v5311
        %v5750 = vsel %vm1904, %v5718, %v5313
        %v5751 = vsel %vm1904, %v5719, %v5315
        %v5752 = vsel %vm1904, %v5720, %v5317
        %v5753 = vsel %vm1904, %v5721, %v5319
        %v5754 = vsel %vm1904, %v5722, %v5321
        %v5755 = vsel %vm1904, %v5723, %v5323
        %v5756 = vsel %vm1904, %v5724, %v5325
        %v5757 = vsel %vm1904, %v5725, %v5327
        %v5758 = vsel %vm1904, %v5726, %v5329
        %v5759 = vsel %vm1904, %v5727, %v5331
        %v5760 = vsel %vm1904, %v5728, %v5333
        %v5761 = vsel %vm1904, %v5729, %v5335
        %v5762 = vsel %vm1904, %v5730, %v5337
        %v5763 = vsel %vm1904, %v5731, %v5339
        %v5764 = vsel %vm1904, %v5732, %v5341
        %v5765 = vsel %vm1904, %v5733, %v5343
        %v5766 = vsel %vm1904, %v5734, %v5345
        %v5767 = vsel %vm1904, %v5735, %v5347
        %v5768 = vsel %vm1904, %v5736, %v5349
        %vm5769 = vcmask 97280
        %v5770 = vsel %vm5769, %v5287, %v5383
        %v5771 = vsel %vm5769, %v5289, %v5385
        %v5772 = vsel %vm5769, %v5291, %v5387
        %v5773 = vsel %vm5769, %v5293, %v5389
        %v5774 = vsel %vm5769, %v5295, %v5391
        %v5775 = vsel %vm5769, %v5297, %v5393
        %v5776 = vsel %vm5769, %v5299, %v5395
        %v5777 = vsel %vm5769, %v5301, %v5397
        %v5778 = vsel %vm5769, %v5303, %v5399
        %v5779 = vsel %vm5769, %v5305, %v5401
        %v5780 = vsel %vm5769, %v5307, %v5403
        %v5781 = vsel %vm5769, %v5309, %v5405
        %v5782 = vsel %vm5769, %v5311, %v5407
        %v5783 = vsel %vm5769, %v5313, %v5409
        %v5784 = vsel %vm5769, %v5315, %v5411
        %v5785 = vsel %vm5769, %v5317, %v5413
        %v5786 = vsel %vm5769, %v5319, %v5415
        %v5787 = vsel %vm5769, %v5321, %v5417
        %v5788 = vsel %vm5769, %v5323, %v5419
        %v5789 = vsel %vm5769, %v5325, %v5421
        %v5790 = vsel %vm5769, %v5327, %v5423
        %v5791 = vsel %vm5769, %v5329, %v5425
        %v5792 = vsel %vm5769, %v5331, %v5427
        %v5793 = vsel %vm5769, %v5333, %v5429
        %v5794 = vsel %vm5769, %v5335, %v5431
        %v5795 = vsel %vm5769, %v5337, %v5433
        %v5796 = vsel %vm5769, %v5339, %v5435
        %v5797 = vsel %vm5769, %v5341, %v5437
        %v5798 = vsel %vm5769, %v5343, %v5439
        %v5799 = vsel %vm5769, %v5345, %v5441
        %v5800 = vsel %vm5769, %v5347, %v5443
        %v5801 = vsel %vm5769, %v5349, %v5445
        %vm5802 = vcmask 261120
        %v5803 = vsel %vm5802, %v5770, %v5479
        %v5804 = vsel %vm5802, %v5771, %v5481
        %v5805 = vsel %vm5802, %v5772, %v5483
        %v5806 = vsel %vm5802, %v5773, %v5485
        %v5807 = vsel %vm5802, %v5774, %v5487
        %v5808 = vsel %vm5802, %v5775, %v5489
        %v5809 = vsel %vm5802, %v5776, %v5491
        %v5810 = vsel %vm5802, %v5777, %v5493
        %v5811 = vsel %vm5802, %v5778, %v5495
        %v5812 = vsel %vm5802, %v5779, %v5497
        %v5813 = vsel %vm5802, %v5780, %v5499
        %v5814 = vsel %vm5802, %v5781, %v5501
        %v5815 = vsel %vm5802, %v5782, %v5503
        %v5816 = vsel %vm5802, %v5783, %v5505
        %v5817 = vsel %vm5802, %v5784, %v5507
        %v5818 = vsel %vm5802, %v5785, %v5509
        %v5819 = vsel %vm5802, %v5786, %v5511
        %v5820 = vsel %vm5802, %v5787, %v5513
        %v5821 = vsel %vm5802, %v5788, %v5515
        %v5822 = vsel %vm5802, %v5789, %v5517
        %v5823 = vsel %vm5802, %v5790, %v5519
        %v5824 = vsel %vm5802, %v5791, %v5521
        %v5825 = vsel %vm5802, %v5792, %v5523
        %v5826 = vsel %vm5802, %v5793, %v5525
        %v5827 = vsel %vm5802, %v5794, %v5527
        %v5828 = vsel %vm5802, %v5795, %v5529
        %v5829 = vsel %vm5802, %v5796, %v5531
        %v5830 = vsel %vm5802, %v5797, %v5533
        %v5831 = vsel %vm5802, %v5798, %v5535
        %v5832 = vsel %vm5802, %v5799, %v5537
        %v5833 = vsel %vm5802, %v5800, %v5539
        %v5834 = vsel %vm5802, %v5801, %v5541
        %v5835 = vld [vmem:[%s3] sm:$0xff]
        %v5836 = vld [vmem:[%s3 + $0x8] sm:$0xff]
        %v5837 = vld [vmem:[%s3 + $0x10] sm:$0xff]
        %v5838 = vld [vmem:[%s3 + $0x18] sm:$0xff]
        %v5839 = vld [vmem:[%s3 + $0x20] sm:$0xff]
        %v5840 = vld [vmem:[%s3 + $0x28] sm:$0xff]
        %v5841 = vld [vmem:[%s3 + $0x30] sm:$0xff]
        %v5842 = vld [vmem:[%s3 + $0x38] sm:$0xff]
        %v5843 = vld [vmem:[%s3 + $0x40] sm:$0xff]
        %v5844 = vld [vmem:[%s3 + $0x48] sm:$0xff]
        %v5845 = vld [vmem:[%s3 + $0x50] sm:$0xff]
        %v5846 = vld [vmem:[%s3 + $0x58] sm:$0xff]
        %v5847 = vld [vmem:[%s3 + $0x60] sm:$0xff]
        %v5848 = vld [vmem:[%s3 + $0x68] sm:$0xff]
        %v5849 = vld [vmem:[%s3 + $0x70] sm:$0xff]
        %v5850 = vld [vmem:[%s3 + $0x78] sm:$0xff]
        %v5851 = vld [vmem:[%s3 + $0x80] sm:$0xff]
        %v5852 = vld [vmem:[%s3 + $0x88] sm:$0xff]
        %v5853 = vld [vmem:[%s3 + $0x90] sm:$0xff]
        %v5854 = vld [vmem:[%s3 + $0x98] sm:$0xff]
        %v5855 = vld [vmem:[%s3 + $0xa0] sm:$0xff]
        %v5856 = vld [vmem:[%s3 + $0xa8] sm:$0xff]
        %v5857 = vld [vmem:[%s3 + $0xb0] sm:$0xf]
        %v5858 = vld [vmem:[%s4] sm:$0x1]
        %v5860 = vlaneseq
        %v5861 = vshrl.u32 %v5860, 7
        %v5862 = vsub.s32 0, %v5861
        %v5863 = vrot.slane %v5858, %v5862
        %v5866 = vsel %vm1937, %v5803, 0
        %v5869 = vsel %vm1937, %v5804, 0
        %v5872 = vsel %vm1937, %v5805, 0
        %v5875 = vsel %vm1937, %v5806, 0
        %v5878 = vsel %vm1937, %v5807, 0
        %v5881 = vsel %vm1937, %v5808, 0
        %v5884 = vsel %vm1937, %v5809, 0
        %v5887 = vsel %vm1937, %v5810, 0
        %v5890 = vsel %vm1937, %v5811, 0
        %v5893 = vsel %vm1937, %v5812, 0
        %v5896 = vsel %vm1937, %v5813, 0
        %v5899 = vsel %vm1937, %v5814, 0
        %v5902 = vsel %vm1937, %v5815, 0
        %v5905 = vsel %vm1937, %v5816, 0
        %v5908 = vsel %vm1937, %v5817, 0
        %v5911 = vsel %vm1937, %v5818, 0
        %v5914 = vsel %vm1937, %v5819, 0
        %v5917 = vsel %vm1937, %v5820, 0
        %v5920 = vsel %vm1937, %v5821, 0
        %v5923 = vsel %vm1937, %v5822, 0
        %v5926 = vsel %vm1937, %v5823, 0
        %v5929 = vsel %vm1937, %v5824, 0
        %v5932 = vsel %vm1937, %v5825, 0
        %v5935 = vsel %vm1937, %v5826, 0
        %v5938 = vsel %vm1937, %v5827, 0
        %v5941 = vsel %vm1937, %v5828, 0
        %v5944 = vsel %vm1937, %v5829, 0
        %v5947 = vsel %vm1937, %v5830, 0
        %v5950 = vsel %vm1937, %v5831, 0
        %v5953 = vsel %vm1937, %v5832, 0
        %v5956 = vsel %vm1937, %v5833, 0
        %v5959 = vsel %vm1937, %v5834, 0
        %v5962 = vsel %vm2275, %v5857, 0
        %5964 = vmatprep.subr.mxu0 0.0
        %5965 = vmatpush1.msra.mxu0 %v5835
        %5966 = vmatprep.subr.mxu0 0.0
        %5967 = vmatpush1.msra.mxu0 %v5836
        %5968 = vmatprep.subr.mxu0 0.0
        %5969 = vmatpush1.msra.mxu0 %v5837
        %5970 = vmatprep.subr.mxu0 0.0
        %5971 = vmatpush1.msra.mxu0 %v5838
        %5972 = vmatprep.subr.mxu0 0.0
        %5973 = vmatpush1.msra.mxu0 %v5839
        %5974 = vmatprep.subr.mxu0 0.0
        %5975 = vmatpush1.msra.mxu0 %v5840
        %5976 = vmatprep.subr.mxu0 0.0
        %5977 = vmatpush1.msra.mxu0 %v5841
        %5978 = vmatprep.subr.mxu0 0.0
        %5979 = vmatpush1.msra.mxu0 %v5842
        %5980 = vmatprep.subr.mxu0 0.0
        %5981 = vmatpush1.msra.mxu0 %v5843
        %5982 = vmatprep.subr.mxu0 0.0
        %5983 = vmatpush1.msra.mxu0 %v5844
        %5984 = vmatprep.subr.mxu0 0.0
        %5985 = vmatpush1.msra.mxu0 %v5845
        %5986 = vmatprep.subr.mxu0 0.0
        %5987 = vmatpush1.msra.mxu0 %v5846
        %5988 = vmatprep.subr.mxu0 0.0
        %5989 = vmatpush1.msra.mxu0 %v5847
        %5990 = vmatprep.subr.mxu0 0.0
        %5991 = vmatpush1.msra.mxu0 %v5848
        %5992 = vmatprep.subr.mxu0 0.0
        %5993 = vmatpush1.msra.mxu0 %v5849
        %5994 = vmatprep.subr.mxu0 0.0
        %5995 = vmatpush1.msra.mxu0 %v5850
        %5996 = vmatprep.subr.mxu0 0.0
        %5997 = vmatpush1.msra.mxu0 %v5851
        %5998 = vmatprep.subr.mxu0 0.0
        %5999 = vmatpush1.msra.mxu0 %v5852
        %6000 = vmatprep.subr.mxu0 0.0
        %6001 = vmatpush1.msra.mxu0 %v5853
        %6002 = vmatprep.subr.mxu0 0.0
        %6003 = vmatpush1.msra.mxu0 %v5854
        %6004 = vmatprep.subr.mxu0 0.0
        %6005 = vmatpush1.msra.mxu0 %v5855
        %6006 = vmatprep.subr.mxu0 0.0
        %6007 = vmatpush1.msra.mxu0 %v5856
        %6008 = vmatprep.subr.mxu0 0.0
        %6009 = vmatpush1.msra.mxu0 %v5962
        %6010 = vmatprep.subr.mxu0 0.0
        %6011 = vmatpush1.msra.mxu0 0.0
        %6012 = vmatprep.subr.mxu0 0.0
        %6013 = vmatpush1.msra.mxu0 0.0
        %6014 = vmatprep.subr.mxu0 0.0
        %6015 = vmatpush1.msra.mxu0 0.0
        %6016 = vmatprep.subr.mxu0 0.0
        %6017 = vmatpush1.msra.mxu0 0.0
        %6018 = vmatprep.subr.mxu0 0.0
        %6019 = vmatpush1.msra.mxu0 0.0
        %6020 = vmatprep.subr.mxu0 0.0
        %6021 = vmatpush1.msra.mxu0 0.0
        %6022 = vmatprep.subr.mxu0 0.0
        %6023 = vmatpush1.msra.mxu0 0.0
        %6024 = vmatprep.subr.mxu0 0.0
        %6025 = vmatpush1.msra.mxu0 0.0
        %6026 = vmatprep.subr.mxu0 0.0
        %6027 = vmatpush1.msra.mxu0 0.0
        %6028 = vmatprep.mubr.f32.mxu0 %v5866
        %6029 = vmatmul.mubr.f32.gmra.mrb[0].mxu0 %v5737
        %v6030 = vpop.f32.mrb[0].mxu0
        %v6031 = vadd.f32 %v5863, %v6030
        %v6032 = vpop.f32.mrb[0].mxu0
        %6033 = vmatprep.mubr.f32.mxu0 %v5869
        %6034 = vmatmul.mubr.f32.gmra.mrb[0].mxu0 %v5738
        %v6035 = vpop.f32.mrb[0].mxu0
        %v6036 = vadd.f32 %v5863, %v6035
        %v6037 = vpop.f32.mrb[0].mxu0
        %6038 = vmatprep.mubr.f32.mxu0 %v5872
        %6039 = vmatmul.mubr.f32.gmra.mrb[0].mxu0 %v5739
        %v6040 = vpop.f32.mrb[0].mxu0
        %v6041 = vadd.f32 %v5863, %v6040
        %v6042 = vpop.f32.mrb[0].mxu0
        %6043 = vmatprep.mubr.f32.mxu0 %v5875
        %6044 = vmatmul.mubr.f32.gmra.mrb[0].mxu0 %v5740
        %v6045 = vpop.f32.mrb[0].mxu0
        %v6046 = vadd.f32 %v5863, %v6045
        %v6047 = vpop.f32.mrb[0].mxu0
        %6048 = vmatprep.mubr.f32.mxu0 %v5878
        %6049 = vmatmul.mubr.f32.gmra.mrb[0].mxu0 %v5741
        %v6050 = vpop.f32.mrb[0].mxu0
        %v6051 = vadd.f32 %v5863, %v6050
        %v6052 = vpop.f32.mrb[0].mxu0
        %6053 = vmatprep.mubr.f32.mxu0 %v5881
        %6054 = vmatmul.mubr.f32.gmra.mrb[0].mxu0 %v5742
        %v6055 = vpop.f32.mrb[0].mxu0
        %v6056 = vadd.f32 %v5863, %v6055
        %v6057 = vpop.f32.mrb[0].mxu0
        %6058 = vmatprep.mubr.f32.mxu0 %v5884
        %6059 = vmatmul.mubr.f32.gmra.mrb[0].mxu0 %v5743
        %v6060 = vpop.f32.mrb[0].mxu0
        %v6061 = vadd.f32 %v5863, %v6060
        %v6062 = vpop.f32.mrb[0].mxu0
        %6063 = vmatprep.mubr.f32.mxu0 %v5887
        %6064 = vmatmul.mubr.f32.gmra.mrb[0].mxu0 %v5744
        %v6065 = vpop.f32.mrb[0].mxu0
        %v6066 = vadd.f32 %v5863, %v6065
        %v6067 = vpop.f32.mrb[0].mxu0
        %6068 = vmatprep.mubr.f32.mxu0 %v5890
        %6069 = vmatmul.mubr.f32.gmra.mrb[0].mxu0 %v5745
        %v6070 = vpop.f32.mrb[0].mxu0
        %v6071 = vadd.f32 %v5863, %v6070
        %v6072 = vpop.f32.mrb[0].mxu0
        %6073 = vmatprep.mubr.f32.mxu0 %v5893
        %6074 = vmatmul.mubr.f32.gmra.mrb[0].mxu0 %v5746
        %v6075 = vpop.f32.mrb[0].mxu0
        %v6076 = vadd.f32 %v5863, %v6075
        %v6077 = vpop.f32.mrb[0].mxu0
        %6078 = vmatprep.mubr.f32.mxu0 %v5896
        %6079 = vmatmul.mubr.f32.gmra.mrb[0].mxu0 %v5747
        %v6080 = vpop.f32.mrb[0].mxu0
        %v6081 = vadd.f32 %v5863, %v6080
        %v6082 = vpop.f32.mrb[0].mxu0
        %6083 = vmatprep.mubr.f32.mxu0 %v5899
        %6084 = vmatmul.mubr.f32.gmra.mrb[0].mxu0 %v5748
        %v6085 = vpop.f32.mrb[0].mxu0
        %v6086 = vadd.f32 %v5863, %v6085
        %v6087 = vpop.f32.mrb[0].mxu0
        %6088 = vmatprep.mubr.f32.mxu0 %v5902
        %6089 = vmatmul.mubr.f32.gmra.mrb[0].mxu0 %v5749
        %v6090 = vpop.f32.mrb[0].mxu0
        %v6091 = vadd.f32 %v5863, %v6090
        %v6092 = vpop.f32.mrb[0].mxu0
        %6093 = vmatprep.mubr.f32.mxu0 %v5905
        %6094 = vmatmul.mubr.f32.gmra.mrb[0].mxu0 %v5750
        %v6095 = vpop.f32.mrb[0].mxu0
        %v6096 = vadd.f32 %v5863, %v6095
        %v6097 = vpop.f32.mrb[0].mxu0
        %6098 = vmatprep.mubr.f32.mxu0 %v5908
        %6099 = vmatmul.mubr.f32.gmra.mrb[0].mxu0 %v5751
        %v6100 = vpop.f32.mrb[0].mxu0
        %v6101 = vadd.f32 %v5863, %v6100
        %v6102 = vpop.f32.mrb[0].mxu0
        %6103 = vmatprep.mubr.f32.mxu0 %v5911
        %6104 = vmatmul.mubr.f32.gmra.mrb[0].mxu0 %v5752
        %v6105 = vpop.f32.mrb[0].mxu0
        %v6106 = vadd.f32 %v5863, %v6105
        %v6107 = vpop.f32.mrb[0].mxu0
        %6108 = vmatprep.mubr.f32.mxu0 %v5914
        %6109 = vmatmul.mubr.f32.gmra.mrb[0].mxu0 %v5753
        %v6110 = vpop.f32.mrb[0].mxu0
        %v6111 = vadd.f32 %v5863, %v6110
        %v6112 = vpop.f32.mrb[0].mxu0
        %6113 = vmatprep.mubr.f32.mxu0 %v5917
        %6114 = vmatmul.mubr.f32.gmra.mrb[0].mxu0 %v5754
        %v6115 = vpop.f32.mrb[0].mxu0
        %v6116 = vadd.f32 %v5863, %v6115
        %v6117 = vpop.f32.mrb[0].mxu0
        %6118 = vmatprep.mubr.f32.mxu0 %v5920
        %6119 = vmatmul.mubr.f32.gmra.mrb[0].mxu0 %v5755
        %v6120 = vpop.f32.mrb[0].mxu0
        %v6121 = vadd.f32 %v5863, %v6120
        %v6122 = vpop.f32.mrb[0].mxu0
        %6123 = vmatprep.mubr.f32.mxu0 %v5923
        %6124 = vmatmul.mubr.f32.gmra.mrb[0].mxu0 %v5756
        %v6125 = vpop.f32.mrb[0].mxu0
        %v6126 = vadd.f32 %v5863, %v6125
        %v6127 = vpop.f32.mrb[0].mxu0
        %6128 = vmatprep.mubr.f32.mxu0 %v5926
        %6129 = vmatmul.mubr.f32.gmra.mrb[0].mxu0 %v5757
        %v6130 = vpop.f32.mrb[0].mxu0
        %v6131 = vadd.f32 %v5863, %v6130
        %v6132 = vpop.f32.mrb[0].mxu0
        %6133 = vmatprep.mubr.f32.mxu0 %v5929
        %6134 = vmatmul.mubr.f32.gmra.mrb[0].mxu0 %v5758
        %v6135 = vpop.f32.mrb[0].mxu0
        %v6136 = vadd.f32 %v5863, %v6135
        %v6137 = vpop.f32.mrb[0].mxu0
        %6138 = vmatprep.mubr.f32.mxu0 %v5932
        %6139 = vmatmul.mubr.f32.gmra.mrb[0].mxu0 %v5759
        %v6140 = vpop.f32.mrb[0].mxu0
        %v6141 = vadd.f32 %v5863, %v6140
        %v6142 = vpop.f32.mrb[0].mxu0
        %6143 = vmatprep.mubr.f32.mxu0 %v5935
        %6144 = vmatmul.mubr.f32.gmra.mrb[0].mxu0 %v5760
        %v6145 = vpop.f32.mrb[0].mxu0
        %v6146 = vadd.f32 %v5863, %v6145
        %v6147 = vpop.f32.mrb[0].mxu0
        %6148 = vmatprep.mubr.f32.mxu0 %v5938
        %6149 = vmatmul.mubr.f32.gmra.mrb[0].mxu0 %v5761
        %v6150 = vpop.f32.mrb[0].mxu0
        %v6151 = vadd.f32 %v5863, %v6150
        %v6152 = vpop.f32.mrb[0].mxu0
        %6153 = vmatprep.mubr.f32.mxu0 %v5941
        %6154 = vmatmul.mubr.f32.gmra.mrb[0].mxu0 %v5762
        %v6155 = vpop.f32.mrb[0].mxu0
        %v6156 = vadd.f32 %v5863, %v6155
        %v6157 = vpop.f32.mrb[0].mxu0
        %6158 = vmatprep.mubr.f32.mxu0 %v5944
        %6159 = vmatmul.mubr.f32.gmra.mrb[0].mxu0 %v5763
        %v6160 = vpop.f32.mrb[0].mxu0
        %v6161 = vadd.f32 %v5863, %v6160
        %v6162 = vpop.f32.mrb[0].mxu0
        %6163 = vmatprep.mubr.f32.mxu0 %v5947
        %6164 = vmatmul.mubr.f32.gmra.mrb[0].mxu0 %v5764
        %v6165 = vpop.f32.mrb[0].mxu0
        %v6166 = vadd.f32 %v5863, %v6165
        %v6167 = vpop.f32.mrb[0].mxu0
        %6168 = vmatprep.mubr.f32.mxu0 %v5950
        %6169 = vmatmul.mubr.f32.gmra.mrb[0].mxu0 %v5765
        %v6170 = vpop.f32.mrb[0].mxu0
        %v6171 = vadd.f32 %v5863, %v6170
        %v6172 = vpop.f32.mrb[0].mxu0
        %6173 = vmatprep.mubr.f32.mxu0 %v5953
        %6174 = vmatmul.mubr.f32.gmra.mrb[0].mxu0 %v5766
        %v6175 = vpop.f32.mrb[0].mxu0
        %v6176 = vadd.f32 %v5863, %v6175
        %v6177 = vpop.f32.mrb[0].mxu0
        %6178 = vmatprep.mubr.f32.mxu0 %v5956
        %6179 = vmatmul.mubr.f32.gmra.mrb[0].mxu0 %v5767
        %v6180 = vpop.f32.mrb[0].mxu0
        %v6181 = vadd.f32 %v5863, %v6180
        %v6182 = vpop.f32.mrb[0].mxu0
        %6183 = vmatprep.mubr.f32.mxu0 %v5959
        %6184 = vmatmul.mubr.f32.gmra.mrb[0].mxu0 %v5768
        %v6185 = vpop.f32.mrb[0].mxu0
        %v6186 = vadd.f32 %v5863, %v6185
        %v6187 = vpop.f32.mrb[0].mxu0
        %6188 = vdwg.mxu0
        %v6189 = vsel %vm1871, %v6031, 0.0
        %v6190 = vsel %vm1871, %v6036, 0.0
        %v6191 = vadd.f32 %v6189, %v6190
        %v6192 = vsel %vm1871, %v6041, 0.0
        %v6193 = vadd.f32 %v6191, %v6192
        %v6194 = vsel %vm1871, %v6046, 0.0
        %v6195 = vadd.f32 %v6193, %v6194
        %v6196 = vsel %vm1871, %v6051, 0.0
        %v6197 = vadd.f32 %v6195, %v6196
        %v6198 = vsel %vm1871, %v6056, 0.0
        %v6199 = vadd.f32 %v6197, %v6198
        %v6200 = vsel %vm1871, %v6061, 0.0
        %v6201 = vadd.f32 %v6199, %v6200
        %v6202 = vsel %vm1871, %v6066, 0.0
        %v6203 = vadd.f32 %v6201, %v6202
        %v6204 = vsel %vm1871, %v6071, 0.0
        %v6205 = vadd.f32 %v6203, %v6204
        %v6206 = vsel %vm1871, %v6076, 0.0
        %v6207 = vadd.f32 %v6205, %v6206
        %v6208 = vsel %vm1871, %v6081, 0.0
        %v6209 = vadd.f32 %v6207, %v6208
        %v6210 = vsel %vm1871, %v6086, 0.0
        %v6211 = vadd.f32 %v6209, %v6210
        %v6212 = vsel %vm1871, %v6091, 0.0
        %v6213 = vadd.f32 %v6211, %v6212
        %v6214 = vsel %vm1871, %v6096, 0.0
        %v6215 = vadd.f32 %v6213, %v6214
        %v6216 = vsel %vm1871, %v6101, 0.0
        %v6217 = vadd.f32 %v6215, %v6216
        %v6218 = vsel %vm1871, %v6106, 0.0
        %v6219 = vadd.f32 %v6217, %v6218
        %v6220 = vsel %vm1871, %v6111, 0.0
        %v6221 = vadd.f32 %v6219, %v6220
        %v6222 = vsel %vm1871, %v6116, 0.0
        %v6223 = vadd.f32 %v6221, %v6222
        %v6224 = vsel %vm1871, %v6121, 0.0
        %v6225 = vadd.f32 %v6223, %v6224
        %v6226 = vsel %vm1871, %v6126, 0.0
        %v6227 = vadd.f32 %v6225, %v6226
        %v6228 = vsel %vm1871, %v6131, 0.0
        %v6229 = vadd.f32 %v6227, %v6228
        %v6230 = vsel %vm1871, %v6136, 0.0
        %v6231 = vadd.f32 %v6229, %v6230
        %v6232 = vsel %vm1871, %v6141, 0.0
        %v6233 = vadd.f32 %v6231, %v6232
        %v6234 = vsel %vm1871, %v6146, 0.0
        %v6235 = vadd.f32 %v6233, %v6234
        %v6236 = vsel %vm1871, %v6151, 0.0
        %v6237 = vadd.f32 %v6235, %v6236
        %v6238 = vsel %vm1871, %v6156, 0.0
        %v6239 = vadd.f32 %v6237, %v6238
        %v6240 = vsel %vm1871, %v6161, 0.0
        %v6241 = vadd.f32 %v6239, %v6240
        %v6242 = vsel %vm1871, %v6166, 0.0
        %v6243 = vadd.f32 %v6241, %v6242
        %v6244 = vsel %vm1871, %v6171, 0.0
        %v6245 = vadd.f32 %v6243, %v6244
        %v6246 = vsel %vm1871, %v6176, 0.0
        %v6247 = vadd.f32 %v6245, %v6246
        %v6248 = vsel %vm1871, %v6181, 0.0
        %v6249 = vadd.f32 %v6247, %v6248
        %v6250 = vsel %vm1871, %v6186, 0.0
        %v6251 = vadd.f32 %v6249, %v6250
        %v6252 = vrot.slane %v6251, 4
        %v6253 = vadd.f32 %v6251, %v6252
        %v6254 = vrot.slane %v6253, 2
        %v6255 = vadd.f32 %v6253, %v6254
        %v6256 = vrot.slane %v6255, 1
        %v6257 = vadd.f32 %v6255, %v6256
        %v6258 = vrcp.pop 256.0
        %v6259 = vmul.f32 %v6257, %v6258
        %v6260 = vld [vmem:[%s5] sm:$0x3]
        %v6261 = vmul.f32 %v6259, %v6260
        %vm6262 = vcmask 484352
        %v6263 = vsel %vm6262, %v6261, 0.0
        %6264 = vadd.xlane.f32.xlu0 %v6263
        %v6265 = vpop.xlane.xlu0 %6264
        %v6266 = vld [vmem:[%s6] sm:$0x3]
        %v6267 = vadd.f32 %v6265, %v6266
        %v6268 = vmax.f32 %v6267, 0.0
        %v6269 = vld [vmem:[%s7] sm:$0x3]
        %6271 = vset.pattern.permute.xlu0 0
        %6272 = vperm.xlu0 %6271, %v6268
        %v6273 = vpop.permute.xlu0 %6272
        %v6275 = vmul.f32 %v6273, %v6269
        %v6276 = vsel %vm6262, %v6275, 0.0
        %v6277 = vrot.slane %v6276, 4
        %v6278 = vadd.f32 %v6276, %v6277
        %v6279 = vrot.slane %v6278, 2
        %v6280 = vadd.f32 %v6278, %v6279
        %v6281 = vrot.slane %v6280, 1
        %v6282 = vadd.f32 %v6280, %v6281
        %v6283 = vld [vmem:[%s8] sm:$0x1]
        %v6284 = vadd.f32 %v6282, %v6283
        %v6285 = vsub.f32 0.0, %v6284
        %v6286 = vmul.f32 %v6285, 1.442695
        %v6287 = vpow.pop %v6286
        %v6288 = vadd.f32 %v6287, 1.0
        %v6289 = vrcp.pop %v6288
        %v6290 = vmul.f32 1.0, %v6289
        %v6291 = vlaneseq
        %v6292 = vshrl.u32 %v6291, 7
        %v6293 = vsub.s32 0, %v6292
        %v6294 = vrot.slane %v6290, %v6293
        %v6295 = vmul.f32 %v6031, %v6294
        %v6296 = vmul.f32 %v6036, %v6294
        %v6297 = vmul.f32 %v6041, %v6294
        %v6298 = vmul.f32 %v6046, %v6294
        %v6299 = vmul.f32 %v6051, %v6294
        %v6300 = vmul.f32 %v6056, %v6294
        %v6301 = vmul.f32 %v6061, %v6294
        %v6302 = vmul.f32 %v6066, %v6294
        %v6303 = vmul.f32 %v6071, %v6294
        %v6304 = vmul.f32 %v6076, %v6294
        %v6305 = vmul.f32 %v6081, %v6294
        %v6306 = vmul.f32 %v6086, %v6294
        %v6307 = vmul.f32 %v6091, %v6294
        %v6308 = vmul.f32 %v6096, %v6294
        %v6309 = vmul.f32 %v6101, %v6294
        %v6310 = vmul.f32 %v6106, %v6294
        %v6311 = vmul.f32 %v6111, %v6294
        %v6312 = vmul.f32 %v6116, %v6294
        %v6313 = vmul.f32 %v6121, %v6294
        %v6314 = vmul.f32 %v6126, %v6294
        %v6315 = vmul.f32 %v6131, %v6294
        %v6316 = vmul.f32 %v6136, %v6294
        %v6317 = vmul.f32 %v6141, %v6294
        %v6318 = vmul.f32 %v6146, %v6294
        %v6319 = vmul.f32 %v6151, %v6294
        %v6320 = vmul.f32 %v6156, %v6294
        %v6321 = vmul.f32 %v6161, %v6294
        %v6322 = vmul.f32 %v6166, %v6294
        %v6323 = vmul.f32 %v6171, %v6294
        %v6324 = vmul.f32 %v6176, %v6294
        %v6325 = vmul.f32 %v6181, %v6294
        %v6326 = vmul.f32 %v6186, %v6294
        %6327 = vst.msk [vmem:[%s325] sm:$0xff] %vm1871, %v6295
        %6328 = vst.msk [vmem:[%s325 + $0x8] sm:$0xff] %vm1871, %v6296
        %6329 = vst.msk [vmem:[%s325 + $0x10] sm:$0xff] %vm1871, %v6297
        %6330 = vst.msk [vmem:[%s325 + $0x18] sm:$0xff] %vm1871, %v6298
        %6331 = vst.msk [vmem:[%s325 + $0x20] sm:$0xff] %vm1871, %v6299
        %6332 = vst.msk [vmem:[%s325 + $0x28] sm:$0xff] %vm1871, %v6300
        %6333 = vst.msk [vmem:[%s325 + $0x30] sm:$0xff] %vm1871, %v6301
        %6334 = vst.msk [vmem:[%s325 + $0x38] sm:$0xff] %vm1871, %v6302
        %6335 = vst.msk [vmem:[%s325 + $0x40] sm:$0xff] %vm1871, %v6303
        %6336 = vst.msk [vmem:[%s325 + $0x48] sm:$0xff] %vm1871, %v6304
        %6337 = vst.msk [vmem:[%s325 + $0x50] sm:$0xff] %vm1871, %v6305
        %6338 = vst.msk [vmem:[%s325 + $0x58] sm:$0xff] %vm1871, %v6306
        %6339 = vst.msk [vmem:[%s325 + $0x60] sm:$0xff] %vm1871, %v6307
        %6340 = vst.msk [vmem:[%s325 + $0x68] sm:$0xff] %vm1871, %v6308
        %6341 = vst.msk [vmem:[%s325 + $0x70] sm:$0xff] %vm1871, %v6309
        %6342 = vst.msk [vmem:[%s325 + $0x78] sm:$0xff] %vm1871, %v6310
        %6343 = vst.msk [vmem:[%s325 + $0x80] sm:$0xff] %vm1871, %v6311
        %6344 = vst.msk [vmem:[%s325 + $0x88] sm:$0xff] %vm1871, %v6312
        %6345 = vst.msk [vmem:[%s325 + $0x90] sm:$0xff] %vm1871, %v6313
        %6346 = vst.msk [vmem:[%s325 + $0x98] sm:$0xff] %vm1871, %v6314
        %6347 = vst.msk [vmem:[%s325 + $0xa0] sm:$0xff] %vm1871, %v6315
        %6348 = vst.msk [vmem:[%s325 + $0xa8] sm:$0xff] %vm1871, %v6316
        %6349 = vst.msk [vmem:[%s325 + $0xb0] sm:$0xff] %vm1871, %v6317
        %6350 = vst.msk [vmem:[%s325 + $0xb8] sm:$0xff] %vm1871, %v6318
        %6351 = vst.msk [vmem:[%s325 + $0xc0] sm:$0xff] %vm1871, %v6319
        %6352 = vst.msk [vmem:[%s325 + $0xc8] sm:$0xff] %vm1871, %v6320
        %6353 = vst.msk [vmem:[%s325 + $0xd0] sm:$0xff] %vm1871, %v6321
        %6354 = vst.msk [vmem:[%s325 + $0xd8] sm:$0xff] %vm1871, %v6322
        %6355 = vst.msk [vmem:[%s325 + $0xe0] sm:$0xff] %vm1871, %v6323
        %6356 = vst.msk [vmem:[%s325 + $0xe8] sm:$0xff] %vm1871, %v6324
        %6357 = vst.msk [vmem:[%s325 + $0xf0] sm:$0xff] %vm1871, %v6325
        %6358 = vst.msk [vmem:[%s325 + $0xf8] sm:$0xff] %vm1871, %v6326
        %s6359 = sand.u32 %s225, 1
        %s6360 = scalar_lea.sflag [#allocation4], %s6359
        %s6361 = sand.u32 %s225, 1
        %s6362 = smul.addr %s6361, 256
        %s6363 = scalar_lea.vmem [#allocation3], %s6362
        // Predicated region
        $region57: #{cab_forward.1} parent=55 // pred_check
          %p6364 = pneg %p235
        $region58: #{cab_forward.1} parent=55 // pred_check_branch
          %6366 = sbr.rel (%p6364) target = $region60
        $region59: #{cab_forward.1} parent=55 // pred_region
          %s6368 = ssub.s32 4096, 4096
          %6369 = vsyncadd %s6360, %s6368
          %s6370 = smul.addr %s23, 32
          %s6371 = smul.addr %s6370, 128
          %s6372 = scalar_lea.hbm %s9, %s6371
          %s6373 = sshll.u32 %s6363, 4
          %s6374 = int_to_ptr.vmem [resolvable:$true] %s6373
          %6379 = dma.vmem_to_hbm [thread:$0]  %s6374, 4096, %s6372, %s6360, 128, 128, 8
        $region60: #{cab_forward.1} parent=55 // pred_fallthru
          _
      $region56: #{cab_forward.1} parent=5 // pred_fallthru
        _
      %p6380 = scmp.le.s32.totalorder 2, %s18
      // Predicated region
      $region61: #{cab_forward.1} parent=5 // pred_check
        %p6381 = pneg %p6380
      $region62: #{cab_forward.1} parent=5 // pred_check_branch
        %6383 = sbr.rel (%p6381) target = $region64
      $region63: #{cab_forward.1} parent=5 // pred_region
        %s6384 = ssub.s32 %s18, 2
        // Predicated region
        $region65: #{cab_forward.1} parent=63 // pred_check
          %p6385 = pneg %p241
        $region66: #{cab_forward.1} parent=63 // pred_check_branch
          %6387 = sbr.rel (%p6385) target = $region68
        $region67: #{cab_forward.1} parent=63 // pred_region
          %s6388 = sand.u32 %s226, 1
          %s6389 = scalar_lea.sflag [#allocation4], %s6388
          %s6390 = sand.u32 %s226, 1
          %s6391 = smul.addr %s6390, 256
          %s6392 = scalar_lea.vmem [#allocation3], %s6391
          %6393 = dma.done %s6389, 4096
        $region68: #{cab_forward.1} parent=63 // pred_fallthru
          _
      $region64: #{cab_forward.1} parent=5 // pred_fallthru
        _
    $region6: #{cab_forward.1} parent=1 // loop_footer
      %s22 = sadd.s32 1, %s18
    $region7: #{cab_forward.1} parent=1 // loop_footer_branch
      %17 = sbr.rel target = $region3
    $region8: #{cab_forward.1} parent=1 // loop_exit
      _
    %6394 = vsyncpa [#allocation4], 1
    %s6395 = scalar_lea.sflag [#allocation4], 1
    %6396 = vsyncpa %s6395, 1

</llo_original>
